<compile_context>
chip_gen: v7x
topology: tpu7x:2x2x1
jax: 0.10.0
libtpu: 0.0.40
codegen_flags: <defaults>
</compile_context>

<pallas_src>
import functools
import math

import jax
import jax.numpy as jnp
from jax import lax
from jax.experimental import pallas as pl
from jax.experimental.pallas import tpu as pltpu

REAL_MIN = 1e-30
THETA_MAX = 1000.0
WEI_SHAPE_MIN = 0.1
WEI_SHAPE_MAX = 100.0
GAM_PRIOR = 1.0
EULER_C = 0.5772  # matches the (truncated) constant in the torch reference

_HALF_LOG_2PI = 0.9189385332046727


# ----------------------------------------------------------------------------
# in-kernel math helpers (only ops with both Mosaic and interpret lowerings)
# ----------------------------------------------------------------------------
def _accurate_log1p(y):
    # log1p(y) for y >= 0 via Goldberg's correction: recovers the precision
    # jnp.log(1 + y) loses for small y without relying on a log1p lowering.
    u = 1.0 + y
    d = u - 1.0
    return jnp.where(d == 0.0, y, jnp.log(u) * (y / d))


def _softplus(x):
    # numerically-stable softplus; matches torch.nn.functional.softplus
    return jnp.maximum(x, 0.0) + _accurate_log1p(jnp.exp(-jnp.abs(x)))


def _gammaln_pos(z):
    """lgamma(z) for z > 0: 7-step upward recursion + Stirling series.

    TODO(synk): lax.lgamma has no Mosaic lowering; this approximation
    (|abs err| < 3e-9 for z = 1 + 1/k in [1.01, 11]) is used in-kernel only
    for the lamb / Gamma(1 + 1/k) rescale.  The KL term keeps exact lgamma
    in the plain-JAX epilogue.
    """
    w = z + 7.0
    p = z * (z + 1.0) * (z + 2.0) * (z + 3.0) * (z + 4.0) * (z + 5.0) * (z + 6.0)
    iw = 1.0 / w
    iw2 = iw * iw
    series = iw * (1.0 / 12.0 - iw2 * (1.0 / 360.0 - iw2 * (1.0 / 1260.0)))
    return (w - 0.5) * jnp.log(w) - w + _HALF_LOG_2PI + series - jnp.log(p)


# ----------------------------------------------------------------------------
# fused whole-forward kernel
# ----------------------------------------------------------------------------
# TODO(synk): ResBlock is referenced but not defined in models/sawetm.py;
# assumed the standard SawETM residual MLP block:
#   h = softplus(fc1(x)); out = h + softplus(fc2(h)).
def _build_sawetm_kernel(topics, hiddens, is_training, mxu_dtype):
    num_layers = len(topics)

    def mm(a, b):  # plain matmul, f32 accumulation on the MXU
        return jnp.dot(a.astype(mxu_dtype), b.astype(mxu_dtype),
                       preferred_element_type=jnp.float32)

    def mm_nt(a, b):  # a @ b.T without materializing a transpose
        return lax.dot_general(
            a.astype(mxu_dtype), b.astype(mxu_dtype),
            dimension_numbers=(((1,), (1,)), ((), ())),
            preferred_element_type=jnp.float32)

    def kernel(*refs):
        # ---- unpack refs (inputs then outputs) --------------------------------
        off = 0
        x_ref = refs[off]; off += 1
        rho_ref = refs[off]; off += 1
        alpha_refs = refs[off:off + num_layers]; off += num_layers
        enc_refs = []
        for _ in range(num_layers):
            enc_refs.append(refs[off:off + 4]); off += 4
        q_refs = []
        for _ in range(num_layers):
            q_refs.append(refs[off:off + 4]); off += 4
        eps_refs = None
        if is_training:
            eps_refs = refs[off:off + num_layers]; off += num_layers

        rowll_ref = refs[off]; off += 1
        k_refs = refs[off:off + num_layers]; off += num_layers
        lamb_refs = refs[off:off + num_layers]; off += num_layers
        theta_refs = refs[off:off + num_layers]; off += num_layers
        pbt_refs = refs[off:off + num_layers - 1]

        x = x_ref[...]

        # ---- bottom-up deterministic encoder (ResBlock chain) -----------------
        hidden = []
        h = x
        for n in range(num_layers):
            w1t_ref, b1_ref, w2t_ref, b2_ref = enc_refs[n]
            t = _softplus(mm(h, w1t_ref[...]) + b1_ref[...])
            h = t + _softplus(mm(t, w2t_ref[...]) + b2_ref[...])
            hidden.append(h)

        # ---- sawtooth factor loadings, computed already transposed ------------
        # phi_n = softmax(emb_prev @ alpha_n^T, dim=0)
        #   ==>  phi_n^T = softmax(alpha_n @ emb_prev^T, axis=-1)  (lane softmax)
        phi_t = []
        for n in range(num_layers):
            prev = rho_ref[...] if n == 0 else alpha_refs[n - 1][...]
            logits = mm_nt(alpha_refs[n][...], prev)
            mx = jnp.max(logits, axis=-1, keepdims=True)
            e = jnp.exp(logits - mx)
            inv = 1.0 / jnp.sum(e, axis=-1, keepdims=True)   # 1 divide per row
            phi_t.append(e * inv)                            # broadcast multiply

        # ---- top-down stochastic decoder ---------------------------------------
        pbt_next = None
        pbt0 = None
        for n in range(num_layers - 1, -1, -1):
            wk_ref, bk_ref, wl_ref, bl_ref = q_refs[n]   # split k / lamb weights
            hn = hiddens[n]
            if n == num_layers - 1:
                k_logit = mm(hidden[n], wk_ref[...])
                l_logit = mm(hidden[n], wl_ref[...])
            else:
                # joint_feat = concat([h_n, phi@theta_{n+1}]) -> split matmuls;
                # slice the weight Refs (zero-cost views), not loaded values.
                k_logit = (mm(hidden[n], wk_ref[:hn, :])
                           + mm(pbt_next, wk_ref[hn:, :]))
                l_logit = (mm(hidden[n], wl_ref[:hn, :])
                           + mm(pbt_next, wl_ref[hn:, :]))
            # softplus is elementwise, so applying it per-half == torch.chunk of
            # softplus(full).  First half -> k, second half -> lamb.
            k = jnp.clip(_softplus(k_logit + bk_ref[...]),
                         WEI_SHAPE_MIN, WEI_SHAPE_MAX)
            lamb = jnp.maximum(_softplus(l_logit + bl_ref[...]), REAL_MIN)

            if is_training:
                inv_k = 1.0 / k
                # torch stores/uses the POST-rescale lamb in training (and the
                # un-rescaled one in eval) -- matched here.
                lamb = lamb * jnp.exp(-_gammaln_pos(1.0 + inv_k))
                # Vectorized Weibull reparameterization: noise arrives as
                # log(-log(1-U)) of shape (s_num, bm, K); ONE wide exp, then a
                # mean over the sample axis.
                logb = eps_refs[n][...]
                samples = jnp.exp(logb * inv_k[None, :, :])
                theta = jnp.clip(lamb * jnp.mean(samples, axis=0),
                                 REAL_MIN, THETA_MAX)
            else:
                theta = jnp.minimum(lamb, THETA_MAX)

            pbt = mm(theta, phi_t[n])       # theta @ phi_n^T
            # TODO(synk): on v5e, pack k/lamb/theta into one lane-dense output
            # per layer to avoid narrow masked stores.
            k_refs[n][...] = k
            lamb_refs[n][...] = lamb
            theta_refs[n][...] = theta
            if n > 0:
                pbt_refs[n - 1][...] = pbt
                pbt_next = pbt
            else:
                pbt0 = pbt

        # ---- Poisson log-likelihood, row-reduced (lgamma(1+x) term added in the
        # JAX epilogue from a precomputed (batch,) row-sum) -----------------------
        ll = jnp.log(jnp.maximum(pbt0, REAL_MIN)) * x - pbt0
        rowll_ref[...] = jnp.sum(ll, axis=1, keepdims=True)

    return kernel


# ----------------------------------------------------------------------------
# plain-JAX glue: KL term (exact lgamma has no Mosaic lowering)
# ----------------------------------------------------------------------------
def kl_weibull_gamma(wei_shape, wei_scale, gam_shape, gam_scale):
    t1 = jnp.log(wei_shape) + lax.lgamma(gam_shape)
    t2 = -gam_shape * jnp.log(wei_scale * gam_scale)
    t3 = EULER_C * (gam_shape / wei_shape - 1.0) - 1.0
    t4 = gam_scale * wei_scale * jnp.exp(lax.lgamma(1.0 + 1.0 / wei_shape))
    return jnp.mean(jnp.sum(t1 + t2 + t3 + t4, axis=1))


# ----------------------------------------------------------------------------
# parameter init (torch-style init, stored pre-transposed / pre-split ONCE)
# ----------------------------------------------------------------------------
def init_params(key, vocab, embed, topics, hiddens, param_dtype=jnp.float32):
    """param_dtype=jnp.bfloat16 halves weight DMA/VMEM on v6e/v7x (pair with
    mxu_dtype=jnp.bfloat16 in sawetm_forward).  Biases stay f32 (vector path)."""
    num_layers = len(topics)
    keys = iter(jax.random.split(key, 4 * num_layers + 4))

    def linear(k, out_f, in_f):
        k1, k2 = jax.random.split(k)
        bound = 1.0 / math.sqrt(in_f)
        w = jax.random.uniform(k1, (out_f, in_f), jnp.float32, -bound, bound)
        b = jax.random.uniform(k2, (out_f,), jnp.float32, -bound, bound)
        return w, b

    params = {
        "rho": (0.02 * jax.random.normal(next(keys), (vocab, embed),
                                         jnp.float32)).astype(param_dtype),
        "alpha": [
            (0.02 * jax.random.normal(next(keys), (topics[n], embed),
                                      jnp.float32)).astype(param_dtype)
            for n in range(num_layers)
        ],
    }
    enc = []
    for n in range(num_layers):
        in_f = vocab if n == 0 else hiddens[n - 1]
        w1, b1 = linear(next(keys), hiddens[n], in_f)
        w2, b2 = linear(next(keys), hiddens[n], hiddens[n])
        # pre-transpose once at init: no per-forward host-side .T copies
        enc.append((w1.T.astype(param_dtype), b1.reshape(1, -1),
                    w2.T.astype(param_dtype), b2.reshape(1, -1)))
    params["enc"] = enc

    q = []
    for n in range(num_layers):
        in_f = hiddens[n] if n == num_layers - 1 else hiddens[n] + topics[n]
        w, b = linear(next(keys), 2 * topics[n], in_f)   # one Linear, like torch
        kn = topics[n]
        # split the merged k/lamb projection at init: lane-aligned halves, no
        # non-128 lane slicing of the activation in-kernel.
        q.append((w[:kn].T.astype(param_dtype), b[:kn].reshape(1, -1),
                  w[kn:].T.astype(param_dtype), b[kn:].reshape(1, -1)))
    params["q"] = q
    return params


# ----------------------------------------------------------------------------
# SawETM forward: ONE pallas_call (batch-parallel grid) + tiny JAX epilogue
# ----------------------------------------------------------------------------
def sawetm_forward(params, x, key, is_training=True, batch_block=None,
                   mxu_dtype=jnp.float32):
    num_layers = len(params["alpha"])
    topics = tuple(int(a.shape[0]) for a in params["alpha"])
    hiddens = tuple(int(e[1].shape[-1]) for e in params["enc"])
    sample_nums = tuple(3 if n == 0 else 50 for n in range(num_layers))
    batch, vocab = int(x.shape[0]), int(x.shape[1])

    # At real sizes use batch_block = 128 (v5e) / 256 (v6e, v7x) to fill the MXU.
    if batch_block is None:
        batch_block = min(batch, 128)
    bm = batch_block
    assert batch % bm == 0, "batch must be divisible by batch_block"
    grid = (batch // bm,)

    x = x.astype(jnp.float32)
    # data-only Poisson term, row-reduced OUTSIDE the kernel: no (B,V) lgx DMA.
    lgx_row = jnp.sum(lax.lgamma(1.0 + x), axis=1)

    def resident_spec(arr):  # weights stay VMEM-resident across grid steps
        zeros = (0,) * arr.ndim
        return pl.BlockSpec(arr.shape, lambda i: zeros)

    inputs = [x]
    in_specs = [pl.BlockSpec((bm, vocab), lambda i: (i, 0))]
    inputs.append(params["rho"]); in_specs.append(resident_spec(params["rho"]))
    for a in params["alpha"]:
        inputs.append(a); in_specs.append(resident_spec(a))
    for n in range(num_layers):
        for w in params["enc"][n]:
            inputs.append(w); in_specs.append(resident_spec(w))
    for n in range(num_layers):
        for w in params["q"][n]:
            inputs.append(w); in_specs.append(resident_spec(w))

    if is_training:
        # Weibull noise drawn with jax.random (no in-kernel HW PRNG: keeps the
        # kernel runnable in interpret mode and per-batch-tile independent by
        # construction).  Pre-processed to log(-log(1-U)) so the kernel needs a
        # single wide exp per layer.  Same distribution as torch.rand, different
        # stream.
        noise_keys = jax.random.split(key, num_layers)
        for n in range(num_layers):
            eps = jax.random.uniform(
                noise_keys[n], (sample_nums[n], batch, topics[n]),
                dtype=jnp.float32)
            base = jnp.maximum(-jnp.log(jnp.maximum(1.0 - eps, REAL_MIN)),
                               REAL_MIN)
            inputs.append(jnp.log(base))
            in_specs.append(pl.BlockSpec((sample_nums[n], bm, topics[n]),
                                         lambda i: (0, i, 0)))

    theta_like = [jax.ShapeDtypeStruct((batch, topics[n]), jnp.float32)
                  for n in range(num_layers)]
    out_shape = tuple(
        [jax.ShapeDtypeStruct((batch, 1), jnp.float32)]     # per-row log-lik sum
        + theta_like                                         # k
        + theta_like                                         # lamb
        + theta_like                                         # theta
        + [jax.ShapeDtypeStruct((batch, topics[n - 1]), jnp.float32)
           for n in range(1, num_layers)]                    # phi@theta, n>=1
    )
    out_specs = tuple(pl.BlockSpec((bm, s.shape[1]), lambda i: (i, 0))
                      for s in out_shape)

    kernel = _build_sawetm_kernel(topics, hiddens, is_training, mxu_dtype)
    # TODO(synk): for real vocab sizes set vmem_limit_bytes per generation
    # (<= ~56 MiB on v7x, ~96-100 MiB on v5e/v6e) together with vocab tiling.
    outs = pl.pallas_call(
        kernel,
        grid=grid,
        out_shape=out_shape,
        in_specs=in_specs,
        out_specs=out_specs,
        compiler_params=pltpu.CompilerParams(
            dimension_semantics=("parallel",)),
    )(*inputs)

    rowll = outs[0][:, 0]
    ks = list(outs[1:1 + num_layers])
    lambs = list(outs[1 + num_layers:1 + 2 * num_layers])
    thetas = list(outs[1 + 2 * num_layers:1 + 3 * num_layers])
    pbts = list(outs[1 + 3 * num_layers:])  # phi_by_theta for layers 1..L-1

    nll = -jnp.mean(rowll - lgx_row)

    kl_loss = jnp.float32(0.0)
    for n in range(num_layers):
        if n == num_layers - 1:
            gam_shape = jnp.float32(GAM_PRIOR)
        else:
            gam_shape = pbts[n]  # == phi_by_theta_list[n + 1]
        kl_loss = kl_loss + kl_weibull_gamma(
            ks[n], lambs[n], gam_shape, jnp.float32(GAM_PRIOR))

    nelbo = nll + kl_loss
    return nelbo, nll, kl_loss, thetas


# ----------------------------------------------------------------------------
if __name__ == "__main__":
    vocab_size = 128
    embed_size = 32
    num_topics_list = [32, 16]
    num_hiddens_list = [64, 32]
    batch = 16

    root = jax.random.PRNGKey(0)
    k_params, k_data, k_eps = jax.random.split(root, 3)

    params = init_params(
        k_params, vocab_size, embed_size, num_topics_list, num_hiddens_list
    )
    # bag-of-words style non-negative counts
    x = jnp.floor(
        5.0 * jax.random.uniform(k_data, (batch, vocab_size), dtype=jnp.float32)
    )

    fwd = jax.jit(functools.partial(sawetm_forward, is_training=True,
                                    batch_block=8))
    nelbo, nll, kl, thetas = fwd(params, x, k_eps)
    jax.block_until_ready((nelbo, nll, kl, thetas))
    print("KERNEL_OK")
</pallas_src>

<mosaic_0001>
module attributes {stable_mosaic.version = 11 : i64} {
  func.func @kernel(%arg0: i32, %arg1: memref<8x128xf32, #tpu.memory_space<vmem>>, %arg2: memref<128x32xf32, #tpu.memory_space<vmem>>, %arg3: memref<32x32xf32, #tpu.memory_space<vmem>>, %arg4: memref<16x32xf32, #tpu.memory_space<vmem>>, %arg5: memref<128x64xf32, #tpu.memory_space<vmem>>, %arg6: memref<1x64xf32, #tpu.memory_space<vmem>>, %arg7: memref<64x64xf32, #tpu.memory_space<vmem>>, %arg8: memref<1x64xf32, #tpu.memory_space<vmem>>, %arg9: memref<64x32xf32, #tpu.memory_space<vmem>>, %arg10: memref<1x32xf32, #tpu.memory_space<vmem>>, %arg11: memref<32x32xf32, #tpu.memory_space<vmem>>, %arg12: memref<1x32xf32, #tpu.memory_space<vmem>>, %arg13: memref<96x32xf32, #tpu.memory_space<vmem>>, %arg14: memref<1x32xf32, #tpu.memory_space<vmem>>, %arg15: memref<96x32xf32, #tpu.memory_space<vmem>>, %arg16: memref<1x32xf32, #tpu.memory_space<vmem>>, %arg17: memref<32x16xf32, #tpu.memory_space<vmem>>, %arg18: memref<1x16xf32, #tpu.memory_space<vmem>>, %arg19: memref<32x16xf32, #tpu.memory_space<vmem>>, %arg20: memref<1x16xf32, #tpu.memory_space<vmem>>, %arg21: memref<3x8x32xf32, #tpu.memory_space<vmem>>, %arg22: memref<50x8x16xf32, #tpu.memory_space<vmem>>, %arg23: memref<8x1xf32, #tpu.memory_space<vmem>>, %arg24: memref<8x32xf32, #tpu.memory_space<vmem>>, %arg25: memref<8x16xf32, #tpu.memory_space<vmem>>, %arg26: memref<8x32xf32, #tpu.memory_space<vmem>>, %arg27: memref<8x16xf32, #tpu.memory_space<vmem>>, %arg28: memref<8x32xf32, #tpu.memory_space<vmem>>, %arg29: memref<8x16xf32, #tpu.memory_space<vmem>>, %arg30: memref<8x32xf32, #tpu.memory_space<vmem>>) attributes {dimension_semantics = [#tpu.dimension_semantics<parallel>], iteration_bounds = array<i64: 2>, scalar_prefetch = 0 : i64, scratch_operands = 0 : i64, tpu.core_type = #tpu.core_type<tc>, window_params = [{transform_indices = @transform_0, window_bounds = array<i64: 8, 128>}, {pipeline_mode = #tpu.pipeline_mode<synchronous>, transform_indices = @transform_1, window_bounds = array<i64: 128, 32>}, {pipeline_mode = #tpu.pipeline_mode<synchronous>, transform_indices = @transform_2, window_bounds = array<i64: 32, 32>}, {pipeline_mode = #tpu.pipeline_mode<synchronous>, transform_indices = @transform_3, window_bounds = array<i64: 16, 32>}, {pipeline_mode = #tpu.pipeline_mode<synchronous>, transform_indices = @transform_4, window_bounds = array<i64: 128, 64>}, {pipeline_mode = #tpu.pipeline_mode<synchronous>, transform_indices = @transform_5, window_bounds = array<i64: 1, 64>}, {pipeline_mode = #tpu.pipeline_mode<synchronous>, transform_indices = @transform_6, window_bounds = array<i64: 64, 64>}, {pipeline_mode = #tpu.pipeline_mode<synchronous>, transform_indices = @transform_7, window_bounds = array<i64: 1, 64>}, {pipeline_mode = #tpu.pipeline_mode<synchronous>, transform_indices = @transform_8, window_bounds = array<i64: 64, 32>}, {pipeline_mode = #tpu.pipeline_mode<synchronous>, transform_indices = @transform_9, window_bounds = array<i64: 1, 32>}, {pipeline_mode = #tpu.pipeline_mode<synchronous>, transform_indices = @transform_10, window_bounds = array<i64: 32, 32>}, {pipeline_mode = #tpu.pipeline_mode<synchronous>, transform_indices = @transform_11, window_bounds = array<i64: 1, 32>}, {pipeline_mode = #tpu.pipeline_mode<synchronous>, transform_indices = @transform_12, window_bounds = array<i64: 96, 32>}, {pipeline_mode = #tpu.pipeline_mode<synchronous>, transform_indices = @transform_13, window_bounds = array<i64: 1, 32>}, {pipeline_mode = #tpu.pipeline_mode<synchronous>, transform_indices = @transform_14, window_bounds = array<i64: 96, 32>}, {pipeline_mode = #tpu.pipeline_mode<synchronous>, transform_indices = @transform_15, window_bounds = array<i64: 1, 32>}, {pipeline_mode = #tpu.pipeline_mode<synchronous>, transform_indices = @transform_16, window_bounds = array<i64: 32, 16>}, {pipeline_mode = #tpu.pipeline_mode<synchronous>, transform_indices = @transform_17, window_bounds = array<i64: 1, 16>}, {pipeline_mode = #tpu.pipeline_mode<synchronous>, transform_indices = @transform_18, window_bounds = array<i64: 32, 16>}, {pipeline_mode = #tpu.pipeline_mode<synchronous>, transform_indices = @transform_19, window_bounds = array<i64: 1, 16>}, {transform_indices = @transform_20, window_bounds = array<i64: 3, 8, 32>}, {transform_indices = @transform_21, window_bounds = array<i64: 50, 8, 16>}, {transform_indices = @transform_22, window_bounds = array<i64: 8, 1>}, {transform_indices = @transform_23, window_bounds = array<i64: 8, 32>}, {transform_indices = @transform_24, window_bounds = array<i64: 8, 16>}, {transform_indices = @transform_25, window_bounds = array<i64: 8, 32>}, {transform_indices = @transform_26, window_bounds = array<i64: 8, 16>}, {transform_indices = @transform_27, window_bounds = array<i64: 8, 32>}, {transform_indices = @transform_28, window_bounds = array<i64: 8, 16>}, {transform_indices = @transform_29, window_bounds = array<i64: 8, 32>}]} {
    %c0 = arith.constant 0 : index
    %c0_0 = arith.constant 0 : index
    %0 = vector.load %arg1[%c0, %c0_0] : memref<8x128xf32, #tpu.memory_space<vmem>>, vector<8x128xf32>
    %c0_1 = arith.constant 0 : index
    %c0_2 = arith.constant 0 : index
    %1 = vector.load %arg5[%c0_1, %c0_2] : memref<128x64xf32, #tpu.memory_space<vmem>>, vector<128x64xf32>
    %cst = arith.constant dense<0.000000e+00> : vector<8x64xf32>
    %2 = tpu.matmul %0, %1, %cst {dimension_numbers = #tpu.dot_dimension_numbers<[1], [0], [0], [1], [0, 0, 1, 1], [], []>} : vector<8x128xf32>, vector<128x64xf32>, vector<8x64xf32> -> vector<8x64xf32>
    %c0_3 = arith.constant 0 : index
    %c0_4 = arith.constant 0 : index
    %3 = vector.load %arg6[%c0_3, %c0_4] : memref<1x64xf32, #tpu.memory_space<vmem>>, vector<1x64xf32>
    %4 = vector.broadcast %3 : vector<1x64xf32> to vector<8x64xf32>
    %5 = arith.addf %2, %4 : vector<8x64xf32>
    %cst_5 = arith.constant 0.000000e+00 : f32
    %6 = vector.broadcast %cst_5 : f32 to vector<8x64xf32>
    %7 = arith.maximumf %5, %6 : vector<8x64xf32>
    %8 = math.absf %5 : vector<8x64xf32>
    %cst_6 = arith.constant 0.000000e+00 : f32
    %9 = vector.broadcast %cst_6 : f32 to vector<8x64xf32>
    %10 = arith.subf %9, %8 : vector<8x64xf32>
    %11 = math.exp %10 : vector<8x64xf32>
    %cst_7 = arith.constant 1.000000e+00 : f32
    %12 = vector.broadcast %cst_7 : f32 to vector<8x64xf32>
    %13 = arith.addf %12, %11 : vector<8x64xf32>
    %cst_8 = arith.constant 1.000000e+00 : f32
    %14 = vector.broadcast %cst_8 : f32 to vector<8x64xf32>
    %15 = arith.subf %13, %14 : vector<8x64xf32>
    %cst_9 = arith.constant 0.000000e+00 : f32
    %16 = vector.broadcast %cst_9 : f32 to vector<8x64xf32>
    %17 = arith.cmpf oeq, %15, %16 : vector<8x64xf32>
    %18 = math.log %13 : vector<8x64xf32>
    %19 = arith.divf %11, %15 : vector<8x64xf32>
    %20 = arith.mulf %18, %19 : vector<8x64xf32>
    %21 = arith.select %17, %11, %20 : vector<8x64xi1>, vector<8x64xf32>
    %22 = arith.addf %7, %21 : vector<8x64xf32>
    %c0_10 = arith.constant 0 : index
    %c0_11 = arith.constant 0 : index
    %23 = vector.load %arg7[%c0_10, %c0_11] : memref<64x64xf32, #tpu.memory_space<vmem>>, vector<64x64xf32>
    %cst_12 = arith.constant dense<0.000000e+00> : vector<8x64xf32>
    %24 = tpu.matmul %22, %23, %cst_12 {dimension_numbers = #tpu.dot_dimension_numbers<[1], [0], [0], [1], [0, 0, 1, 1], [], []>} : vector<8x64xf32>, vector<64x64xf32>, vector<8x64xf32> -> vector<8x64xf32>
    %c0_13 = arith.constant 0 : index
    %c0_14 = arith.constant 0 : index
    %25 = vector.load %arg8[%c0_13, %c0_14] : memref<1x64xf32, #tpu.memory_space<vmem>>, vector<1x64xf32>
    %26 = vector.broadcast %25 : vector<1x64xf32> to vector<8x64xf32>
    %27 = arith.addf %24, %26 : vector<8x64xf32>
    %cst_15 = arith.constant 0.000000e+00 : f32
    %28 = vector.broadcast %cst_15 : f32 to vector<8x64xf32>
    %29 = arith.maximumf %27, %28 : vector<8x64xf32>
    %30 = math.absf %27 : vector<8x64xf32>
    %cst_16 = arith.constant 0.000000e+00 : f32
    %31 = vector.broadcast %cst_16 : f32 to vector<8x64xf32>
    %32 = arith.subf %31, %30 : vector<8x64xf32>
    %33 = math.exp %32 : vector<8x64xf32>
    %cst_17 = arith.constant 1.000000e+00 : f32
    %34 = vector.broadcast %cst_17 : f32 to vector<8x64xf32>
    %35 = arith.addf %34, %33 : vector<8x64xf32>
    %cst_18 = arith.constant 1.000000e+00 : f32
    %36 = vector.broadcast %cst_18 : f32 to vector<8x64xf32>
    %37 = arith.subf %35, %36 : vector<8x64xf32>
    %cst_19 = arith.constant 0.000000e+00 : f32
    %38 = vector.broadcast %cst_19 : f32 to vector<8x64xf32>
    %39 = arith.cmpf oeq, %37, %38 : vector<8x64xf32>
    %40 = math.log %35 : vector<8x64xf32>
    %41 = arith.divf %33, %37 : vector<8x64xf32>
    %42 = arith.mulf %40, %41 : vector<8x64xf32>
    %43 = arith.select %39, %33, %42 : vector<8x64xi1>, vector<8x64xf32>
    %44 = arith.addf %29, %43 : vector<8x64xf32>
    %45 = arith.addf %22, %44 : vector<8x64xf32>
    %c0_20 = arith.constant 0 : index
    %c0_21 = arith.constant 0 : index
    %46 = vector.load %arg9[%c0_20, %c0_21] : memref<64x32xf32, #tpu.memory_space<vmem>>, vector<64x32xf32>
    %cst_22 = arith.constant dense<0.000000e+00> : vector<8x32xf32>
    %47 = tpu.matmul %45, %46, %cst_22 {dimension_numbers = #tpu.dot_dimension_numbers<[1], [0], [0], [1], [0, 0, 1, 1], [], []>} : vector<8x64xf32>, vector<64x32xf32>, vector<8x32xf32> -> vector<8x32xf32>
    %c0_23 = arith.constant 0 : index
    %c0_24 = arith.constant 0 : index
    %48 = vector.load %arg10[%c0_23, %c0_24] : memref<1x32xf32, #tpu.memory_space<vmem>>, vector<1x32xf32>
    %49 = vector.broadcast %48 : vector<1x32xf32> to vector<8x32xf32>
    %50 = arith.addf %47, %49 : vector<8x32xf32>
    %cst_25 = arith.constant 0.000000e+00 : f32
    %51 = vector.broadcast %cst_25 : f32 to vector<8x32xf32>
    %52 = arith.maximumf %50, %51 : vector<8x32xf32>
    %53 = math.absf %50 : vector<8x32xf32>
    %cst_26 = arith.constant 0.000000e+00 : f32
    %54 = vector.broadcast %cst_26 : f32 to vector<8x32xf32>
    %55 = arith.subf %54, %53 : vector<8x32xf32>
    %56 = math.exp %55 : vector<8x32xf32>
    %cst_27 = arith.constant 1.000000e+00 : f32
    %57 = vector.broadcast %cst_27 : f32 to vector<8x32xf32>
    %58 = arith.addf %57, %56 : vector<8x32xf32>
    %cst_28 = arith.constant 1.000000e+00 : f32
    %59 = vector.broadcast %cst_28 : f32 to vector<8x32xf32>
    %60 = arith.subf %58, %59 : vector<8x32xf32>
    %cst_29 = arith.constant 0.000000e+00 : f32
    %61 = vector.broadcast %cst_29 : f32 to vector<8x32xf32>
    %62 = arith.cmpf oeq, %60, %61 : vector<8x32xf32>
    %63 = math.log %58 : vector<8x32xf32>
    %64 = arith.divf %56, %60 : vector<8x32xf32>
    %65 = arith.mulf %63, %64 : vector<8x32xf32>
    %66 = arith.select %62, %56, %65 : vector<8x32xi1>, vector<8x32xf32>
    %67 = arith.addf %52, %66 : vector<8x32xf32>
    %c0_30 = arith.constant 0 : index
    %c0_31 = arith.constant 0 : index
    %68 = vector.load %arg11[%c0_30, %c0_31] : memref<32x32xf32, #tpu.memory_space<vmem>>, vector<32x32xf32>
    %cst_32 = arith.constant dense<0.000000e+00> : vector<8x32xf32>
    %69 = tpu.matmul %67, %68, %cst_32 {dimension_numbers = #tpu.dot_dimension_numbers<[1], [0], [0], [1], [0, 0, 1, 1], [], []>} : vector<8x32xf32>, vector<32x32xf32>, vector<8x32xf32> -> vector<8x32xf32>
    %c0_33 = arith.constant 0 : index
    %c0_34 = arith.constant 0 : index
    %70 = vector.load %arg12[%c0_33, %c0_34] : memref<1x32xf32, #tpu.memory_space<vmem>>, vector<1x32xf32>
    %71 = vector.broadcast %70 : vector<1x32xf32> to vector<8x32xf32>
    %72 = arith.addf %69, %71 : vector<8x32xf32>
    %cst_35 = arith.constant 0.000000e+00 : f32
    %73 = vector.broadcast %cst_35 : f32 to vector<8x32xf32>
    %74 = arith.maximumf %72, %73 : vector<8x32xf32>
    %75 = math.absf %72 : vector<8x32xf32>
    %cst_36 = arith.constant 0.000000e+00 : f32
    %76 = vector.broadcast %cst_36 : f32 to vector<8x32xf32>
    %77 = arith.subf %76, %75 : vector<8x32xf32>
    %78 = math.exp %77 : vector<8x32xf32>
    %cst_37 = arith.constant 1.000000e+00 : f32
    %79 = vector.broadcast %cst_37 : f32 to vector<8x32xf32>
    %80 = arith.addf %79, %78 : vector<8x32xf32>
    %cst_38 = arith.constant 1.000000e+00 : f32
    %81 = vector.broadcast %cst_38 : f32 to vector<8x32xf32>
    %82 = arith.subf %80, %81 : vector<8x32xf32>
    %cst_39 = arith.constant 0.000000e+00 : f32
    %83 = vector.broadcast %cst_39 : f32 to vector<8x32xf32>
    %84 = arith.cmpf oeq, %82, %83 : vector<8x32xf32>
    %85 = math.log %80 : vector<8x32xf32>
    %86 = arith.divf %78, %82 : vector<8x32xf32>
    %87 = arith.mulf %85, %86 : vector<8x32xf32>
    %88 = arith.select %84, %78, %87 : vector<8x32xi1>, vector<8x32xf32>
    %89 = arith.addf %74, %88 : vector<8x32xf32>
    %90 = arith.addf %67, %89 : vector<8x32xf32>
    %c0_40 = arith.constant 0 : index
    %c0_41 = arith.constant 0 : index
    %91 = vector.load %arg2[%c0_40, %c0_41] : memref<128x32xf32, #tpu.memory_space<vmem>>, vector<128x32xf32>
    %c0_42 = arith.constant 0 : index
    %c0_43 = arith.constant 0 : index
    %92 = vector.load %arg3[%c0_42, %c0_43] : memref<32x32xf32, #tpu.memory_space<vmem>>, vector<32x32xf32>
    %cst_44 = arith.constant dense<0.000000e+00> : vector<32x128xf32>
    %93 = tpu.matmul %92, %91, %cst_44 {dimension_numbers = #tpu.dot_dimension_numbers<[1], [1], [0], [0], [0, 0, 1, 0], [], []>} : vector<32x32xf32>, vector<128x32xf32>, vector<32x128xf32> -> vector<32x128xf32>
    %cst_45 = arith.constant dense<0xFF800000> : vector<32xf32>
    %94 = vector.multi_reduction <maximumf>, %93, %cst_45 [1] : vector<32x128xf32> to vector<32xf32>
    %95 = vector.shape_cast %94 : vector<32xf32> to vector<32x1xf32>
    %96 = vector.broadcast %95 : vector<32x1xf32> to vector<32x128xf32>
    %97 = arith.subf %93, %96 : vector<32x128xf32>
    %98 = math.exp %97 : vector<32x128xf32>
    %cst_46 = arith.constant dense<0.000000e+00> : vector<32xf32>
    %99 = vector.multi_reduction <add>, %98, %cst_46 [1] : vector<32x128xf32> to vector<32xf32>
    %100 = vector.shape_cast %99 : vector<32xf32> to vector<32x1xf32>
    %cst_47 = arith.constant 1.000000e+00 : f32
    %101 = vector.broadcast %cst_47 : f32 to vector<32x1xf32>
    %102 = arith.divf %101, %100 : vector<32x1xf32>
    %103 = vector.broadcast %102 : vector<32x1xf32> to vector<32x128xf32>
    %104 = arith.mulf %98, %103 : vector<32x128xf32>
    %c0_48 = arith.constant 0 : index
    %c0_49 = arith.constant 0 : index
    %105 = vector.load %arg3[%c0_48, %c0_49] : memref<32x32xf32, #tpu.memory_space<vmem>>, vector<32x32xf32>
    %c0_50 = arith.constant 0 : index
    %c0_51 = arith.constant 0 : index
    %106 = vector.load %arg4[%c0_50, %c0_51] : memref<16x32xf32, #tpu.memory_space<vmem>>, vector<16x32xf32>
    %cst_52 = arith.constant dense<0.000000e+00> : vector<16x32xf32>
    %107 = tpu.matmul %106, %105, %cst_52 {dimension_numbers = #tpu.dot_dimension_numbers<[1], [1], [0], [0], [0, 0, 1, 0], [], []>} : vector<16x32xf32>, vector<32x32xf32>, vector<16x32xf32> -> vector<16x32xf32>
    %cst_53 = arith.constant dense<0xFF800000> : vector<16xf32>
    %108 = vector.multi_reduction <maximumf>, %107, %cst_53 [1] : vector<16x32xf32> to vector<16xf32>
    %109 = vector.shape_cast %108 : vector<16xf32> to vector<16x1xf32>
    %110 = vector.broadcast %109 : vector<16x1xf32> to vector<16x32xf32>
    %111 = arith.subf %107, %110 : vector<16x32xf32>
    %112 = math.exp %111 : vector<16x32xf32>
    %cst_54 = arith.constant dense<0.000000e+00> : vector<16xf32>
    %113 = vector.multi_reduction <add>, %112, %cst_54 [1] : vector<16x32xf32> to vector<16xf32>
    %114 = vector.shape_cast %113 : vector<16xf32> to vector<16x1xf32>
    %cst_55 = arith.constant 1.000000e+00 : f32
    %115 = vector.broadcast %cst_55 : f32 to vector<16x1xf32>
    %116 = arith.divf %115, %114 : vector<16x1xf32>
    %117 = vector.broadcast %116 : vector<16x1xf32> to vector<16x32xf32>
    %118 = arith.mulf %112, %117 : vector<16x32xf32>
    %c0_56 = arith.constant 0 : index
    %c0_57 = arith.constant 0 : index
    %119 = vector.load %arg17[%c0_56, %c0_57] : memref<32x16xf32, #tpu.memory_space<vmem>>, vector<32x16xf32>
    %cst_58 = arith.constant dense<0.000000e+00> : vector<8x16xf32>
    %120 = tpu.matmul %90, %119, %cst_58 {dimension_numbers = #tpu.dot_dimension_numbers<[1], [0], [0], [1], [0, 0, 1, 1], [], []>} : vector<8x32xf32>, vector<32x16xf32>, vector<8x16xf32> -> vector<8x16xf32>
    %c0_59 = arith.constant 0 : index
    %c0_60 = arith.constant 0 : index
    %121 = vector.load %arg19[%c0_59, %c0_60] : memref<32x16xf32, #tpu.memory_space<vmem>>, vector<32x16xf32>
    %cst_61 = arith.constant dense<0.000000e+00> : vector<8x16xf32>
    %122 = tpu.matmul %90, %121, %cst_61 {dimension_numbers = #tpu.dot_dimension_numbers<[1], [0], [0], [1], [0, 0, 1, 1], [], []>} : vector<8x32xf32>, vector<32x16xf32>, vector<8x16xf32> -> vector<8x16xf32>
    %c0_62 = arith.constant 0 : index
    %c0_63 = arith.constant 0 : index
    %123 = vector.load %arg18[%c0_62, %c0_63] : memref<1x16xf32, #tpu.memory_space<vmem>>, vector<1x16xf32>
    %124 = vector.broadcast %123 : vector<1x16xf32> to vector<8x16xf32>
    %125 = arith.addf %120, %124 : vector<8x16xf32>
    %cst_64 = arith.constant 0.000000e+00 : f32
    %126 = vector.broadcast %cst_64 : f32 to vector<8x16xf32>
    %127 = arith.maximumf %125, %126 : vector<8x16xf32>
    %128 = math.absf %125 : vector<8x16xf32>
    %cst_65 = arith.constant 0.000000e+00 : f32
    %129 = vector.broadcast %cst_65 : f32 to vector<8x16xf32>
    %130 = arith.subf %129, %128 : vector<8x16xf32>
    %131 = math.exp %130 : vector<8x16xf32>
    %cst_66 = arith.constant 1.000000e+00 : f32
    %132 = vector.broadcast %cst_66 : f32 to vector<8x16xf32>
    %133 = arith.addf %132, %131 : vector<8x16xf32>
    %cst_67 = arith.constant 1.000000e+00 : f32
    %134 = vector.broadcast %cst_67 : f32 to vector<8x16xf32>
    %135 = arith.subf %133, %134 : vector<8x16xf32>
    %cst_68 = arith.constant 0.000000e+00 : f32
    %136 = vector.broadcast %cst_68 : f32 to vector<8x16xf32>
    %137 = arith.cmpf oeq, %135, %136 : vector<8x16xf32>
    %138 = math.log %133 : vector<8x16xf32>
    %139 = arith.divf %131, %135 : vector<8x16xf32>
    %140 = arith.mulf %138, %139 : vector<8x16xf32>
    %141 = arith.select %137, %131, %140 : vector<8x16xi1>, vector<8x16xf32>
    %142 = arith.addf %127, %141 : vector<8x16xf32>
    %cst_69 = arith.constant 1.000000e-01 : f32
    %cst_70 = arith.constant 1.000000e+02 : f32
    %143 = vector.broadcast %cst_69 : f32 to vector<8x16xf32>
    %144 = arith.maximumf %143, %142 : vector<8x16xf32>
    %145 = vector.broadcast %cst_70 : f32 to vector<8x16xf32>
    %146 = arith.minimumf %145, %144 : vector<8x16xf32>
    %c0_71 = arith.constant 0 : index
    %c0_72 = arith.constant 0 : index
    %147 = vector.load %arg20[%c0_71, %c0_72] : memref<1x16xf32, #tpu.memory_space<vmem>>, vector<1x16xf32>
    %148 = vector.broadcast %147 : vector<1x16xf32> to vector<8x16xf32>
    %149 = arith.addf %122, %148 : vector<8x16xf32>
    %cst_73 = arith.constant 0.000000e+00 : f32
    %150 = vector.broadcast %cst_73 : f32 to vector<8x16xf32>
    %151 = arith.maximumf %149, %150 : vector<8x16xf32>
    %152 = math.absf %149 : vector<8x16xf32>
    %cst_74 = arith.constant 0.000000e+00 : f32
    %153 = vector.broadcast %cst_74 : f32 to vector<8x16xf32>
    %154 = arith.subf %153, %152 : vector<8x16xf32>
    %155 = math.exp %154 : vector<8x16xf32>
    %cst_75 = arith.constant 1.000000e+00 : f32
    %156 = vector.broadcast %cst_75 : f32 to vector<8x16xf32>
    %157 = arith.addf %156, %155 : vector<8x16xf32>
    %cst_76 = arith.constant 1.000000e+00 : f32
    %158 = vector.broadcast %cst_76 : f32 to vector<8x16xf32>
    %159 = arith.subf %157, %158 : vector<8x16xf32>
    %cst_77 = arith.constant 0.000000e+00 : f32
    %160 = vector.broadcast %cst_77 : f32 to vector<8x16xf32>
    %161 = arith.cmpf oeq, %159, %160 : vector<8x16xf32>
    %162 = math.log %157 : vector<8x16xf32>
    %163 = arith.divf %155, %159 : vector<8x16xf32>
    %164 = arith.mulf %162, %163 : vector<8x16xf32>
    %165 = arith.select %161, %155, %164 : vector<8x16xi1>, vector<8x16xf32>
    %166 = arith.addf %151, %165 : vector<8x16xf32>
    %cst_78 = arith.constant 1.000000e-30 : f32
    %167 = vector.broadcast %cst_78 : f32 to vector<8x16xf32>
    %168 = arith.maximumf %166, %167 : vector<8x16xf32>
    %cst_79 = arith.constant 1.000000e+00 : f32
    %169 = vector.broadcast %cst_79 : f32 to vector<8x16xf32>
    %170 = arith.divf %169, %146 : vector<8x16xf32>
    %cst_80 = arith.constant 1.000000e+00 : f32
    %171 = vector.broadcast %cst_80 : f32 to vector<8x16xf32>
    %172 = arith.addf %171, %170 : vector<8x16xf32>
    %cst_81 = arith.constant 7.000000e+00 : f32
    %173 = vector.broadcast %cst_81 : f32 to vector<8x16xf32>
    %174 = arith.addf %172, %173 : vector<8x16xf32>
    %cst_82 = arith.constant 1.000000e+00 : f32
    %175 = vector.broadcast %cst_82 : f32 to vector<8x16xf32>
    %176 = arith.addf %172, %175 : vector<8x16xf32>
    %177 = arith.mulf %172, %176 : vector<8x16xf32>
    %cst_83 = arith.constant 2.000000e+00 : f32
    %178 = vector.broadcast %cst_83 : f32 to vector<8x16xf32>
    %179 = arith.addf %172, %178 : vector<8x16xf32>
    %180 = arith.mulf %177, %179 : vector<8x16xf32>
    %cst_84 = arith.constant 3.000000e+00 : f32
    %181 = vector.broadcast %cst_84 : f32 to vector<8x16xf32>
    %182 = arith.addf %172, %181 : vector<8x16xf32>
    %183 = arith.mulf %180, %182 : vector<8x16xf32>
    %cst_85 = arith.constant 4.000000e+00 : f32
    %184 = vector.broadcast %cst_85 : f32 to vector<8x16xf32>
    %185 = arith.addf %172, %184 : vector<8x16xf32>
    %186 = arith.mulf %183, %185 : vector<8x16xf32>
    %cst_86 = arith.constant 5.000000e+00 : f32
    %187 = vector.broadcast %cst_86 : f32 to vector<8x16xf32>
    %188 = arith.addf %172, %187 : vector<8x16xf32>
    %189 = arith.mulf %186, %188 : vector<8x16xf32>
    %cst_87 = arith.constant 6.000000e+00 : f32
    %190 = vector.broadcast %cst_87 : f32 to vector<8x16xf32>
    %191 = arith.addf %172, %190 : vector<8x16xf32>
    %192 = arith.mulf %189, %191 : vector<8x16xf32>
    %cst_88 = arith.constant 1.000000e+00 : f32
    %193 = vector.broadcast %cst_88 : f32 to vector<8x16xf32>
    %194 = arith.divf %193, %174 : vector<8x16xf32>
    %195 = arith.mulf %194, %194 : vector<8x16xf32>
    %cst_89 = arith.constant 7.93650805E-4 : f32
    %196 = vector.broadcast %cst_89 : f32 to vector<8x16xf32>
    %197 = arith.mulf %195, %196 : vector<8x16xf32>
    %cst_90 = arith.constant 0.00277777785 : f32
    %198 = vector.broadcast %cst_90 : f32 to vector<8x16xf32>
    %199 = arith.subf %198, %197 : vector<8x16xf32>
    %200 = arith.mulf %195, %199 : vector<8x16xf32>
    %cst_91 = arith.constant 0.0833333358 : f32
    %201 = vector.broadcast %cst_91 : f32 to vector<8x16xf32>
    %202 = arith.subf %201, %200 : vector<8x16xf32>
    %203 = arith.mulf %194, %202 : vector<8x16xf32>
    %cst_92 = arith.constant 5.000000e-01 : f32
    %204 = vector.broadcast %cst_92 : f32 to vector<8x16xf32>
    %205 = arith.subf %174, %204 : vector<8x16xf32>
    %206 = math.log %174 : vector<8x16xf32>
    %207 = arith.mulf %205, %206 : vector<8x16xf32>
    %208 = arith.subf %207, %174 : vector<8x16xf32>
    %cst_93 = arith.constant 0.918938517 : f32
    %209 = vector.broadcast %cst_93 : f32 to vector<8x16xf32>
    %210 = arith.addf %208, %209 : vector<8x16xf32>
    %211 = arith.addf %210, %203 : vector<8x16xf32>
    %212 = math.log %192 : vector<8x16xf32>
    %213 = arith.subf %211, %212 : vector<8x16xf32>
    %cst_94 = arith.constant 0.000000e+00 : f32
    %214 = vector.broadcast %cst_94 : f32 to vector<8x16xf32>
    %215 = arith.subf %214, %213 : vector<8x16xf32>
    %216 = math.exp %215 : vector<8x16xf32>
    %217 = arith.mulf %168, %216 : vector<8x16xf32>
    %c0_95 = arith.constant 0 : index
    %c0_96 = arith.constant 0 : index
    %c0_97 = arith.constant 0 : index
    %218 = vector.load %arg22[%c0_95, %c0_96, %c0_97] : memref<50x8x16xf32, #tpu.memory_space<vmem>>, vector<50x8x16xf32>
    %219 = vector.shape_cast %170 : vector<8x16xf32> to vector<1x8x16xf32>
    %220 = vector.broadcast %219 : vector<1x8x16xf32> to vector<50x8x16xf32>
    %221 = arith.mulf %218, %220 : vector<50x8x16xf32>
    %222 = math.exp %221 : vector<50x8x16xf32>
    %cst_98 = arith.constant dense<0.000000e+00> : vector<8x16xf32>
    %223 = vector.multi_reduction <add>, %222, %cst_98 [0] : vector<50x8x16xf32> to vector<8x16xf32>
    %cst_99 = arith.constant 5.000000e+01 : f32
    %224 = vector.broadcast %cst_99 : f32 to vector<8x16xf32>
    %225 = arith.divf %223, %224 : vector<8x16xf32>
    %226 = arith.mulf %217, %225 : vector<8x16xf32>
    %cst_100 = arith.constant 1.000000e-30 : f32
    %cst_101 = arith.constant 1.000000e+03 : f32
    %227 = vector.broadcast %cst_100 : f32 to vector<8x16xf32>
    %228 = arith.maximumf %227, %226 : vector<8x16xf32>
    %229 = vector.broadcast %cst_101 : f32 to vector<8x16xf32>
    %230 = arith.minimumf %229, %228 : vector<8x16xf32>
    %cst_102 = arith.constant dense<0.000000e+00> : vector<8x32xf32>
    %231 = tpu.matmul %230, %118, %cst_102 {dimension_numbers = #tpu.dot_dimension_numbers<[1], [0], [0], [1], [0, 0, 1, 1], [], []>} : vector<8x16xf32>, vector<16x32xf32>, vector<8x32xf32> -> vector<8x32xf32>
    %c0_103 = arith.constant 0 : index
    %c0_104 = arith.constant 0 : index
    %232 = vector.load %arg25[%c0_103, %c0_104] : memref<8x16xf32, #tpu.memory_space<vmem>>, vector<8x16xf32>
    tpu.vector_store %arg25[%c0_103, %c0_104], %146 {strides = array<i32>} : memref<8x16xf32, #tpu.memory_space<vmem>>, vector<8x16xf32>,
    %c0_105 = arith.constant 0 : index
    %c0_106 = arith.constant 0 : index
    %233 = vector.load %arg27[%c0_105, %c0_106] : memref<8x16xf32, #tpu.memory_space<vmem>>, vector<8x16xf32>
    tpu.vector_store %arg27[%c0_105, %c0_106], %217 {strides = array<i32>} : memref<8x16xf32, #tpu.memory_space<vmem>>, vector<8x16xf32>,
    %c0_107 = arith.constant 0 : index
    %c0_108 = arith.constant 0 : index
    %234 = vector.load %arg29[%c0_107, %c0_108] : memref<8x16xf32, #tpu.memory_space<vmem>>, vector<8x16xf32>
    tpu.vector_store %arg29[%c0_107, %c0_108], %230 {strides = array<i32>} : memref<8x16xf32, #tpu.memory_space<vmem>>, vector<8x16xf32>,
    %c0_109 = arith.constant 0 : index
    %c0_110 = arith.constant 0 : index
    %235 = vector.load %arg30[%c0_109, %c0_110] : memref<8x32xf32, #tpu.memory_space<vmem>>, vector<8x32xf32>
    tpu.vector_store %arg30[%c0_109, %c0_110], %231 {strides = array<i32>} : memref<8x32xf32, #tpu.memory_space<vmem>>, vector<8x32xf32>,
    %c0_111 = arith.constant 0 : index
    %c0_112 = arith.constant 0 : index
    %236 = vector.load %arg13[%c0_111, %c0_112] : memref<96x32xf32, #tpu.memory_space<vmem>>, vector<64x32xf32>
    %cst_113 = arith.constant dense<0.000000e+00> : vector<8x32xf32>
    %237 = tpu.matmul %45, %236, %cst_113 {dimension_numbers = #tpu.dot_dimension_numbers<[1], [0], [0], [1], [0, 0, 1, 1], [], []>} : vector<8x64xf32>, vector<64x32xf32>, vector<8x32xf32> -> vector<8x32xf32>
    %c64 = arith.constant 64 : index
    %c0_114 = arith.constant 0 : index
    %238 = vector.load %arg13[%c64, %c0_114] : memref<96x32xf32, #tpu.memory_space<vmem>>, vector<32x32xf32>
    %cst_115 = arith.constant dense<0.000000e+00> : vector<8x32xf32>
    %239 = tpu.matmul %231, %238, %cst_115 {dimension_numbers = #tpu.dot_dimension_numbers<[1], [0], [0], [1], [0, 0, 1, 1], [], []>} : vector<8x32xf32>, vector<32x32xf32>, vector<8x32xf32> -> vector<8x32xf32>
    %240 = arith.addf %237, %239 : vector<8x32xf32>
    %c0_116 = arith.constant 0 : index
    %c0_117 = arith.constant 0 : index
    %241 = vector.load %arg15[%c0_116, %c0_117] : memref<96x32xf32, #tpu.memory_space<vmem>>, vector<64x32xf32>
    %cst_118 = arith.constant dense<0.000000e+00> : vector<8x32xf32>
    %242 = tpu.matmul %45, %241, %cst_118 {dimension_numbers = #tpu.dot_dimension_numbers<[1], [0], [0], [1], [0, 0, 1, 1], [], []>} : vector<8x64xf32>, vector<64x32xf32>, vector<8x32xf32> -> vector<8x32xf32>
    %c64_119 = arith.constant 64 : index
    %c0_120 = arith.constant 0 : index
    %243 = vector.load %arg15[%c64_119, %c0_120] : memref<96x32xf32, #tpu.memory_space<vmem>>, vector<32x32xf32>
    %cst_121 = arith.constant dense<0.000000e+00> : vector<8x32xf32>
    %244 = tpu.matmul %231, %243, %cst_121 {dimension_numbers = #tpu.dot_dimension_numbers<[1], [0], [0], [1], [0, 0, 1, 1], [], []>} : vector<8x32xf32>, vector<32x32xf32>, vector<8x32xf32> -> vector<8x32xf32>
    %245 = arith.addf %242, %244 : vector<8x32xf32>
    %c0_122 = arith.constant 0 : index
    %c0_123 = arith.constant 0 : index
    %246 = vector.load %arg14[%c0_122, %c0_123] : memref<1x32xf32, #tpu.memory_space<vmem>>, vector<1x32xf32>
    %247 = vector.broadcast %246 : vector<1x32xf32> to vector<8x32xf32>
    %248 = arith.addf %240, %247 : vector<8x32xf32>
    %cst_124 = arith.constant 0.000000e+00 : f32
    %249 = vector.broadcast %cst_124 : f32 to vector<8x32xf32>
    %250 = arith.maximumf %248, %249 : vector<8x32xf32>
    %251 = math.absf %248 : vector<8x32xf32>
    %cst_125 = arith.constant 0.000000e+00 : f32
    %252 = vector.broadcast %cst_125 : f32 to vector<8x32xf32>
    %253 = arith.subf %252, %251 : vector<8x32xf32>
    %254 = math.exp %253 : vector<8x32xf32>
    %cst_126 = arith.constant 1.000000e+00 : f32
    %255 = vector.broadcast %cst_126 : f32 to vector<8x32xf32>
    %256 = arith.addf %255, %254 : vector<8x32xf32>
    %cst_127 = arith.constant 1.000000e+00 : f32
    %257 = vector.broadcast %cst_127 : f32 to vector<8x32xf32>
    %258 = arith.subf %256, %257 : vector<8x32xf32>
    %cst_128 = arith.constant 0.000000e+00 : f32
    %259 = vector.broadcast %cst_128 : f32 to vector<8x32xf32>
    %260 = arith.cmpf oeq, %258, %259 : vector<8x32xf32>
    %261 = math.log %256 : vector<8x32xf32>
    %262 = arith.divf %254, %258 : vector<8x32xf32>
    %263 = arith.mulf %261, %262 : vector<8x32xf32>
    %264 = arith.select %260, %254, %263 : vector<8x32xi1>, vector<8x32xf32>
    %265 = arith.addf %250, %264 : vector<8x32xf32>
    %cst_129 = arith.constant 1.000000e-01 : f32
    %cst_130 = arith.constant 1.000000e+02 : f32
    %266 = vector.broadcast %cst_129 : f32 to vector<8x32xf32>
    %267 = arith.maximumf %266, %265 : vector<8x32xf32>
    %268 = vector.broadcast %cst_130 : f32 to vector<8x32xf32>
    %269 = arith.minimumf %268, %267 : vector<8x32xf32>
    %c0_131 = arith.constant 0 : index
    %c0_132 = arith.constant 0 : index
    %270 = vector.load %arg16[%c0_131, %c0_132] : memref<1x32xf32, #tpu.memory_space<vmem>>, vector<1x32xf32>
    %271 = vector.broadcast %270 : vector<1x32xf32> to vector<8x32xf32>
    %272 = arith.addf %245, %271 : vector<8x32xf32>
    %cst_133 = arith.constant 0.000000e+00 : f32
    %273 = vector.broadcast %cst_133 : f32 to vector<8x32xf32>
    %274 = arith.maximumf %272, %273 : vector<8x32xf32>
    %275 = math.absf %272 : vector<8x32xf32>
    %cst_134 = arith.constant 0.000000e+00 : f32
    %276 = vector.broadcast %cst_134 : f32 to vector<8x32xf32>
    %277 = arith.subf %276, %275 : vector<8x32xf32>
    %278 = math.exp %277 : vector<8x32xf32>
    %cst_135 = arith.constant 1.000000e+00 : f32
    %279 = vector.broadcast %cst_135 : f32 to vector<8x32xf32>
    %280 = arith.addf %279, %278 : vector<8x32xf32>
    %cst_136 = arith.constant 1.000000e+00 : f32
    %281 = vector.broadcast %cst_136 : f32 to vector<8x32xf32>
    %282 = arith.subf %280, %281 : vector<8x32xf32>
    %cst_137 = arith.constant 0.000000e+00 : f32
    %283 = vector.broadcast %cst_137 : f32 to vector<8x32xf32>
    %284 = arith.cmpf oeq, %282, %283 : vector<8x32xf32>
    %285 = math.log %280 : vector<8x32xf32>
    %286 = arith.divf %278, %282 : vector<8x32xf32>
    %287 = arith.mulf %285, %286 : vector<8x32xf32>
    %288 = arith.select %284, %278, %287 : vector<8x32xi1>, vector<8x32xf32>
    %289 = arith.addf %274, %288 : vector<8x32xf32>
    %cst_138 = arith.constant 1.000000e-30 : f32
    %290 = vector.broadcast %cst_138 : f32 to vector<8x32xf32>
    %291 = arith.maximumf %289, %290 : vector<8x32xf32>
    %cst_139 = arith.constant 1.000000e+00 : f32
    %292 = vector.broadcast %cst_139 : f32 to vector<8x32xf32>
    %293 = arith.divf %292, %269 : vector<8x32xf32>
    %cst_140 = arith.constant 1.000000e+00 : f32
    %294 = vector.broadcast %cst_140 : f32 to vector<8x32xf32>
    %295 = arith.addf %294, %293 : vector<8x32xf32>
    %cst_141 = arith.constant 7.000000e+00 : f32
    %296 = vector.broadcast %cst_141 : f32 to vector<8x32xf32>
    %297 = arith.addf %295, %296 : vector<8x32xf32>
    %cst_142 = arith.constant 1.000000e+00 : f32
    %298 = vector.broadcast %cst_142 : f32 to vector<8x32xf32>
    %299 = arith.addf %295, %298 : vector<8x32xf32>
    %300 = arith.mulf %295, %299 : vector<8x32xf32>
    %cst_143 = arith.constant 2.000000e+00 : f32
    %301 = vector.broadcast %cst_143 : f32 to vector<8x32xf32>
    %302 = arith.addf %295, %301 : vector<8x32xf32>
    %303 = arith.mulf %300, %302 : vector<8x32xf32>
    %cst_144 = arith.constant 3.000000e+00 : f32
    %304 = vector.broadcast %cst_144 : f32 to vector<8x32xf32>
    %305 = arith.addf %295, %304 : vector<8x32xf32>
    %306 = arith.mulf %303, %305 : vector<8x32xf32>
    %cst_145 = arith.constant 4.000000e+00 : f32
    %307 = vector.broadcast %cst_145 : f32 to vector<8x32xf32>
    %308 = arith.addf %295, %307 : vector<8x32xf32>
    %309 = arith.mulf %306, %308 : vector<8x32xf32>
    %cst_146 = arith.constant 5.000000e+00 : f32
    %310 = vector.broadcast %cst_146 : f32 to vector<8x32xf32>
    %311 = arith.addf %295, %310 : vector<8x32xf32>
    %312 = arith.mulf %309, %311 : vector<8x32xf32>
    %cst_147 = arith.constant 6.000000e+00 : f32
    %313 = vector.broadcast %cst_147 : f32 to vector<8x32xf32>
    %314 = arith.addf %295, %313 : vector<8x32xf32>
    %315 = arith.mulf %312, %314 : vector<8x32xf32>
    %cst_148 = arith.constant 1.000000e+00 : f32
    %316 = vector.broadcast %cst_148 : f32 to vector<8x32xf32>
    %317 = arith.divf %316, %297 : vector<8x32xf32>
    %318 = arith.mulf %317, %317 : vector<8x32xf32>
    %cst_149 = arith.constant 7.93650805E-4 : f32
    %319 = vector.broadcast %cst_149 : f32 to vector<8x32xf32>
    %320 = arith.mulf %318, %319 : vector<8x32xf32>
    %cst_150 = arith.constant 0.00277777785 : f32
    %321 = vector.broadcast %cst_150 : f32 to vector<8x32xf32>
    %322 = arith.subf %321, %320 : vector<8x32xf32>
    %323 = arith.mulf %318, %322 : vector<8x32xf32>
    %cst_151 = arith.constant 0.0833333358 : f32
    %324 = vector.broadcast %cst_151 : f32 to vector<8x32xf32>
    %325 = arith.subf %324, %323 : vector<8x32xf32>
    %326 = arith.mulf %317, %325 : vector<8x32xf32>
    %cst_152 = arith.constant 5.000000e-01 : f32
    %327 = vector.broadcast %cst_152 : f32 to vector<8x32xf32>
    %328 = arith.subf %297, %327 : vector<8x32xf32>
    %329 = math.log %297 : vector<8x32xf32>
    %330 = arith.mulf %328, %329 : vector<8x32xf32>
    %331 = arith.subf %330, %297 : vector<8x32xf32>
    %cst_153 = arith.constant 0.918938517 : f32
    %332 = vector.broadcast %cst_153 : f32 to vector<8x32xf32>
    %333 = arith.addf %331, %332 : vector<8x32xf32>
    %334 = arith.addf %333, %326 : vector<8x32xf32>
    %335 = math.log %315 : vector<8x32xf32>
    %336 = arith.subf %334, %335 : vector<8x32xf32>
    %cst_154 = arith.constant 0.000000e+00 : f32
    %337 = vector.broadcast %cst_154 : f32 to vector<8x32xf32>
    %338 = arith.subf %337, %336 : vector<8x32xf32>
    %339 = math.exp %338 : vector<8x32xf32>
    %340 = arith.mulf %291, %339 : vector<8x32xf32>
    %c0_155 = arith.constant 0 : index
    %c0_156 = arith.constant 0 : index
    %c0_157 = arith.constant 0 : index
    %341 = vector.load %arg21[%c0_155, %c0_156, %c0_157] : memref<3x8x32xf32, #tpu.memory_space<vmem>>, vector<3x8x32xf32>
    %342 = vector.shape_cast %293 : vector<8x32xf32> to vector<1x8x32xf32>
    %343 = vector.broadcast %342 : vector<1x8x32xf32> to vector<3x8x32xf32>
    %344 = arith.mulf %341, %343 : vector<3x8x32xf32>
    %345 = math.exp %344 : vector<3x8x32xf32>
    %cst_158 = arith.constant dense<0.000000e+00> : vector<8x32xf32>
    %346 = vector.multi_reduction <add>, %345, %cst_158 [0] : vector<3x8x32xf32> to vector<8x32xf32>
    %cst_159 = arith.constant 3.000000e+00 : f32
    %347 = vector.broadcast %cst_159 : f32 to vector<8x32xf32>
    %348 = arith.divf %346, %347 : vector<8x32xf32>
    %349 = arith.mulf %340, %348 : vector<8x32xf32>
    %cst_160 = arith.constant 1.000000e-30 : f32
    %cst_161 = arith.constant 1.000000e+03 : f32
    %350 = vector.broadcast %cst_160 : f32 to vector<8x32xf32>
    %351 = arith.maximumf %350, %349 : vector<8x32xf32>
    %352 = vector.broadcast %cst_161 : f32 to vector<8x32xf32>
    %353 = arith.minimumf %352, %351 : vector<8x32xf32>
    %cst_162 = arith.constant dense<0.000000e+00> : vector<8x128xf32>
    %354 = tpu.matmul %353, %104, %cst_162 {dimension_numbers = #tpu.dot_dimension_numbers<[1], [0], [0], [1], [0, 0, 1, 1], [], []>} : vector<8x32xf32>, vector<32x128xf32>, vector<8x128xf32> -> vector<8x128xf32>
    %c0_163 = arith.constant 0 : index
    %c0_164 = arith.constant 0 : index
    %355 = vector.load %arg24[%c0_163, %c0_164] : memref<8x32xf32, #tpu.memory_space<vmem>>, vector<8x32xf32>
    tpu.vector_store %arg24[%c0_163, %c0_164], %269 {strides = array<i32>} : memref<8x32xf32, #tpu.memory_space<vmem>>, vector<8x32xf32>,
    %c0_165 = arith.constant 0 : index
    %c0_166 = arith.constant 0 : index
    %356 = vector.load %arg26[%c0_165, %c0_166] : memref<8x32xf32, #tpu.memory_space<vmem>>, vector<8x32xf32>
    tpu.vector_store %arg26[%c0_165, %c0_166], %340 {strides = array<i32>} : memref<8x32xf32, #tpu.memory_space<vmem>>, vector<8x32xf32>,
    %c0_167 = arith.constant 0 : index
    %c0_168 = arith.constant 0 : index
    %357 = vector.load %arg28[%c0_167, %c0_168] : memref<8x32xf32, #tpu.memory_space<vmem>>, vector<8x32xf32>
    tpu.vector_store %arg28[%c0_167, %c0_168], %353 {strides = array<i32>} : memref<8x32xf32, #tpu.memory_space<vmem>>, vector<8x32xf32>,
    %cst_169 = arith.constant 1.000000e-30 : f32
    %358 = vector.broadcast %cst_169 : f32 to vector<8x128xf32>
    %359 = arith.maximumf %354, %358 : vector<8x128xf32>
    %360 = math.log %359 : vector<8x128xf32>
    %361 = arith.mulf %360, %0 : vector<8x128xf32>
    %362 = arith.subf %361, %354 : vector<8x128xf32>
    %cst_170 = arith.constant dense<0.000000e+00> : vector<8xf32>
    %363 = vector.multi_reduction <add>, %362, %cst_170 [1] : vector<8x128xf32> to vector<8xf32>
    %364 = vector.shape_cast %363 : vector<8xf32> to vector<8x1xf32>
    %c0_171 = arith.constant 0 : index
    %c0_172 = arith.constant 0 : index
    %365 = vector.load %arg23[%c0_171, %c0_172] : memref<8x1xf32, #tpu.memory_space<vmem>>, vector<8x1xf32>
    tpu.vector_store %arg23[%c0_171, %c0_172], %364 {strides = array<i32>} : memref<8x1xf32, #tpu.memory_space<vmem>>, vector<8x1xf32>,
    return
  }
  func.func @transform_0(%arg0: i32) -> (i32, i32) {
    %c0_i32 = arith.constant 0 : i32
    %c0_i32_0 = arith.constant 0 : i32
    return %arg0, %c0_i32 : i32, i32
  }
  func.func @transform_1(%arg0: i32) -> (i32, i32) {
    %c0_i32 = arith.constant 0 : i32
    %c0_i32_0 = arith.constant 0 : i32
    %c0_i32_1 = arith.constant 0 : i32
    return %c0_i32, %c0_i32_0 : i32, i32
  }
  func.func @transform_2(%arg0: i32) -> (i32, i32) {
    %c0_i32 = arith.constant 0 : i32
    %c0_i32_0 = arith.constant 0 : i32
    %c0_i32_1 = arith.constant 0 : i32
    return %c0_i32, %c0_i32_0 : i32, i32
  }
  func.func @transform_3(%arg0: i32) -> (i32, i32) {
    %c0_i32 = arith.constant 0 : i32
    %c0_i32_0 = arith.constant 0 : i32
    %c0_i32_1 = arith.constant 0 : i32
    return %c0_i32, %c0_i32_0 : i32, i32
  }
  func.func @transform_4(%arg0: i32) -> (i32, i32) {
    %c0_i32 = arith.constant 0 : i32
    %c0_i32_0 = arith.constant 0 : i32
    %c0_i32_1 = arith.constant 0 : i32
    return %c0_i32, %c0_i32_0 : i32, i32
  }
  func.func @transform_5(%arg0: i32) -> (i32, i32) {
    %c0_i32 = arith.constant 0 : i32
    %c0_i32_0 = arith.constant 0 : i32
    %c0_i32_1 = arith.constant 0 : i32
    return %c0_i32, %c0_i32_0 : i32, i32
  }
  func.func @transform_6(%arg0: i32) -> (i32, i32) {
    %c0_i32 = arith.constant 0 : i32
    %c0_i32_0 = arith.constant 0 : i32
    %c0_i32_1 = arith.constant 0 : i32
    return %c0_i32, %c0_i32_0 : i32, i32
  }
  func.func @transform_7(%arg0: i32) -> (i32, i32) {
    %c0_i32 = arith.constant 0 : i32
    %c0_i32_0 = arith.constant 0 : i32
    %c0_i32_1 = arith.constant 0 : i32
    return %c0_i32, %c0_i32_0 : i32, i32
  }
  func.func @transform_8(%arg0: i32) -> (i32, i32) {
    %c0_i32 = arith.constant 0 : i32
    %c0_i32_0 = arith.constant 0 : i32
    %c0_i32_1 = arith.constant 0 : i32
    return %c0_i32, %c0_i32_0 : i32, i32
  }
  func.func @transform_9(%arg0: i32) -> (i32, i32) {
    %c0_i32 = arith.constant 0 : i32
    %c0_i32_0 = arith.constant 0 : i32
    %c0_i32_1 = arith.constant 0 : i32
    return %c0_i32, %c0_i32_0 : i32, i32
  }
  func.func @transform_10(%arg0: i32) -> (i32, i32) {
    %c0_i32 = arith.constant 0 : i32
    %c0_i32_0 = arith.constant 0 : i32
    %c0_i32_1 = arith.constant 0 : i32
    return %c0_i32, %c0_i32_0 : i32, i32
  }
  func.func @transform_11(%arg0: i32) -> (i32, i32) {
    %c0_i32 = arith.constant 0 : i32
    %c0_i32_0 = arith.constant 0 : i32
    %c0_i32_1 = arith.constant 0 : i32
    return %c0_i32, %c0_i32_0 : i32, i32
  }
  func.func @transform_12(%arg0: i32) -> (i32, i32) {
    %c0_i32 = arith.constant 0 : i32
    %c0_i32_0 = arith.constant 0 : i32
    %c0_i32_1 = arith.constant 0 : i32
    return %c0_i32, %c0_i32_0 : i32, i32
  }
  func.func @transform_13(%arg0: i32) -> (i32, i32) {
    %c0_i32 = arith.constant 0 : i32
    %c0_i32_0 = arith.constant 0 : i32
    %c0_i32_1 = arith.constant 0 : i32
    return %c0_i32, %c0_i32_0 : i32, i32
  }
  func.func @transform_14(%arg0: i32) -> (i32, i32) {
    %c0_i32 = arith.constant 0 : i32
    %c0_i32_0 = arith.constant 0 : i32
    %c0_i32_1 = arith.constant 0 : i32
    return %c0_i32, %c0_i32_0 : i32, i32
  }
  func.func @transform_15(%arg0: i32) -> (i32, i32) {
    %c0_i32 = arith.constant 0 : i32
    %c0_i32_0 = arith.constant 0 : i32
    %c0_i32_1 = arith.constant 0 : i32
    return %c0_i32, %c0_i32_0 : i32, i32
  }
  func.func @transform_16(%arg0: i32) -> (i32, i32) {
    %c0_i32 = arith.constant 0 : i32
    %c0_i32_0 = arith.constant 0 : i32
    %c0_i32_1 = arith.constant 0 : i32
    return %c0_i32, %c0_i32_0 : i32, i32
  }
  func.func @transform_17(%arg0: i32) -> (i32, i32) {
    %c0_i32 = arith.constant 0 : i32
    %c0_i32_0 = arith.constant 0 : i32
    %c0_i32_1 = arith.constant 0 : i32
    return %c0_i32, %c0_i32_0 : i32, i32
  }
  func.func @transform_18(%arg0: i32) -> (i32, i32) {
    %c0_i32 = arith.constant 0 : i32
    %c0_i32_0 = arith.constant 0 : i32
    %c0_i32_1 = arith.constant 0 : i32
    return %c0_i32, %c0_i32_0 : i32, i32
  }
  func.func @transform_19(%arg0: i32) -> (i32, i32) {
    %c0_i32 = arith.constant 0 : i32
    %c0_i32_0 = arith.constant 0 : i32
    %c0_i32_1 = arith.constant 0 : i32
    return %c0_i32, %c0_i32_0 : i32, i32
  }
  func.func @transform_20(%arg0: i32) -> (i32, i32, i32) {
    %c0_i32 = arith.constant 0 : i32
    %c0_i32_0 = arith.constant 0 : i32
    %c0_i32_1 = arith.constant 0 : i32
    return %c0_i32, %arg0, %c0_i32_0 : i32, i32, i32
  }
  func.func @transform_21(%arg0: i32) -> (i32, i32, i32) {
    %c0_i32 = arith.constant 0 : i32
    %c0_i32_0 = arith.constant 0 : i32
    %c0_i32_1 = arith.constant 0 : i32
    return %c0_i32, %arg0, %c0_i32_0 : i32, i32, i32
  }
  func.func @transform_22(%arg0: i32) -> (i32, i32) {
    %c0_i32 = arith.constant 0 : i32
    %c0_i32_0 = arith.constant 0 : i32
    return %arg0, %c0_i32 : i32, i32
  }
  func.func @transform_23(%arg0: i32) -> (i32, i32) {
    %c0_i32 = arith.constant 0 : i32
    %c0_i32_0 = arith.constant 0 : i32
    return %arg0, %c0_i32 : i32, i32
  }
  func.func @transform_24(%arg0: i32) -> (i32, i32) {
    %c0_i32 = arith.constant 0 : i32
    %c0_i32_0 = arith.constant 0 : i32
    return %arg0, %c0_i32 : i32, i32
  }
  func.func @transform_25(%arg0: i32) -> (i32, i32) {
    %c0_i32 = arith.constant 0 : i32
    %c0_i32_0 = arith.constant 0 : i32
    return %arg0, %c0_i32 : i32, i32
  }
  func.func @transform_26(%arg0: i32) -> (i32, i32) {
    %c0_i32 = arith.constant 0 : i32
    %c0_i32_0 = arith.constant 0 : i32
    return %arg0, %c0_i32 : i32, i32
  }
  func.func @transform_27(%arg0: i32) -> (i32, i32) {
    %c0_i32 = arith.constant 0 : i32
    %c0_i32_0 = arith.constant 0 : i32
    return %arg0, %c0_i32 : i32, i32
  }
  func.func @transform_28(%arg0: i32) -> (i32, i32) {
    %c0_i32 = arith.constant 0 : i32
    %c0_i32_0 = arith.constant 0 : i32
    return %arg0, %c0_i32 : i32, i32
  }
  func.func @transform_29(%arg0: i32) -> (i32, i32) {
    %c0_i32 = arith.constant 0 : i32
    %c0_i32_0 = arith.constant 0 : i32
    return %arg0, %c0_i32 : i32, i32
  }
}

</mosaic_0001>

<llo_original>
// kernel: sawetm_forward.3
$region0: #{sawetm_forward.3}
  #allocation0 [shape = 'u32[]', space=smem, size = 0x4, offset = 0x4, fixed_abs, tag = 'smem constant byte address 0x4 - core index']
  #allocation1 [shape = 'u32[144,128]{1,0:T(1,128)}', space=vmem, size = 0x12000, scoped, tag = 'internal scratch']
  %s0 = inlined_call_operand.smem [shape: u32[30], index: -1, kind: input, shape index: {}]
  %s1 = sld [smem:[%s0]]
  %s2 = scalar_lea.smem %s0, 1
  %s3 = sld [smem:[%s2]]
  %s4 = scalar_lea.smem %s0, 2
  %s5 = sld [smem:[%s4]]
  %s6 = scalar_lea.smem %s0, 3
  %s7 = sld [smem:[%s6]]
  %s8 = scalar_lea.smem %s0, 4
  %s9 = sld [smem:[%s8]]
  %s10 = scalar_lea.smem %s0, 5
  %s11 = sld [smem:[%s10]]
  %s12 = scalar_lea.smem %s0, 6
  %s13 = sld [smem:[%s12]]
  %s14 = scalar_lea.smem %s0, 7
  %s15 = sld [smem:[%s14]]
  %s16 = scalar_lea.smem %s0, 8
  %s17 = sld [smem:[%s16]]
  %s18 = scalar_lea.smem %s0, 9
  %s19 = sld [smem:[%s18]]
  %s20 = scalar_lea.smem %s0, 10
  %s21 = sld [smem:[%s20]]
  %s22 = scalar_lea.smem %s0, 11
  %s23 = sld [smem:[%s22]]
  %s24 = scalar_lea.smem %s0, 12
  %s25 = sld [smem:[%s24]]
  %s26 = scalar_lea.smem %s0, 13
  %s27 = sld [smem:[%s26]]
  %s28 = scalar_lea.smem %s0, 14
  %s29 = sld [smem:[%s28]]
  %s30 = scalar_lea.smem %s0, 15
  %s31 = sld [smem:[%s30]]
  %s32 = scalar_lea.smem %s0, 16
  %s33 = sld [smem:[%s32]]
  %s34 = scalar_lea.smem %s0, 17
  %s35 = sld [smem:[%s34]]
  %s36 = scalar_lea.smem %s0, 18
  %s37 = sld [smem:[%s36]]
  %s38 = scalar_lea.smem %s0, 19
  %s39 = sld [smem:[%s38]]
  %s40 = scalar_lea.smem %s0, 20
  %s41 = sld [smem:[%s40]]
  %s42 = scalar_lea.smem %s0, 21
  %s43 = sld [smem:[%s42]]
  %s44 = scalar_lea.smem %s0, 22
  %s45 = sld [smem:[%s44]]
  %s46 = scalar_lea.smem %s0, 23
  %s47 = sld [smem:[%s46]]
  %s48 = scalar_lea.smem %s0, 24
  %s49 = sld [smem:[%s48]]
  %s50 = scalar_lea.smem %s0, 25
  %s51 = sld [smem:[%s50]]
  %s52 = scalar_lea.smem %s0, 26
  %s53 = sld [smem:[%s52]]
  %s54 = scalar_lea.smem %s0, 27
  %s55 = sld [smem:[%s54]]
  %s56 = scalar_lea.smem %s0, 28
  %s57 = sld [smem:[%s56]]
  %s58 = scalar_lea.smem %s0, 29
  %s59 = sld [smem:[%s58]]
  %60 = xla_tuple %s45, %s47, %s49, %s51, %s53, %s55, %s57, %s59
  %s61 = sld [smem:[#allocation0]]
  $region253: #{sawetm_forward.3} parent=0
    _
  %s63 = ssub.s32 1, %s61
  %s64 = scalar_select 0, %s63, %s61
  $region1: #{sawetm_forward.3} parent=0
    #allocation2 [shape = 'u8[24576]{0}', space=vmem, size = 0x6000, scoped, tag = 'input window, operand 20']
    #allocation3 [shape = 'u8[409600]{0}', space=vmem, size = 0x64000, scoped, tag = 'input window, operand 21']
    #allocation4 [shape = 'u8[8192]{0}', space=vmem, size = 0x2000, scoped, tag = 'output window, operand 5']
    #allocation5 [shape = 's32[2]{0}', space=sflag, size = 0x8, scoped, tag = 'scoped memory for sawetm_forward.3']
    #allocation6 [shape = 'u8[8192]{0}', space=vmem, size = 0x2000, scoped, tag = 'output window, operand 6']
    #allocation7 [shape = 's32[2]{0}', space=sflag, size = 0x8, scoped, tag = 'scoped memory for sawetm_forward.3']
    %65 = vsyncpa [#allocation5], 0
    %s66 = scalar_lea.sflag [#allocation5], 1
    %67 = vsyncpa %s66, 0
    %68 = vsyncpa [#allocation7], 0
    %s69 = scalar_lea.sflag [#allocation7], 1
    %70 = vsyncpa %s69, 0
    loop: start=0, step=1, limit=4
    $region2: #{sawetm_forward.3} parent=1 // loop_pre_header
      _
    $region3: #{sawetm_forward.3} parent=1 // loop_header
      %s72 = sphi 0, %s76
      %p73 = scmp.ge.s32.totalorder %s72, 4
      %s82 = sphi 0, %s84
      %s85 = sphi 0, %s82
      %s86 = sphi 0, %s85
      %s102 = sphi 0, %s86
      %s106 = sphi 0, %s106
      %s108 = sphi 0, %s106
      %s109 = sphi 0, %s108
      %s123 = sphi 0, %s109
      %s127 = sphi 0, %s127
      %s129 = sphi 0, %s127
      %s130 = sphi 0, %s129
      %s144 = sphi 0, %s130
      %s148 = sphi 0, %s148
      %s150 = sphi 0, %s148
      %s151 = sphi 0, %s150
      %s165 = sphi 0, %s151
      %s169 = sphi 0, %s169
      %s171 = sphi 0, %s169
      %s172 = sphi 0, %s171
      %s186 = sphi 0, %s172
      %s190 = sphi 0, %s190
      %s192 = sphi 0, %s190
      %s193 = sphi 0, %s192
      %s207 = sphi 0, %s193
      %s211 = sphi 0, %s211
      %s213 = sphi 0, %s211
      %s214 = sphi 0, %s213
      %s228 = sphi 0, %s214
      %s232 = sphi 0, %s232
      %s234 = sphi 0, %s232
      %s235 = sphi 0, %s234
      %s249 = sphi 0, %s235
      %s253 = sphi 0, %s253
      %s255 = sphi 0, %s253
      %s256 = sphi 0, %s255
      %s270 = sphi 0, %s256
      %s274 = sphi 0, %s274
      %s276 = sphi 0, %s274
      %s277 = sphi 0, %s276
      %s291 = sphi 0, %s277
      %s295 = sphi 0, %s295
      %s297 = sphi 0, %s295
      %s298 = sphi 0, %s297
      %s312 = sphi 0, %s298
      %s316 = sphi 0, %s316
      %s318 = sphi 0, %s316
      %s319 = sphi 0, %s318
      %s333 = sphi 0, %s319
      %s337 = sphi 0, %s337
      %s339 = sphi 0, %s337
      %s340 = sphi 0, %s339
      %s354 = sphi 0, %s340
      %s358 = sphi 0, %s358
      %s360 = sphi 0, %s358
      %s361 = sphi 0, %s360
      %s375 = sphi 0, %s361
      %s379 = sphi 0, %s379
      %s381 = sphi 0, %s379
      %s382 = sphi 0, %s381
      %s396 = sphi 0, %s382
      %s400 = sphi 0, %s400
      %s402 = sphi 0, %s400
      %s403 = sphi 0, %s402
      %s417 = sphi 0, %s403
      %s421 = sphi 0, %s421
      %s423 = sphi 0, %s421
      %s424 = sphi 0, %s423
      %s438 = sphi 0, %s424
      %s442 = sphi 0, %s442
      %s444 = sphi 0, %s442
      %s445 = sphi 0, %s444
      %s459 = sphi 0, %s445
      %s463 = sphi 0, %s463
      %s465 = sphi 0, %s463
      %s466 = sphi 0, %s465
      %s480 = sphi 0, %s466
      %s484 = sphi 0, %s484
      %s486 = sphi 0, %s484
      %s487 = sphi 0, %s486
      %s501 = sphi 0, %s487
      %s507 = sphi 0, %s509
      %s510 = sphi 0, %s507
      %s511 = sphi 0, %s510
      %s527 = sphi 0, %s511
      %s533 = sphi 0, %s535
      %s536 = sphi 0, %s533
      %s537 = sphi 0, %s536
      %s553 = sphi 0, %s537
      %s559 = sphi 0, %s561
      %s562 = sphi 0, %s559
      %s563 = sphi 0, %s562
      %s579 = sphi 0, %s563
      %s585 = sphi 0, %s587
      %s588 = sphi 0, %s585
      %s589 = sphi 0, %s588
      %s605 = sphi 0, %s589
      %s611 = sphi 0, %s613
      %s614 = sphi 0, %s611
      %s615 = sphi 0, %s614
      %s631 = sphi 0, %s615
      %s637 = sphi 0, %s639
      %s640 = sphi 0, %s637
      %s641 = sphi 0, %s640
      %s657 = sphi 0, %s641
      %s663 = sphi 0, %s665
      %s666 = sphi 0, %s663
      %s667 = sphi 0, %s666
      %s683 = sphi 0, %s667
      %s689 = sphi 0, %s691
      %s692 = sphi 0, %s689
      %s693 = sphi 0, %s692
      %s709 = sphi 0, %s693
      %s715 = sphi 0, %s717
      %s718 = sphi 0, %s715
      %s719 = sphi 0, %s718
      %s735 = sphi 0, %s719
      %s741 = sphi 0, %s743
      %s744 = sphi 0, %s741
      %s745 = sphi 0, %s744
      %s761 = sphi 0, %s745
    $region4: #{sawetm_forward.3} parent=1 // loop_header_branch
      %75 = sbr.rel (%p73) target = $region8
    $region5: #{sawetm_forward.3} parent=1 // loop_body
      %s77 = ssub.s32 %s72, 1
      %s78 = ssub.s32 %s72, 2
      %s79 = sadd.s32 %s72, 1
      %s80 = ssub.s32 %s72, %s79
      %p81 = scmp.eq.s32.totalorder %s80, 0
      %s83 = sadd.s32 %s82, 1
      %s84 = scalar_select %p81, %s82, %s83
      %p87 = pneg %p81
      %p88 = scmp.eq.s32.totalorder %s72, 1
      %p89 = por %p87, %p88
      %p90 = scmp.ne.s32.totalorder %s82, %s85
      %p91 = scmp.eq.s32.totalorder %s72, 0
      %p92 = por %p90, %p91
      %p93 = scmp.ne.s32.totalorder %s82, %s85
      %p94 = scmp.eq.s32.totalorder %s77, 1
      %p95 = por %p93, %p94
      %p96 = scmp.ne.s32.totalorder %s85, %s86
      %p97 = scmp.eq.s32.totalorder %s77, 0
      %p98 = por %p96, %p97
      %p99 = scmp.ne.s32.totalorder %s85, %s86
      %p100 = scmp.eq.s32.totalorder %s78, 1
      %p101 = por %p99, %p100
      %p103 = scmp.ne.s32.totalorder %s86, %s102
      %p104 = scmp.eq.s32.totalorder %s78, 0
      %p105 = por %p103, %p104
      %s107 = sadd.s32 %s106, 1
      %p110 = scmp.eq.s32.totalorder %s72, 1
      %p111 = scmp.ne.s32.totalorder %s106, %s108
      %p112 = scmp.eq.s32.totalorder %s72, 0
      %p113 = por %p111, %p112
      %p114 = scmp.ne.s32.totalorder %s106, %s108
      %p115 = scmp.eq.s32.totalorder %s77, 1
      %p116 = por %p114, %p115
      %p117 = scmp.ne.s32.totalorder %s108, %s109
      %p118 = scmp.eq.s32.totalorder %s77, 0
      %p119 = por %p117, %p118
      %p120 = scmp.ne.s32.totalorder %s108, %s109
      %p121 = scmp.eq.s32.totalorder %s78, 1
      %p122 = por %p120, %p121
      %p124 = scmp.ne.s32.totalorder %s109, %s123
      %p125 = scmp.eq.s32.totalorder %s78, 0
      %p126 = por %p124, %p125
      %s128 = sadd.s32 %s127, 1
      %p131 = scmp.eq.s32.totalorder %s72, 1
      %p132 = scmp.ne.s32.totalorder %s127, %s129
      %p133 = scmp.eq.s32.totalorder %s72, 0
      %p134 = por %p132, %p133
      %p135 = scmp.ne.s32.totalorder %s127, %s129
      %p136 = scmp.eq.s32.totalorder %s77, 1
      %p137 = por %p135, %p136
      %p138 = scmp.ne.s32.totalorder %s129, %s130
      %p139 = scmp.eq.s32.totalorder %s77, 0
      %p140 = por %p138, %p139
      %p141 = scmp.ne.s32.totalorder %s129, %s130
      %p142 = scmp.eq.s32.totalorder %s78, 1
      %p143 = por %p141, %p142
      %p145 = scmp.ne.s32.totalorder %s130, %s144
      %p146 = scmp.eq.s32.totalorder %s78, 0
      %p147 = por %p145, %p146
      %s149 = sadd.s32 %s148, 1
      %p152 = scmp.eq.s32.totalorder %s72, 1
      %p153 = scmp.ne.s32.totalorder %s148, %s150
      %p154 = scmp.eq.s32.totalorder %s72, 0
      %p155 = por %p153, %p154
      %p156 = scmp.ne.s32.totalorder %s148, %s150
      %p157 = scmp.eq.s32.totalorder %s77, 1
      %p158 = por %p156, %p157
      %p159 = scmp.ne.s32.totalorder %s150, %s151
      %p160 = scmp.eq.s32.totalorder %s77, 0
      %p161 = por %p159, %p160
      %p162 = scmp.ne.s32.totalorder %s150, %s151
      %p163 = scmp.eq.s32.totalorder %s78, 1
      %p164 = por %p162, %p163
      %p166 = scmp.ne.s32.totalorder %s151, %s165
      %p167 = scmp.eq.s32.totalorder %s78, 0
      %p168 = por %p166, %p167
      %s170 = sadd.s32 %s169, 1
      %p173 = scmp.eq.s32.totalorder %s72, 1
      %p174 = scmp.ne.s32.totalorder %s169, %s171
      %p175 = scmp.eq.s32.totalorder %s72, 0
      %p176 = por %p174, %p175
      %p177 = scmp.ne.s32.totalorder %s169, %s171
      %p178 = scmp.eq.s32.totalorder %s77, 1
      %p179 = por %p177, %p178
      %p180 = scmp.ne.s32.totalorder %s171, %s172
      %p181 = scmp.eq.s32.totalorder %s77, 0
      %p182 = por %p180, %p181
      %p183 = scmp.ne.s32.totalorder %s171, %s172
      %p184 = scmp.eq.s32.totalorder %s78, 1
      %p185 = por %p183, %p184
      %p187 = scmp.ne.s32.totalorder %s172, %s186
      %p188 = scmp.eq.s32.totalorder %s78, 0
      %p189 = por %p187, %p188
      %s191 = sadd.s32 %s190, 1
      %p194 = scmp.eq.s32.totalorder %s72, 1
      %p195 = scmp.ne.s32.totalorder %s190, %s192
      %p196 = scmp.eq.s32.totalorder %s72, 0
      %p197 = por %p195, %p196
      %p198 = scmp.ne.s32.totalorder %s190, %s192
      %p199 = scmp.eq.s32.totalorder %s77, 1
      %p200 = por %p198, %p199
      %p201 = scmp.ne.s32.totalorder %s192, %s193
      %p202 = scmp.eq.s32.totalorder %s77, 0
      %p203 = por %p201, %p202
      %p204 = scmp.ne.s32.totalorder %s192, %s193
      %p205 = scmp.eq.s32.totalorder %s78, 1
      %p206 = por %p204, %p205
      %p208 = scmp.ne.s32.totalorder %s193, %s207
      %p209 = scmp.eq.s32.totalorder %s78, 0
      %p210 = por %p208, %p209
      %s212 = sadd.s32 %s211, 1
      %p215 = scmp.eq.s32.totalorder %s72, 1
      %p216 = scmp.ne.s32.totalorder %s211, %s213
      %p217 = scmp.eq.s32.totalorder %s72, 0
      %p218 = por %p216, %p217
      %p219 = scmp.ne.s32.totalorder %s211, %s213
      %p220 = scmp.eq.s32.totalorder %s77, 1
      %p221 = por %p219, %p220
      %p222 = scmp.ne.s32.totalorder %s213, %s214
      %p223 = scmp.eq.s32.totalorder %s77, 0
      %p224 = por %p222, %p223
      %p225 = scmp.ne.s32.totalorder %s213, %s214
      %p226 = scmp.eq.s32.totalorder %s78, 1
      %p227 = por %p225, %p226
      %p229 = scmp.ne.s32.totalorder %s214, %s228
      %p230 = scmp.eq.s32.totalorder %s78, 0
      %p231 = por %p229, %p230
      %s233 = sadd.s32 %s232, 1
      %p236 = scmp.eq.s32.totalorder %s72, 1
      %p237 = scmp.ne.s32.totalorder %s232, %s234
      %p238 = scmp.eq.s32.totalorder %s72, 0
      %p239 = por %p237, %p238
      %p240 = scmp.ne.s32.totalorder %s232, %s234
      %p241 = scmp.eq.s32.totalorder %s77, 1
      %p242 = por %p240, %p241
      %p243 = scmp.ne.s32.totalorder %s234, %s235
      %p244 = scmp.eq.s32.totalorder %s77, 0
      %p245 = por %p243, %p244
      %p246 = scmp.ne.s32.totalorder %s234, %s235
      %p247 = scmp.eq.s32.totalorder %s78, 1
      %p248 = por %p246, %p247
      %p250 = scmp.ne.s32.totalorder %s235, %s249
      %p251 = scmp.eq.s32.totalorder %s78, 0
      %p252 = por %p250, %p251
      %s254 = sadd.s32 %s253, 1
      %p257 = scmp.eq.s32.totalorder %s72, 1
      %p258 = scmp.ne.s32.totalorder %s253, %s255
      %p259 = scmp.eq.s32.totalorder %s72, 0
      %p260 = por %p258, %p259
      %p261 = scmp.ne.s32.totalorder %s253, %s255
      %p262 = scmp.eq.s32.totalorder %s77, 1
      %p263 = por %p261, %p262
      %p264 = scmp.ne.s32.totalorder %s255, %s256
      %p265 = scmp.eq.s32.totalorder %s77, 0
      %p266 = por %p264, %p265
      %p267 = scmp.ne.s32.totalorder %s255, %s256
      %p268 = scmp.eq.s32.totalorder %s78, 1
      %p269 = por %p267, %p268
      %p271 = scmp.ne.s32.totalorder %s256, %s270
      %p272 = scmp.eq.s32.totalorder %s78, 0
      %p273 = por %p271, %p272
      %s275 = sadd.s32 %s274, 1
      %p278 = scmp.eq.s32.totalorder %s72, 1
      %p279 = scmp.ne.s32.totalorder %s274, %s276
      %p280 = scmp.eq.s32.totalorder %s72, 0
      %p281 = por %p279, %p280
      %p282 = scmp.ne.s32.totalorder %s274, %s276
      %p283 = scmp.eq.s32.totalorder %s77, 1
      %p284 = por %p282, %p283
      %p285 = scmp.ne.s32.totalorder %s276, %s277
      %p286 = scmp.eq.s32.totalorder %s77, 0
      %p287 = por %p285, %p286
      %p288 = scmp.ne.s32.totalorder %s276, %s277
      %p289 = scmp.eq.s32.totalorder %s78, 1
      %p290 = por %p288, %p289
      %p292 = scmp.ne.s32.totalorder %s277, %s291
      %p293 = scmp.eq.s32.totalorder %s78, 0
      %p294 = por %p292, %p293
      %s296 = sadd.s32 %s295, 1
      %p299 = scmp.eq.s32.totalorder %s72, 1
      %p300 = scmp.ne.s32.totalorder %s295, %s297
      %p301 = scmp.eq.s32.totalorder %s72, 0
      %p302 = por %p300, %p301
      %p303 = scmp.ne.s32.totalorder %s295, %s297
      %p304 = scmp.eq.s32.totalorder %s77, 1
      %p305 = por %p303, %p304
      %p306 = scmp.ne.s32.totalorder %s297, %s298
      %p307 = scmp.eq.s32.totalorder %s77, 0
      %p308 = por %p306, %p307
      %p309 = scmp.ne.s32.totalorder %s297, %s298
      %p310 = scmp.eq.s32.totalorder %s78, 1
      %p311 = por %p309, %p310
      %p313 = scmp.ne.s32.totalorder %s298, %s312
      %p314 = scmp.eq.s32.totalorder %s78, 0
      %p315 = por %p313, %p314
      %s317 = sadd.s32 %s316, 1
      %p320 = scmp.eq.s32.totalorder %s72, 1
      %p321 = scmp.ne.s32.totalorder %s316, %s318
      %p322 = scmp.eq.s32.totalorder %s72, 0
      %p323 = por %p321, %p322
      %p324 = scmp.ne.s32.totalorder %s316, %s318
      %p325 = scmp.eq.s32.totalorder %s77, 1
      %p326 = por %p324, %p325
      %p327 = scmp.ne.s32.totalorder %s318, %s319
      %p328 = scmp.eq.s32.totalorder %s77, 0
      %p329 = por %p327, %p328
      %p330 = scmp.ne.s32.totalorder %s318, %s319
      %p331 = scmp.eq.s32.totalorder %s78, 1
      %p332 = por %p330, %p331
      %p334 = scmp.ne.s32.totalorder %s319, %s333
      %p335 = scmp.eq.s32.totalorder %s78, 0
      %p336 = por %p334, %p335
      %s338 = sadd.s32 %s337, 1
      %p341 = scmp.eq.s32.totalorder %s72, 1
      %p342 = scmp.ne.s32.totalorder %s337, %s339
      %p343 = scmp.eq.s32.totalorder %s72, 0
      %p344 = por %p342, %p343
      %p345 = scmp.ne.s32.totalorder %s337, %s339
      %p346 = scmp.eq.s32.totalorder %s77, 1
      %p347 = por %p345, %p346
      %p348 = scmp.ne.s32.totalorder %s339, %s340
      %p349 = scmp.eq.s32.totalorder %s77, 0
      %p350 = por %p348, %p349
      %p351 = scmp.ne.s32.totalorder %s339, %s340
      %p352 = scmp.eq.s32.totalorder %s78, 1
      %p353 = por %p351, %p352
      %p355 = scmp.ne.s32.totalorder %s340, %s354
      %p356 = scmp.eq.s32.totalorder %s78, 0
      %p357 = por %p355, %p356
      %s359 = sadd.s32 %s358, 1
      %p362 = scmp.eq.s32.totalorder %s72, 1
      %p363 = scmp.ne.s32.totalorder %s358, %s360
      %p364 = scmp.eq.s32.totalorder %s72, 0
      %p365 = por %p363, %p364
      %p366 = scmp.ne.s32.totalorder %s358, %s360
      %p367 = scmp.eq.s32.totalorder %s77, 1
      %p368 = por %p366, %p367
      %p369 = scmp.ne.s32.totalorder %s360, %s361
      %p370 = scmp.eq.s32.totalorder %s77, 0
      %p371 = por %p369, %p370
      %p372 = scmp.ne.s32.totalorder %s360, %s361
      %p373 = scmp.eq.s32.totalorder %s78, 1
      %p374 = por %p372, %p373
      %p376 = scmp.ne.s32.totalorder %s361, %s375
      %p377 = scmp.eq.s32.totalorder %s78, 0
      %p378 = por %p376, %p377
      %s380 = sadd.s32 %s379, 1
      %p383 = scmp.eq.s32.totalorder %s72, 1
      %p384 = scmp.ne.s32.totalorder %s379, %s381
      %p385 = scmp.eq.s32.totalorder %s72, 0
      %p386 = por %p384, %p385
      %p387 = scmp.ne.s32.totalorder %s379, %s381
      %p388 = scmp.eq.s32.totalorder %s77, 1
      %p389 = por %p387, %p388
      %p390 = scmp.ne.s32.totalorder %s381, %s382
      %p391 = scmp.eq.s32.totalorder %s77, 0
      %p392 = por %p390, %p391
      %p393 = scmp.ne.s32.totalorder %s381, %s382
      %p394 = scmp.eq.s32.totalorder %s78, 1
      %p395 = por %p393, %p394
      %p397 = scmp.ne.s32.totalorder %s382, %s396
      %p398 = scmp.eq.s32.totalorder %s78, 0
      %p399 = por %p397, %p398
      %s401 = sadd.s32 %s400, 1
      %p404 = scmp.eq.s32.totalorder %s72, 1
      %p405 = scmp.ne.s32.totalorder %s400, %s402
      %p406 = scmp.eq.s32.totalorder %s72, 0
      %p407 = por %p405, %p406
      %p408 = scmp.ne.s32.totalorder %s400, %s402
      %p409 = scmp.eq.s32.totalorder %s77, 1
      %p410 = por %p408, %p409
      %p411 = scmp.ne.s32.totalorder %s402, %s403
      %p412 = scmp.eq.s32.totalorder %s77, 0
      %p413 = por %p411, %p412
      %p414 = scmp.ne.s32.totalorder %s402, %s403
      %p415 = scmp.eq.s32.totalorder %s78, 1
      %p416 = por %p414, %p415
      %p418 = scmp.ne.s32.totalorder %s403, %s417
      %p419 = scmp.eq.s32.totalorder %s78, 0
      %p420 = por %p418, %p419
      %s422 = sadd.s32 %s421, 1
      %p425 = scmp.eq.s32.totalorder %s72, 1
      %p426 = scmp.ne.s32.totalorder %s421, %s423
      %p427 = scmp.eq.s32.totalorder %s72, 0
      %p428 = por %p426, %p427
      %p429 = scmp.ne.s32.totalorder %s421, %s423
      %p430 = scmp.eq.s32.totalorder %s77, 1
      %p431 = por %p429, %p430
      %p432 = scmp.ne.s32.totalorder %s423, %s424
      %p433 = scmp.eq.s32.totalorder %s77, 0
      %p434 = por %p432, %p433
      %p435 = scmp.ne.s32.totalorder %s423, %s424
      %p436 = scmp.eq.s32.totalorder %s78, 1
      %p437 = por %p435, %p436
      %p439 = scmp.ne.s32.totalorder %s424, %s438
      %p440 = scmp.eq.s32.totalorder %s78, 0
      %p441 = por %p439, %p440
      %s443 = sadd.s32 %s442, 1
      %p446 = scmp.eq.s32.totalorder %s72, 1
      %p447 = scmp.ne.s32.totalorder %s442, %s444
      %p448 = scmp.eq.s32.totalorder %s72, 0
      %p449 = por %p447, %p448
      %p450 = scmp.ne.s32.totalorder %s442, %s444
      %p451 = scmp.eq.s32.totalorder %s77, 1
      %p452 = por %p450, %p451
      %p453 = scmp.ne.s32.totalorder %s444, %s445
      %p454 = scmp.eq.s32.totalorder %s77, 0
      %p455 = por %p453, %p454
      %p456 = scmp.ne.s32.totalorder %s444, %s445
      %p457 = scmp.eq.s32.totalorder %s78, 1
      %p458 = por %p456, %p457
      %p460 = scmp.ne.s32.totalorder %s445, %s459
      %p461 = scmp.eq.s32.totalorder %s78, 0
      %p462 = por %p460, %p461
      %s464 = sadd.s32 %s463, 1
      %p467 = scmp.eq.s32.totalorder %s72, 1
      %p468 = scmp.ne.s32.totalorder %s463, %s465
      %p469 = scmp.eq.s32.totalorder %s72, 0
      %p470 = por %p468, %p469
      %p471 = scmp.ne.s32.totalorder %s463, %s465
      %p472 = scmp.eq.s32.totalorder %s77, 1
      %p473 = por %p471, %p472
      %p474 = scmp.ne.s32.totalorder %s465, %s466
      %p475 = scmp.eq.s32.totalorder %s77, 0
      %p476 = por %p474, %p475
      %p477 = scmp.ne.s32.totalorder %s465, %s466
      %p478 = scmp.eq.s32.totalorder %s78, 1
      %p479 = por %p477, %p478
      %p481 = scmp.ne.s32.totalorder %s466, %s480
      %p482 = scmp.eq.s32.totalorder %s78, 0
      %p483 = por %p481, %p482
      %s485 = sadd.s32 %s484, 1
      %p488 = scmp.eq.s32.totalorder %s72, 1
      %p489 = scmp.ne.s32.totalorder %s484, %s486
      %p490 = scmp.eq.s32.totalorder %s72, 0
      %p491 = por %p489, %p490
      %p492 = scmp.ne.s32.totalorder %s484, %s486
      %p493 = scmp.eq.s32.totalorder %s77, 1
      %p494 = por %p492, %p493
      %p495 = scmp.ne.s32.totalorder %s486, %s487
      %p496 = scmp.eq.s32.totalorder %s77, 0
      %p497 = por %p495, %p496
      %p498 = scmp.ne.s32.totalorder %s486, %s487
      %p499 = scmp.eq.s32.totalorder %s78, 1
      %p500 = por %p498, %p499
      %p502 = scmp.ne.s32.totalorder %s487, %s501
      %p503 = scmp.eq.s32.totalorder %s78, 0
      %p504 = por %p502, %p503
      %s505 = ssub.s32 %s72, %s79
      %p506 = scmp.eq.s32.totalorder %s505, 0
      %s508 = sadd.s32 %s507, 1
      %s509 = scalar_select %p506, %s507, %s508
      %p512 = pneg %p506
      %p513 = scmp.eq.s32.totalorder %s72, 1
      %p514 = por %p512, %p513
      %p515 = scmp.ne.s32.totalorder %s507, %s510
      %p516 = scmp.eq.s32.totalorder %s72, 0
      %p517 = por %p515, %p516
      %p518 = scmp.ne.s32.totalorder %s507, %s510
      %p519 = scmp.eq.s32.totalorder %s77, 1
      %p520 = por %p518, %p519
      %p521 = scmp.ne.s32.totalorder %s510, %s511
      %p522 = scmp.eq.s32.totalorder %s77, 0
      %p523 = por %p521, %p522
      %p524 = scmp.ne.s32.totalorder %s510, %s511
      %p525 = scmp.eq.s32.totalorder %s78, 1
      %p526 = por %p524, %p525
      %p528 = scmp.ne.s32.totalorder %s511, %s527
      %p529 = scmp.eq.s32.totalorder %s78, 0
      %p530 = por %p528, %p529
      %s531 = ssub.s32 %s72, %s79
      %p532 = scmp.eq.s32.totalorder %s531, 0
      %s534 = sadd.s32 %s533, 1
      %s535 = scalar_select %p532, %s533, %s534
      %p538 = pneg %p532
      %p539 = scmp.eq.s32.totalorder %s72, 1
      %p540 = por %p538, %p539
      %p541 = scmp.ne.s32.totalorder %s533, %s536
      %p542 = scmp.eq.s32.totalorder %s72, 0
      %p543 = por %p541, %p542
      %p544 = scmp.ne.s32.totalorder %s533, %s536
      %p545 = scmp.eq.s32.totalorder %s77, 1
      %p546 = por %p544, %p545
      %p547 = scmp.ne.s32.totalorder %s536, %s537
      %p548 = scmp.eq.s32.totalorder %s77, 0
      %p549 = por %p547, %p548
      %p550 = scmp.ne.s32.totalorder %s536, %s537
      %p551 = scmp.eq.s32.totalorder %s78, 1
      %p552 = por %p550, %p551
      %p554 = scmp.ne.s32.totalorder %s537, %s553
      %p555 = scmp.eq.s32.totalorder %s78, 0
      %p556 = por %p554, %p555
      %s557 = ssub.s32 %s72, %s79
      %p558 = scmp.eq.s32.totalorder %s557, 0
      %s560 = sadd.s32 %s559, 1
      %s561 = scalar_select %p558, %s559, %s560
      %p564 = pneg %p558
      %p565 = scmp.eq.s32.totalorder %s72, 1
      %p566 = por %p564, %p565
      %p567 = scmp.ne.s32.totalorder %s559, %s562
      %p568 = scmp.eq.s32.totalorder %s72, 0
      %p569 = por %p567, %p568
      %p570 = scmp.ne.s32.totalorder %s559, %s562
      %p571 = scmp.eq.s32.totalorder %s77, 1
      %p572 = por %p570, %p571
      %p573 = scmp.ne.s32.totalorder %s562, %s563
      %p574 = scmp.eq.s32.totalorder %s77, 0
      %p575 = por %p573, %p574
      %p576 = scmp.ne.s32.totalorder %s562, %s563
      %p577 = scmp.eq.s32.totalorder %s78, 1
      %p578 = por %p576, %p577
      %p580 = scmp.ne.s32.totalorder %s563, %s579
      %p581 = scmp.eq.s32.totalorder %s78, 0
      %p582 = por %p580, %p581
      %s583 = ssub.s32 %s72, %s79
      %p584 = scmp.eq.s32.totalorder %s583, 0
      %s586 = sadd.s32 %s585, 1
      %s587 = scalar_select %p584, %s585, %s586
      %p590 = pneg %p584
      %p591 = scmp.eq.s32.totalorder %s72, 1
      %p592 = por %p590, %p591
      %p593 = scmp.ne.s32.totalorder %s585, %s588
      %p594 = scmp.eq.s32.totalorder %s72, 0
      %p595 = por %p593, %p594
      %p596 = scmp.ne.s32.totalorder %s585, %s588
      %p597 = scmp.eq.s32.totalorder %s77, 1
      %p598 = por %p596, %p597
      %p599 = scmp.ne.s32.totalorder %s588, %s589
      %p600 = scmp.eq.s32.totalorder %s77, 0
      %p601 = por %p599, %p600
      %p602 = scmp.ne.s32.totalorder %s588, %s589
      %p603 = scmp.eq.s32.totalorder %s78, 1
      %p604 = por %p602, %p603
      %p606 = scmp.ne.s32.totalorder %s589, %s605
      %p607 = scmp.eq.s32.totalorder %s78, 0
      %p608 = por %p606, %p607
      %s609 = ssub.s32 %s72, %s79
      %p610 = scmp.eq.s32.totalorder %s609, 0
      %s612 = sadd.s32 %s611, 1
      %s613 = scalar_select %p610, %s611, %s612
      %p616 = pneg %p610
      %p617 = scmp.eq.s32.totalorder %s72, 1
      %p618 = por %p616, %p617
      %p619 = scmp.ne.s32.totalorder %s611, %s614
      %p620 = scmp.eq.s32.totalorder %s72, 0
      %p621 = por %p619, %p620
      %p622 = scmp.ne.s32.totalorder %s611, %s614
      %p623 = scmp.eq.s32.totalorder %s77, 1
      %p624 = por %p622, %p623
      %p625 = scmp.ne.s32.totalorder %s614, %s615
      %p626 = scmp.eq.s32.totalorder %s77, 0
      %p627 = por %p625, %p626
      %p628 = scmp.ne.s32.totalorder %s614, %s615
      %p629 = scmp.eq.s32.totalorder %s78, 1
      %p630 = por %p628, %p629
      %p632 = scmp.ne.s32.totalorder %s615, %s631
      %p633 = scmp.eq.s32.totalorder %s78, 0
      %p634 = por %p632, %p633
      %s635 = ssub.s32 %s72, %s79
      %p636 = scmp.eq.s32.totalorder %s635, 0
      %s638 = sadd.s32 %s637, 1
      %s639 = scalar_select %p636, %s637, %s638
      %p642 = pneg %p636
      %p643 = scmp.eq.s32.totalorder %s72, 1
      %p644 = por %p642, %p643
      %p645 = scmp.ne.s32.totalorder %s637, %s640
      %p646 = scmp.eq.s32.totalorder %s72, 0
      %p647 = por %p645, %p646
      %p648 = scmp.ne.s32.totalorder %s637, %s640
      %p649 = scmp.eq.s32.totalorder %s77, 1
      %p650 = por %p648, %p649
      %p651 = scmp.ne.s32.totalorder %s640, %s641
      %p652 = scmp.eq.s32.totalorder %s77, 0
      %p653 = por %p651, %p652
      %p654 = scmp.ne.s32.totalorder %s640, %s641
      %p655 = scmp.eq.s32.totalorder %s78, 1
      %p656 = por %p654, %p655
      %p658 = scmp.ne.s32.totalorder %s641, %s657
      %p659 = scmp.eq.s32.totalorder %s78, 0
      %p660 = por %p658, %p659
      %s661 = ssub.s32 %s72, %s79
      %p662 = scmp.eq.s32.totalorder %s661, 0
      %s664 = sadd.s32 %s663, 1
      %s665 = scalar_select %p662, %s663, %s664
      %p668 = pneg %p662
      %p669 = scmp.eq.s32.totalorder %s72, 1
      %p670 = por %p668, %p669
      %p671 = scmp.ne.s32.totalorder %s663, %s666
      %p672 = scmp.eq.s32.totalorder %s72, 0
      %p673 = por %p671, %p672
      %p674 = scmp.ne.s32.totalorder %s663, %s666
      %p675 = scmp.eq.s32.totalorder %s77, 1
      %p676 = por %p674, %p675
      %p677 = scmp.ne.s32.totalorder %s666, %s667
      %p678 = scmp.eq.s32.totalorder %s77, 0
      %p679 = por %p677, %p678
      %p680 = scmp.ne.s32.totalorder %s666, %s667
      %p681 = scmp.eq.s32.totalorder %s78, 1
      %p682 = por %p680, %p681
      %p684 = scmp.ne.s32.totalorder %s667, %s683
      %p685 = scmp.eq.s32.totalorder %s78, 0
      %p686 = por %p684, %p685
      %s687 = ssub.s32 %s72, %s79
      %p688 = scmp.eq.s32.totalorder %s687, 0
      %s690 = sadd.s32 %s689, 1
      %s691 = scalar_select %p688, %s689, %s690
      %p694 = pneg %p688
      %p695 = scmp.eq.s32.totalorder %s72, 1
      %p696 = por %p694, %p695
      %p697 = scmp.ne.s32.totalorder %s689, %s692
      %p698 = scmp.eq.s32.totalorder %s72, 0
      %p699 = por %p697, %p698
      %p700 = scmp.ne.s32.totalorder %s689, %s692
      %p701 = scmp.eq.s32.totalorder %s77, 1
      %p702 = por %p700, %p701
      %p703 = scmp.ne.s32.totalorder %s692, %s693
      %p704 = scmp.eq.s32.totalorder %s77, 0
      %p705 = por %p703, %p704
      %p706 = scmp.ne.s32.totalorder %s692, %s693
      %p707 = scmp.eq.s32.totalorder %s78, 1
      %p708 = por %p706, %p707
      %p710 = scmp.ne.s32.totalorder %s693, %s709
      %p711 = scmp.eq.s32.totalorder %s78, 0
      %p712 = por %p710, %p711
      %s713 = ssub.s32 %s72, %s79
      %p714 = scmp.eq.s32.totalorder %s713, 0
      %s716 = sadd.s32 %s715, 1
      %s717 = scalar_select %p714, %s715, %s716
      %p720 = pneg %p714
      %p721 = scmp.eq.s32.totalorder %s72, 1
      %p722 = por %p720, %p721
      %p723 = scmp.ne.s32.totalorder %s715, %s718
      %p724 = scmp.eq.s32.totalorder %s72, 0
      %p725 = por %p723, %p724
      %p726 = scmp.ne.s32.totalorder %s715, %s718
      %p727 = scmp.eq.s32.totalorder %s77, 1
      %p728 = por %p726, %p727
      %p729 = scmp.ne.s32.totalorder %s718, %s719
      %p730 = scmp.eq.s32.totalorder %s77, 0
      %p731 = por %p729, %p730
      %p732 = scmp.ne.s32.totalorder %s718, %s719
      %p733 = scmp.eq.s32.totalorder %s78, 1
      %p734 = por %p732, %p733
      %p736 = scmp.ne.s32.totalorder %s719, %s735
      %p737 = scmp.eq.s32.totalorder %s78, 0
      %p738 = por %p736, %p737
      %s739 = ssub.s32 %s72, %s79
      %p740 = scmp.eq.s32.totalorder %s739, 0
      %s742 = sadd.s32 %s741, 1
      %s743 = scalar_select %p740, %s741, %s742
      %p746 = pneg %p740
      %p747 = scmp.eq.s32.totalorder %s72, 1
      %p748 = por %p746, %p747
      %p749 = scmp.ne.s32.totalorder %s741, %s744
      %p750 = scmp.eq.s32.totalorder %s72, 0
      %p751 = por %p749, %p750
      %p752 = scmp.ne.s32.totalorder %s741, %s744
      %p753 = scmp.eq.s32.totalorder %s77, 1
      %p754 = por %p752, %p753
      %p755 = scmp.ne.s32.totalorder %s744, %s745
      %p756 = scmp.eq.s32.totalorder %s77, 0
      %p757 = por %p755, %p756
      %p758 = scmp.ne.s32.totalorder %s744, %s745
      %p759 = scmp.eq.s32.totalorder %s78, 1
      %p760 = por %p758, %p759
      %p762 = scmp.ne.s32.totalorder %s745, %s761
      %p763 = scmp.eq.s32.totalorder %s78, 0
      %p764 = por %p762, %p763
      %p765 = scmp.le.s32.totalorder 1, %s72
      %p766 = scmp.lt.s32.totalorder %s72, 3
      %p767 = pnand %p765, %p766
      %p768 = pneg %p767
      // Predicated region
      $region9: #{sawetm_forward.3} parent=5 // pred_check
        _
      $region10: #{sawetm_forward.3} parent=5 // pred_check_branch
        %770 = sbr.rel (%p767) target = $region12
      $region11: #{sawetm_forward.3} parent=5 // pred_region
        %s771 = ssub.s32 %s72, 1
        // Predicated region
        $region13: #{sawetm_forward.3} parent=11 // pred_check
          %p772 = pneg %p119
        $region14: #{sawetm_forward.3} parent=11 // pred_check_branch
          %774 = sbr.rel (%p772) target = $region16
        $region15: #{sawetm_forward.3} parent=11 // pred_region
          _
        $region16: #{sawetm_forward.3} parent=11 // pred_fallthru
          _
        // Predicated region
        $region17: #{sawetm_forward.3} parent=11 // pred_check
          %p775 = pneg %p140
        $region18: #{sawetm_forward.3} parent=11 // pred_check_branch
          %777 = sbr.rel (%p775) target = $region20
        $region19: #{sawetm_forward.3} parent=11 // pred_region
          _
        $region20: #{sawetm_forward.3} parent=11 // pred_fallthru
          _
        // Predicated region
        $region21: #{sawetm_forward.3} parent=11 // pred_check
          %p778 = pneg %p161
        $region22: #{sawetm_forward.3} parent=11 // pred_check_branch
          %780 = sbr.rel (%p778) target = $region24
        $region23: #{sawetm_forward.3} parent=11 // pred_region
          _
        $region24: #{sawetm_forward.3} parent=11 // pred_fallthru
          _
        // Predicated region
        $region25: #{sawetm_forward.3} parent=11 // pred_check
          %p781 = pneg %p182
        $region26: #{sawetm_forward.3} parent=11 // pred_check_branch
          %783 = sbr.rel (%p781) target = $region28
        $region27: #{sawetm_forward.3} parent=11 // pred_region
          _
        $region28: #{sawetm_forward.3} parent=11 // pred_fallthru
          _
        // Predicated region
        $region29: #{sawetm_forward.3} parent=11 // pred_check
          %p784 = pneg %p203
        $region30: #{sawetm_forward.3} parent=11 // pred_check_branch
          %786 = sbr.rel (%p784) target = $region32
        $region31: #{sawetm_forward.3} parent=11 // pred_region
          _
        $region32: #{sawetm_forward.3} parent=11 // pred_fallthru
          _
        // Predicated region
        $region33: #{sawetm_forward.3} parent=11 // pred_check
          %p787 = pneg %p224
        $region34: #{sawetm_forward.3} parent=11 // pred_check_branch
          %789 = sbr.rel (%p787) target = $region36
        $region35: #{sawetm_forward.3} parent=11 // pred_region
          _
        $region36: #{sawetm_forward.3} parent=11 // pred_fallthru
          _
        // Predicated region
        $region37: #{sawetm_forward.3} parent=11 // pred_check
          %p790 = pneg %p245
        $region38: #{sawetm_forward.3} parent=11 // pred_check_branch
          %792 = sbr.rel (%p790) target = $region40
        $region39: #{sawetm_forward.3} parent=11 // pred_region
          _
        $region40: #{sawetm_forward.3} parent=11 // pred_fallthru
          _
        // Predicated region
        $region41: #{sawetm_forward.3} parent=11 // pred_check
          %p793 = pneg %p266
        $region42: #{sawetm_forward.3} parent=11 // pred_check_branch
          %795 = sbr.rel (%p793) target = $region44
        $region43: #{sawetm_forward.3} parent=11 // pred_region
          _
        $region44: #{sawetm_forward.3} parent=11 // pred_fallthru
          _
        // Predicated region
        $region45: #{sawetm_forward.3} parent=11 // pred_check
          %p796 = pneg %p287
        $region46: #{sawetm_forward.3} parent=11 // pred_check_branch
          %798 = sbr.rel (%p796) target = $region48
        $region47: #{sawetm_forward.3} parent=11 // pred_region
          _
        $region48: #{sawetm_forward.3} parent=11 // pred_fallthru
          _
        // Predicated region
        $region49: #{sawetm_forward.3} parent=11 // pred_check
          %p799 = pneg %p308
        $region50: #{sawetm_forward.3} parent=11 // pred_check_branch
          %801 = sbr.rel (%p799) target = $region52
        $region51: #{sawetm_forward.3} parent=11 // pred_region
          _
        $region52: #{sawetm_forward.3} parent=11 // pred_fallthru
          _
        // Predicated region
        $region53: #{sawetm_forward.3} parent=11 // pred_check
          %p802 = pneg %p329
        $region54: #{sawetm_forward.3} parent=11 // pred_check_branch
          %804 = sbr.rel (%p802) target = $region56
        $region55: #{sawetm_forward.3} parent=11 // pred_region
          _
        $region56: #{sawetm_forward.3} parent=11 // pred_fallthru
          _
        // Predicated region
        $region57: #{sawetm_forward.3} parent=11 // pred_check
          %p805 = pneg %p350
        $region58: #{sawetm_forward.3} parent=11 // pred_check_branch
          %807 = sbr.rel (%p805) target = $region60
        $region59: #{sawetm_forward.3} parent=11 // pred_region
          _
        $region60: #{sawetm_forward.3} parent=11 // pred_fallthru
          _
        // Predicated region
        $region61: #{sawetm_forward.3} parent=11 // pred_check
          %p808 = pneg %p371
        $region62: #{sawetm_forward.3} parent=11 // pred_check_branch
          %810 = sbr.rel (%p808) target = $region64
        $region63: #{sawetm_forward.3} parent=11 // pred_region
          _
        $region64: #{sawetm_forward.3} parent=11 // pred_fallthru
          _
        // Predicated region
        $region65: #{sawetm_forward.3} parent=11 // pred_check
          %p811 = pneg %p392
        $region66: #{sawetm_forward.3} parent=11 // pred_check_branch
          %813 = sbr.rel (%p811) target = $region68
        $region67: #{sawetm_forward.3} parent=11 // pred_region
          _
        $region68: #{sawetm_forward.3} parent=11 // pred_fallthru
          _
        // Predicated region
        $region69: #{sawetm_forward.3} parent=11 // pred_check
          %p814 = pneg %p413
        $region70: #{sawetm_forward.3} parent=11 // pred_check_branch
          %816 = sbr.rel (%p814) target = $region72
        $region71: #{sawetm_forward.3} parent=11 // pred_region
          _
        $region72: #{sawetm_forward.3} parent=11 // pred_fallthru
          _
        // Predicated region
        $region73: #{sawetm_forward.3} parent=11 // pred_check
          %p817 = pneg %p434
        $region74: #{sawetm_forward.3} parent=11 // pred_check_branch
          %819 = sbr.rel (%p817) target = $region76
        $region75: #{sawetm_forward.3} parent=11 // pred_region
          _
        $region76: #{sawetm_forward.3} parent=11 // pred_fallthru
          _
        // Predicated region
        $region77: #{sawetm_forward.3} parent=11 // pred_check
          %p820 = pneg %p455
        $region78: #{sawetm_forward.3} parent=11 // pred_check_branch
          %822 = sbr.rel (%p820) target = $region80
        $region79: #{sawetm_forward.3} parent=11 // pred_region
          _
        $region80: #{sawetm_forward.3} parent=11 // pred_fallthru
          _
        // Predicated region
        $region81: #{sawetm_forward.3} parent=11 // pred_check
          %p823 = pneg %p476
        $region82: #{sawetm_forward.3} parent=11 // pred_check_branch
          %825 = sbr.rel (%p823) target = $region84
        $region83: #{sawetm_forward.3} parent=11 // pred_region
          _
        $region84: #{sawetm_forward.3} parent=11 // pred_fallthru
          _
        // Predicated region
        $region85: #{sawetm_forward.3} parent=11 // pred_check
          %p826 = pneg %p497
        $region86: #{sawetm_forward.3} parent=11 // pred_check_branch
          %828 = sbr.rel (%p826) target = $region88
        $region87: #{sawetm_forward.3} parent=11 // pred_region
          _
        $region88: #{sawetm_forward.3} parent=11 // pred_fallthru
          _
      $region12: #{sawetm_forward.3} parent=5 // pred_fallthru
        _
      %p829 = scmp.lt.s32.totalorder %s72, 2
      // Predicated region
      $region89: #{sawetm_forward.3} parent=5 // pred_check
        %p830 = pneg %p829
      $region90: #{sawetm_forward.3} parent=5 // pred_check_branch
        %832 = sbr.rel (%p830) target = $region92
      $region91: #{sawetm_forward.3} parent=5 // pred_region
        // Predicated region
        $region93: #{sawetm_forward.3} parent=91 // pred_check
          %p833 = pneg %p92
        $region94: #{sawetm_forward.3} parent=91 // pred_check_branch
          %835 = sbr.rel (%p833) target = $region96
        $region95: #{sawetm_forward.3} parent=91 // pred_region
          %p836 = scmp.lt.s32.totalorder %s72, 1
          %s837 = scalar_select %p836, %s72, 1
          %s838 = smul.addr %s837, 8
          %s839 = scalar_lea.vmem %s1, %s838
        $region96: #{sawetm_forward.3} parent=91 // pred_fallthru
          _
        // Predicated region
        $region97: #{sawetm_forward.3} parent=91 // pred_check
          %p840 = pneg %p517
        $region98: #{sawetm_forward.3} parent=91 // pred_check_branch
          %842 = sbr.rel (%p840) target = $region100
        $region99: #{sawetm_forward.3} parent=91 // pred_region
          %s843 = sand.u32 %s507, 1
          %s844 = sand.u32 %s507, 1
          %s845 = smul.addr %s844, 24
          %s846 = scalar_lea.vmem [#allocation2], %s845
          %s847 = smul.addr %s72, 8
          %s848 = scalar_lea.vmem %s41, %s847
          // Predicated region
          $region101: #{sawetm_forward.3} parent=99 // pred_check
            _
          $region102: #{sawetm_forward.3} parent=99 // pred_check_branch
            %850 = sbr.rel (0) target = $region104
          $region103: #{sawetm_forward.3} parent=99 // pred_region
            // Predicated region
            $region105: #{sawetm_forward.3} parent=103 // pred_check
              _
            $region106: #{sawetm_forward.3} parent=103 // pred_check_branch
              %852 = sbr.rel (0) target = $region108
            $region107: #{sawetm_forward.3} parent=103 // pred_region
              // Predicated region
              $region120: #{sawetm_forward.3} parent=107 // pred_check
                _
              $region121: #{sawetm_forward.3} parent=107 // pred_check_branch
                %871 = sbr.rel (0) target = $region123
              $region122: #{sawetm_forward.3} parent=107 // pred_region
                loop: start=0, step=1, limit=1
                $region124: #{sawetm_forward.3} parent=122 // loop_pre_header
                  _
                $region125: #{sawetm_forward.3} parent=122 // loop_header
                  %s873 = sphi 0, %s877
                  %p874 = scmp.ge.s32.totalorder %s873, 1
                  %s878 = sphi %s848, %s848
                  %s879 = sphi %s846, %s846
                $region126: #{sawetm_forward.3} parent=122 // loop_header_branch
                  %876 = sbr.rel (%p874) target = $region130
                $region127: #{sawetm_forward.3} parent=122 // loop_body
                  %v880 = vld [vmem:[%s878] sm:$0xff]
                  %881 = vst [vmem:[%s879] sm:$0xff] %v880
                  %v882 = vld [vmem:[%s878 + $0x10] sm:$0xff]
                  %883 = vst [vmem:[%s879 + $0x8] sm:$0xff] %v882
                  %v884 = vld [vmem:[%s878 + $0x20] sm:$0xff]
                  %885 = vst [vmem:[%s879 + $0x10] sm:$0xff] %v884
                $region128: #{sawetm_forward.3} parent=122 // loop_footer
                  %s877 = sadd.s32 1, %s873
                $region129: #{sawetm_forward.3} parent=122 // loop_footer_branch
                  %872 = sbr.rel target = $region125
                $region130: #{sawetm_forward.3} parent=122 // loop_exit
                  _
              $region123: #{sawetm_forward.3} parent=107 // pred_fallthru
                _
              // Predicated region
              $region131: #{sawetm_forward.3} parent=107 // pred_check
                _
              $region132: #{sawetm_forward.3} parent=107 // pred_check_branch
                %887 = sbr.rel target = $region134
              $region133: #{sawetm_forward.3} parent=107 // pred_region
                _
              $region134: #{sawetm_forward.3} parent=107 // pred_fallthru
                _
            $region108: #{sawetm_forward.3} parent=103 // pred_fallthru
              _
            // Predicated region
            $region109: #{sawetm_forward.3} parent=103 // pred_check
              _
            $region110: #{sawetm_forward.3} parent=103 // pred_check_branch
              %854 = sbr.rel target = $region112
            $region111: #{sawetm_forward.3} parent=103 // pred_region
              loop: start=0, step=1, limit=1
              $region113: #{sawetm_forward.3} parent=111 // loop_pre_header
                _
              $region114: #{sawetm_forward.3} parent=111 // loop_header
                %s857 = sphi 0, %s861
                %p858 = scmp.ge.s32.totalorder %s857, 1
                %s862 = sphi %s848, %s848
                %s863 = sphi %s846, %s846
              $region115: #{sawetm_forward.3} parent=111 // loop_header_branch
                %860 = sbr.rel (%p858) target = $region119
              $region116: #{sawetm_forward.3} parent=111 // loop_body
                %v864 = vld [vmem:[%s862] sm:$0xff]
                %865 = vst [vmem:[%s863] sm:$0xff] %v864
                %v866 = vld [vmem:[%s862 + $0x10] sm:$0xff]
                %867 = vst [vmem:[%s863 + $0x8] sm:$0xff] %v866
                %v868 = vld [vmem:[%s862 + $0x20] sm:$0xff]
                %869 = vst [vmem:[%s863 + $0x10] sm:$0xff] %v868
              $region117: #{sawetm_forward.3} parent=111 // loop_footer
                %s861 = sadd.s32 1, %s857
              $region118: #{sawetm_forward.3} parent=111 // loop_footer_branch
                %856 = sbr.rel target = $region114
              $region119: #{sawetm_forward.3} parent=111 // loop_exit
                _
            $region112: #{sawetm_forward.3} parent=103 // pred_fallthru
              _
          $region104: #{sawetm_forward.3} parent=99 // pred_fallthru
            _
          %888 = vnop
        $region100: #{sawetm_forward.3} parent=91 // pred_fallthru
          _
        // Predicated region
        $region135: #{sawetm_forward.3} parent=91 // pred_check
          %p889 = pneg %p543
        $region136: #{sawetm_forward.3} parent=91 // pred_check_branch
          %891 = sbr.rel (%p889) target = $region138
        $region137: #{sawetm_forward.3} parent=91 // pred_region
          %s892 = sand.u32 %s533, 1
          %s893 = sand.u32 %s533, 1
          %s894 = smul.addr %s893, 400
          %s895 = scalar_lea.vmem [#allocation3], %s894
          %s896 = smul.addr %s72, 8
          %s897 = scalar_lea.vmem %s43, %s896
          // Predicated region
          $region139: #{sawetm_forward.3} parent=137 // pred_check
            _
          $region140: #{sawetm_forward.3} parent=137 // pred_check_branch
            %899 = sbr.rel (0) target = $region142
          $region141: #{sawetm_forward.3} parent=137 // pred_region
            // Predicated region
            $region143: #{sawetm_forward.3} parent=141 // pred_check
              _
            $region144: #{sawetm_forward.3} parent=141 // pred_check_branch
              %901 = sbr.rel (0) target = $region146
            $region145: #{sawetm_forward.3} parent=141 // pred_region
              // Predicated region
              $region158: #{sawetm_forward.3} parent=145 // pred_check
                _
              $region159: #{sawetm_forward.3} parent=145 // pred_check_branch
                %1014 = sbr.rel (0) target = $region161
              $region160: #{sawetm_forward.3} parent=145 // pred_region
                loop: start=0, step=1, limit=1
                $region162: #{sawetm_forward.3} parent=160 // loop_pre_header
                  _
                $region163: #{sawetm_forward.3} parent=160 // loop_header
                  %s1016 = sphi 0, %s1020
                  %p1017 = scmp.ge.s32.totalorder %s1016, 1
                  %s1021 = sphi %s897, %s897
                  %s1022 = sphi %s895, %s895
                $region164: #{sawetm_forward.3} parent=160 // loop_header_branch
                  %1019 = sbr.rel (%p1017) target = $region168
                $region165: #{sawetm_forward.3} parent=160 // loop_body
                  %v1023 = vld [vmem:[%s1021] sm:$0xff]
                  %1024 = vst [vmem:[%s1022] sm:$0xff] %v1023
                  %v1025 = vld [vmem:[%s1021 + $0x10] sm:$0xff]
                  %1026 = vst [vmem:[%s1022 + $0x8] sm:$0xff] %v1025
                  %v1027 = vld [vmem:[%s1021 + $0x20] sm:$0xff]
                  %1028 = vst [vmem:[%s1022 + $0x10] sm:$0xff] %v1027
                  %v1029 = vld [vmem:[%s1021 + $0x30] sm:$0xff]
                  %1030 = vst [vmem:[%s1022 + $0x18] sm:$0xff] %v1029
                  %v1031 = vld [vmem:[%s1021 + $0x40] sm:$0xff]
                  %1032 = vst [vmem:[%s1022 + $0x20] sm:$0xff] %v1031
                  %v1033 = vld [vmem:[%s1021 + $0x50] sm:$0xff]
                  %1034 = vst [vmem:[%s1022 + $0x28] sm:$0xff] %v1033
                  %v1035 = vld [vmem:[%s1021 + $0x60] sm:$0xff]
                  %1036 = vst [vmem:[%s1022 + $0x30] sm:$0xff] %v1035
                  %v1037 = vld [vmem:[%s1021 + $0x70] sm:$0xff]
                  %1038 = vst [vmem:[%s1022 + $0x38] sm:$0xff] %v1037
                  %v1039 = vld [vmem:[%s1021 + $0x80] sm:$0xff]
                  %1040 = vst [vmem:[%s1022 + $0x40] sm:$0xff] %v1039
                  %v1041 = vld [vmem:[%s1021 + $0x90] sm:$0xff]
                  %1042 = vst [vmem:[%s1022 + $0x48] sm:$0xff] %v1041
                  %v1043 = vld [vmem:[%s1021 + $0xa0] sm:$0xff]
                  %1044 = vst [vmem:[%s1022 + $0x50] sm:$0xff] %v1043
                  %v1045 = vld [vmem:[%s1021 + $0xb0] sm:$0xff]
                  %1046 = vst [vmem:[%s1022 + $0x58] sm:$0xff] %v1045
                  %v1047 = vld [vmem:[%s1021 + $0xc0] sm:$0xff]
                  %1048 = vst [vmem:[%s1022 + $0x60] sm:$0xff] %v1047
                  %v1049 = vld [vmem:[%s1021 + $0xd0] sm:$0xff]
                  %1050 = vst [vmem:[%s1022 + $0x68] sm:$0xff] %v1049
                  %v1051 = vld [vmem:[%s1021 + $0xe0] sm:$0xff]
                  %1052 = vst [vmem:[%s1022 + $0x70] sm:$0xff] %v1051
                  %v1053 = vld [vmem:[%s1021 + $0xf0] sm:$0xff]
                  %1054 = vst [vmem:[%s1022 + $0x78] sm:$0xff] %v1053
                  %v1055 = vld [vmem:[%s1021 + $0x100] sm:$0xff]
                  %1056 = vst [vmem:[%s1022 + $0x80] sm:$0xff] %v1055
                  %v1057 = vld [vmem:[%s1021 + $0x110] sm:$0xff]
                  %1058 = vst [vmem:[%s1022 + $0x88] sm:$0xff] %v1057
                  %v1059 = vld [vmem:[%s1021 + $0x120] sm:$0xff]
                  %1060 = vst [vmem:[%s1022 + $0x90] sm:$0xff] %v1059
                  %v1061 = vld [vmem:[%s1021 + $0x130] sm:$0xff]
                  %1062 = vst [vmem:[%s1022 + $0x98] sm:$0xff] %v1061
                  %v1063 = vld [vmem:[%s1021 + $0x140] sm:$0xff]
                  %1064 = vst [vmem:[%s1022 + $0xa0] sm:$0xff] %v1063
                  %v1065 = vld [vmem:[%s1021 + $0x150] sm:$0xff]
                  %1066 = vst [vmem:[%s1022 + $0xa8] sm:$0xff] %v1065
                  %v1067 = vld [vmem:[%s1021 + $0x160] sm:$0xff]
                  %1068 = vst [vmem:[%s1022 + $0xb0] sm:$0xff] %v1067
                  %v1069 = vld [vmem:[%s1021 + $0x170] sm:$0xff]
                  %1070 = vst [vmem:[%s1022 + $0xb8] sm:$0xff] %v1069
                  %v1071 = vld [vmem:[%s1021 + $0x180] sm:$0xff]
                  %1072 = vst [vmem:[%s1022 + $0xc0] sm:$0xff] %v1071
                  %v1073 = vld [vmem:[%s1021 + $0x190] sm:$0xff]
                  %1074 = vst [vmem:[%s1022 + $0xc8] sm:$0xff] %v1073
                  %v1075 = vld [vmem:[%s1021 + $0x1a0] sm:$0xff]
                  %1076 = vst [vmem:[%s1022 + $0xd0] sm:$0xff] %v1075
                  %v1077 = vld [vmem:[%s1021 + $0x1b0] sm:$0xff]
                  %1078 = vst [vmem:[%s1022 + $0xd8] sm:$0xff] %v1077
                  %v1079 = vld [vmem:[%s1021 + $0x1c0] sm:$0xff]
                  %1080 = vst [vmem:[%s1022 + $0xe0] sm:$0xff] %v1079
                  %v1081 = vld [vmem:[%s1021 + $0x1d0] sm:$0xff]
                  %1082 = vst [vmem:[%s1022 + $0xe8] sm:$0xff] %v1081
                  %v1083 = vld [vmem:[%s1021 + $0x1e0] sm:$0xff]
                  %1084 = vst [vmem:[%s1022 + $0xf0] sm:$0xff] %v1083
                  %v1085 = vld [vmem:[%s1021 + $0x1f0] sm:$0xff]
                  %1086 = vst [vmem:[%s1022 + $0xf8] sm:$0xff] %v1085
                  %v1087 = vld [vmem:[%s1021 + $0x200] sm:$0xff]
                  %1088 = vst [vmem:[%s1022 + $0x100] sm:$0xff] %v1087
                  %v1089 = vld [vmem:[%s1021 + $0x210] sm:$0xff]
                  %1090 = vst [vmem:[%s1022 + $0x108] sm:$0xff] %v1089
                  %v1091 = vld [vmem:[%s1021 + $0x220] sm:$0xff]
                  %1092 = vst [vmem:[%s1022 + $0x110] sm:$0xff] %v1091
                  %v1093 = vld [vmem:[%s1021 + $0x230] sm:$0xff]
                  %1094 = vst [vmem:[%s1022 + $0x118] sm:$0xff] %v1093
                  %v1095 = vld [vmem:[%s1021 + $0x240] sm:$0xff]
                  %1096 = vst [vmem:[%s1022 + $0x120] sm:$0xff] %v1095
                  %v1097 = vld [vmem:[%s1021 + $0x250] sm:$0xff]
                  %1098 = vst [vmem:[%s1022 + $0x128] sm:$0xff] %v1097
                  %v1099 = vld [vmem:[%s1021 + $0x260] sm:$0xff]
                  %1100 = vst [vmem:[%s1022 + $0x130] sm:$0xff] %v1099
                  %v1101 = vld [vmem:[%s1021 + $0x270] sm:$0xff]
                  %1102 = vst [vmem:[%s1022 + $0x138] sm:$0xff] %v1101
                  %v1103 = vld [vmem:[%s1021 + $0x280] sm:$0xff]
                  %1104 = vst [vmem:[%s1022 + $0x140] sm:$0xff] %v1103
                  %v1105 = vld [vmem:[%s1021 + $0x290] sm:$0xff]
                  %1106 = vst [vmem:[%s1022 + $0x148] sm:$0xff] %v1105
                  %v1107 = vld [vmem:[%s1021 + $0x2a0] sm:$0xff]
                  %1108 = vst [vmem:[%s1022 + $0x150] sm:$0xff] %v1107
                  %v1109 = vld [vmem:[%s1021 + $0x2b0] sm:$0xff]
                  %1110 = vst [vmem:[%s1022 + $0x158] sm:$0xff] %v1109
                  %v1111 = vld [vmem:[%s1021 + $0x2c0] sm:$0xff]
                  %1112 = vst [vmem:[%s1022 + $0x160] sm:$0xff] %v1111
                  %v1113 = vld [vmem:[%s1021 + $0x2d0] sm:$0xff]
                  %1114 = vst [vmem:[%s1022 + $0x168] sm:$0xff] %v1113
                  %v1115 = vld [vmem:[%s1021 + $0x2e0] sm:$0xff]
                  %1116 = vst [vmem:[%s1022 + $0x170] sm:$0xff] %v1115
                  %v1117 = vld [vmem:[%s1021 + $0x2f0] sm:$0xff]
                  %1118 = vst [vmem:[%s1022 + $0x178] sm:$0xff] %v1117
                  %v1119 = vld [vmem:[%s1021 + $0x300] sm:$0xff]
                  %1120 = vst [vmem:[%s1022 + $0x180] sm:$0xff] %v1119
                  %v1121 = vld [vmem:[%s1021 + $0x310] sm:$0xff]
                  %1122 = vst [vmem:[%s1022 + $0x188] sm:$0xff] %v1121
                $region166: #{sawetm_forward.3} parent=160 // loop_footer
                  %s1020 = sadd.s32 1, %s1016
                $region167: #{sawetm_forward.3} parent=160 // loop_footer_branch
                  %1015 = sbr.rel target = $region163
                $region168: #{sawetm_forward.3} parent=160 // loop_exit
                  _
              $region161: #{sawetm_forward.3} parent=145 // pred_fallthru
                _
              // Predicated region
              $region169: #{sawetm_forward.3} parent=145 // pred_check
                _
              $region170: #{sawetm_forward.3} parent=145 // pred_check_branch
                %1124 = sbr.rel target = $region172
              $region171: #{sawetm_forward.3} parent=145 // pred_region
                _
              $region172: #{sawetm_forward.3} parent=145 // pred_fallthru
                _
            $region146: #{sawetm_forward.3} parent=141 // pred_fallthru
              _
            // Predicated region
            $region147: #{sawetm_forward.3} parent=141 // pred_check
              _
            $region148: #{sawetm_forward.3} parent=141 // pred_check_branch
              %903 = sbr.rel target = $region150
            $region149: #{sawetm_forward.3} parent=141 // pred_region
              loop: start=0, step=1, limit=1
              $region151: #{sawetm_forward.3} parent=149 // loop_pre_header
                _
              $region152: #{sawetm_forward.3} parent=149 // loop_header
                %s906 = sphi 0, %s910
                %p907 = scmp.ge.s32.totalorder %s906, 1
                %s911 = sphi %s897, %s897
                %s912 = sphi %s895, %s895
              $region153: #{sawetm_forward.3} parent=149 // loop_header_branch
                %909 = sbr.rel (%p907) target = $region157
              $region154: #{sawetm_forward.3} parent=149 // loop_body
                %v913 = vld [vmem:[%s911] sm:$0xff]
                %914 = vst [vmem:[%s912] sm:$0xff] %v913
                %v915 = vld [vmem:[%s911 + $0x10] sm:$0xff]
                %916 = vst [vmem:[%s912 + $0x8] sm:$0xff] %v915
                %v917 = vld [vmem:[%s911 + $0x20] sm:$0xff]
                %918 = vst [vmem:[%s912 + $0x10] sm:$0xff] %v917
                %v919 = vld [vmem:[%s911 + $0x30] sm:$0xff]
                %920 = vst [vmem:[%s912 + $0x18] sm:$0xff] %v919
                %v921 = vld [vmem:[%s911 + $0x40] sm:$0xff]
                %922 = vst [vmem:[%s912 + $0x20] sm:$0xff] %v921
                %v923 = vld [vmem:[%s911 + $0x50] sm:$0xff]
                %924 = vst [vmem:[%s912 + $0x28] sm:$0xff] %v923
                %v925 = vld [vmem:[%s911 + $0x60] sm:$0xff]
                %926 = vst [vmem:[%s912 + $0x30] sm:$0xff] %v925
                %v927 = vld [vmem:[%s911 + $0x70] sm:$0xff]
                %928 = vst [vmem:[%s912 + $0x38] sm:$0xff] %v927
                %v929 = vld [vmem:[%s911 + $0x80] sm:$0xff]
                %930 = vst [vmem:[%s912 + $0x40] sm:$0xff] %v929
                %v931 = vld [vmem:[%s911 + $0x90] sm:$0xff]
                %932 = vst [vmem:[%s912 + $0x48] sm:$0xff] %v931
                %v933 = vld [vmem:[%s911 + $0xa0] sm:$0xff]
                %934 = vst [vmem:[%s912 + $0x50] sm:$0xff] %v933
                %v935 = vld [vmem:[%s911 + $0xb0] sm:$0xff]
                %936 = vst [vmem:[%s912 + $0x58] sm:$0xff] %v935
                %v937 = vld [vmem:[%s911 + $0xc0] sm:$0xff]
                %938 = vst [vmem:[%s912 + $0x60] sm:$0xff] %v937
                %v939 = vld [vmem:[%s911 + $0xd0] sm:$0xff]
                %940 = vst [vmem:[%s912 + $0x68] sm:$0xff] %v939
                %v941 = vld [vmem:[%s911 + $0xe0] sm:$0xff]
                %942 = vst [vmem:[%s912 + $0x70] sm:$0xff] %v941
                %v943 = vld [vmem:[%s911 + $0xf0] sm:$0xff]
                %944 = vst [vmem:[%s912 + $0x78] sm:$0xff] %v943
                %v945 = vld [vmem:[%s911 + $0x100] sm:$0xff]
                %946 = vst [vmem:[%s912 + $0x80] sm:$0xff] %v945
                %v947 = vld [vmem:[%s911 + $0x110] sm:$0xff]
                %948 = vst [vmem:[%s912 + $0x88] sm:$0xff] %v947
                %v949 = vld [vmem:[%s911 + $0x120] sm:$0xff]
                %950 = vst [vmem:[%s912 + $0x90] sm:$0xff] %v949
                %v951 = vld [vmem:[%s911 + $0x130] sm:$0xff]
                %952 = vst [vmem:[%s912 + $0x98] sm:$0xff] %v951
                %v953 = vld [vmem:[%s911 + $0x140] sm:$0xff]
                %954 = vst [vmem:[%s912 + $0xa0] sm:$0xff] %v953
                %v955 = vld [vmem:[%s911 + $0x150] sm:$0xff]
                %956 = vst [vmem:[%s912 + $0xa8] sm:$0xff] %v955
                %v957 = vld [vmem:[%s911 + $0x160] sm:$0xff]
                %958 = vst [vmem:[%s912 + $0xb0] sm:$0xff] %v957
                %v959 = vld [vmem:[%s911 + $0x170] sm:$0xff]
                %960 = vst [vmem:[%s912 + $0xb8] sm:$0xff] %v959
                %v961 = vld [vmem:[%s911 + $0x180] sm:$0xff]
                %962 = vst [vmem:[%s912 + $0xc0] sm:$0xff] %v961
                %v963 = vld [vmem:[%s911 + $0x190] sm:$0xff]
                %964 = vst [vmem:[%s912 + $0xc8] sm:$0xff] %v963
                %v965 = vld [vmem:[%s911 + $0x1a0] sm:$0xff]
                %966 = vst [vmem:[%s912 + $0xd0] sm:$0xff] %v965
                %v967 = vld [vmem:[%s911 + $0x1b0] sm:$0xff]
                %968 = vst [vmem:[%s912 + $0xd8] sm:$0xff] %v967
                %v969 = vld [vmem:[%s911 + $0x1c0] sm:$0xff]
                %970 = vst [vmem:[%s912 + $0xe0] sm:$0xff] %v969
                %v971 = vld [vmem:[%s911 + $0x1d0] sm:$0xff]
                %972 = vst [vmem:[%s912 + $0xe8] sm:$0xff] %v971
                %v973 = vld [vmem:[%s911 + $0x1e0] sm:$0xff]
                %974 = vst [vmem:[%s912 + $0xf0] sm:$0xff] %v973
                %v975 = vld [vmem:[%s911 + $0x1f0] sm:$0xff]
                %976 = vst [vmem:[%s912 + $0xf8] sm:$0xff] %v975
                %v977 = vld [vmem:[%s911 + $0x200] sm:$0xff]
                %978 = vst [vmem:[%s912 + $0x100] sm:$0xff] %v977
                %v979 = vld [vmem:[%s911 + $0x210] sm:$0xff]
                %980 = vst [vmem:[%s912 + $0x108] sm:$0xff] %v979
                %v981 = vld [vmem:[%s911 + $0x220] sm:$0xff]
                %982 = vst [vmem:[%s912 + $0x110] sm:$0xff] %v981
                %v983 = vld [vmem:[%s911 + $0x230] sm:$0xff]
                %984 = vst [vmem:[%s912 + $0x118] sm:$0xff] %v983
                %v985 = vld [vmem:[%s911 + $0x240] sm:$0xff]
                %986 = vst [vmem:[%s912 + $0x120] sm:$0xff] %v985
                %v987 = vld [vmem:[%s911 + $0x250] sm:$0xff]
                %988 = vst [vmem:[%s912 + $0x128] sm:$0xff] %v987
                %v989 = vld [vmem:[%s911 + $0x260] sm:$0xff]
                %990 = vst [vmem:[%s912 + $0x130] sm:$0xff] %v989
                %v991 = vld [vmem:[%s911 + $0x270] sm:$0xff]
                %992 = vst [vmem:[%s912 + $0x138] sm:$0xff] %v991
                %v993 = vld [vmem:[%s911 + $0x280] sm:$0xff]
                %994 = vst [vmem:[%s912 + $0x140] sm:$0xff] %v993
                %v995 = vld [vmem:[%s911 + $0x290] sm:$0xff]
                %996 = vst [vmem:[%s912 + $0x148] sm:$0xff] %v995
                %v997 = vld [vmem:[%s911 + $0x2a0] sm:$0xff]
                %998 = vst [vmem:[%s912 + $0x150] sm:$0xff] %v997
                %v999 = vld [vmem:[%s911 + $0x2b0] sm:$0xff]
                %1000 = vst [vmem:[%s912 + $0x158] sm:$0xff] %v999
                %v1001 = vld [vmem:[%s911 + $0x2c0] sm:$0xff]
                %1002 = vst [vmem:[%s912 + $0x160] sm:$0xff] %v1001
                %v1003 = vld [vmem:[%s911 + $0x2d0] sm:$0xff]
                %1004 = vst [vmem:[%s912 + $0x168] sm:$0xff] %v1003
                %v1005 = vld [vmem:[%s911 + $0x2e0] sm:$0xff]
                %1006 = vst [vmem:[%s912 + $0x170] sm:$0xff] %v1005
                %v1007 = vld [vmem:[%s911 + $0x2f0] sm:$0xff]
                %1008 = vst [vmem:[%s912 + $0x178] sm:$0xff] %v1007
                %v1009 = vld [vmem:[%s911 + $0x300] sm:$0xff]
                %1010 = vst [vmem:[%s912 + $0x180] sm:$0xff] %v1009
                %v1011 = vld [vmem:[%s911 + $0x310] sm:$0xff]
                %1012 = vst [vmem:[%s912 + $0x188] sm:$0xff] %v1011
              $region155: #{sawetm_forward.3} parent=149 // loop_footer
                %s910 = sadd.s32 1, %s906
              $region156: #{sawetm_forward.3} parent=149 // loop_footer_branch
                %905 = sbr.rel target = $region152
              $region157: #{sawetm_forward.3} parent=149 // loop_exit
                _
            $region150: #{sawetm_forward.3} parent=141 // pred_fallthru
              _
          $region142: #{sawetm_forward.3} parent=137 // pred_fallthru
            _
          %1125 = vnop
        $region138: #{sawetm_forward.3} parent=91 // pred_fallthru
          _
      $region92: #{sawetm_forward.3} parent=5 // pred_fallthru
        _
      %p1126 = scmp.le.s32.totalorder 1, %s72
      %p1127 = scmp.lt.s32.totalorder %s72, 3
      %p1128 = pnand %p1126, %p1127
      %p1129 = pneg %p1128
      // Predicated region
      $region173: #{sawetm_forward.3} parent=5 // pred_check
        _
      $region174: #{sawetm_forward.3} parent=5 // pred_check_branch
        %1131 = sbr.rel (%p1128) target = $region176
      $region175: #{sawetm_forward.3} parent=5 // pred_region
        %s1132 = ssub.s32 %s72, 1
        %s1133 = sand.u32 %s510, 1
        %s1134 = sand.u32 %s510, 1
        %s1135 = smul.addr %s1134, 24
        %s1136 = scalar_lea.vmem [#allocation2], %s1135
        // Predicated region
        $region177: #{sawetm_forward.3} parent=175 // pred_check
          %p1137 = pneg %p523
        $region178: #{sawetm_forward.3} parent=175 // pred_check_branch
          %1139 = sbr.rel (%p1137) target = $region180
        $region179: #{sawetm_forward.3} parent=175 // pred_region
          _
        $region180: #{sawetm_forward.3} parent=175 // pred_fallthru
          _
        %s1140 = sand.u32 %s536, 1
        %s1141 = sand.u32 %s536, 1
        %s1142 = smul.addr %s1141, 400
        %s1143 = scalar_lea.vmem [#allocation3], %s1142
        // Predicated region
        $region181: #{sawetm_forward.3} parent=175 // pred_check
          %p1144 = pneg %p549
        $region182: #{sawetm_forward.3} parent=175 // pred_check_branch
          %1146 = sbr.rel (%p1144) target = $region184
        $region183: #{sawetm_forward.3} parent=175 // pred_region
          _
        $region184: #{sawetm_forward.3} parent=175 // pred_fallthru
          _
        %p1147 = scmp.lt.s32.totalorder %s77, 1
        %s1148 = scalar_select %p1147, %s77, 1
        %s1149 = smul.addr %s1148, 8
        %s1150 = scalar_lea.vmem %s1, %s1149
        %p1151 = pneg %p98
        %p1152 = pneg %p95
        %p1153 = pneg %p119
        %p1154 = pneg %p116
        %p1155 = pneg %p140
        %p1156 = pneg %p137
        %p1157 = pneg %p161
        %p1158 = pneg %p158
        %p1159 = pneg %p182
        %p1160 = pneg %p179
        %p1161 = pneg %p203
        %p1162 = pneg %p200
        %p1163 = pneg %p224
        %p1164 = pneg %p221
        %p1165 = pneg %p245
        %p1166 = pneg %p242
        %p1167 = pneg %p266
        %p1168 = pneg %p263
        %p1169 = pneg %p287
        %p1170 = pneg %p284
        %p1171 = pneg %p308
        %p1172 = pneg %p305
        %p1173 = pneg %p329
        %p1174 = pneg %p326
        %p1175 = pneg %p350
        %p1176 = pneg %p347
        %p1177 = pneg %p371
        %p1178 = pneg %p368
        %p1179 = pneg %p392
        %p1180 = pneg %p389
        %p1181 = pneg %p413
        %p1182 = pneg %p410
        %p1183 = pneg %p434
        %p1184 = pneg %p431
        %p1185 = pneg %p455
        %p1186 = pneg %p452
        %p1187 = pneg %p476
        %p1188 = pneg %p473
        %p1189 = pneg %p497
        %p1190 = pneg %p494
        %s1191 = sand.u32 %s510, 1
        %s1192 = sand.u32 %s510, 1
        %s1193 = smul.addr %s1192, 24
        %s1194 = scalar_lea.vmem [#allocation2], %s1193
        %p1195 = pneg %p523
        %p1196 = pneg %p520
        %s1197 = sand.u32 %s536, 1
        %s1198 = sand.u32 %s536, 1
        %s1199 = smul.addr %s1198, 400
        %s1200 = scalar_lea.vmem [#allocation3], %s1199
        %p1201 = pneg %p549
        %p1202 = pneg %p546
        %p1203 = pneg %p575
        %p1204 = pneg %p572
        %p1205 = scmp.lt.s32.totalorder %s77, 1
        %s1206 = scalar_select %p1205, %s77, 1
        %s1207 = smul.addr %s1206, 8
        %s1208 = scalar_lea.vmem %s45, %s1207
        %p1209 = pneg %p601
        %p1210 = pneg %p598
        %p1211 = scmp.lt.s32.totalorder %s77, 1
        %s1212 = scalar_select %p1211, %s77, 1
        %s1213 = smul.addr %s1212, 8
        %s1214 = scalar_lea.vmem %s47, %s1213
        %p1215 = pneg %p627
        %p1216 = pneg %p624
        %p1217 = scmp.lt.s32.totalorder %s77, 1
        %s1218 = scalar_select %p1217, %s77, 1
        %s1219 = smul.addr %s1218, 8
        %s1220 = scalar_lea.vmem %s49, %s1219
        %p1221 = pneg %p653
        %p1222 = pneg %p650
        %p1223 = scmp.lt.s32.totalorder %s77, 1
        %s1224 = scalar_select %p1223, %s77, 1
        %s1225 = smul.addr %s1224, 8
        %s1226 = scalar_lea.vmem %s51, %s1225
        %p1227 = pneg %p679
        %p1228 = pneg %p676
        %p1229 = scmp.lt.s32.totalorder %s77, 1
        %s1230 = scalar_select %p1229, %s77, 1
        %s1231 = smul.addr %s1230, 8
        %s1232 = scalar_lea.vmem %s53, %s1231
        %p1233 = pneg %p705
        %p1234 = pneg %p702
        %s1235 = sand.u32 %s692, 1
        %s1236 = scalar_lea.sflag [#allocation5], %s1235
        %s1237 = sand.u32 %s692, 1
        %s1238 = smul.addr %s1237, 8
        %s1239 = scalar_lea.vmem [#allocation4], %s1238
        %p1240 = pneg %p731
        %p1241 = pneg %p728
        %s1242 = sand.u32 %s718, 1
        %s1243 = scalar_lea.sflag [#allocation7], %s1242
        %s1244 = sand.u32 %s718, 1
        %s1245 = smul.addr %s1244, 8
        %s1246 = scalar_lea.vmem [#allocation6], %s1245
        %p1247 = pneg %p757
        %p1248 = pneg %p754
        %p1249 = scmp.lt.s32.totalorder %s77, 1
        %s1250 = scalar_select %p1249, %s77, 1
        %s1251 = smul.addr %s1250, 8
        %s1252 = scalar_lea.vmem %s59, %s1251
        %p1253 = scmp.lt.s32.totalorder %s77, 1
        %s1254 = scalar_select %p1253, %s77, 1
        %s1255 = smul.addr %s1254, 8
        %s1256 = scalar_lea.vmem %s1, %s1255
        %p1257 = scmp.lt.s32.totalorder %s77, 1
        %s1258 = scalar_select %p1257, %s77, 1
        %s1259 = smul.addr %s1258, 8
        %s1260 = scalar_lea.vmem %s45, %s1259
        %p1261 = scmp.lt.s32.totalorder %s77, 1
        %s1262 = scalar_select %p1261, %s77, 1
        %s1263 = smul.addr %s1262, 8
        %s1264 = scalar_lea.vmem %s47, %s1263
        %p1265 = scmp.lt.s32.totalorder %s77, 1
        %s1266 = scalar_select %p1265, %s77, 1
        %s1267 = smul.addr %s1266, 8
        %s1268 = scalar_lea.vmem %s49, %s1267
        %p1269 = scmp.lt.s32.totalorder %s77, 1
        %s1270 = scalar_select %p1269, %s77, 1
        %s1271 = smul.addr %s1270, 8
        %s1272 = scalar_lea.vmem %s51, %s1271
        %p1273 = scmp.lt.s32.totalorder %s77, 1
        %s1274 = scalar_select %p1273, %s77, 1
        %s1275 = smul.addr %s1274, 8
        %s1276 = scalar_lea.vmem %s53, %s1275
        %p1277 = scmp.lt.s32.totalorder %s77, 1
        %s1278 = scalar_select %p1277, %s77, 1
        %s1279 = smul.addr %s1278, 8
        %s1280 = scalar_lea.vmem %s59, %s1279
        %v1281 = vld [vmem:[%s1256] sm:$0xff]
        %v1282 = vld [vmem:[%s9] sm:$0xff]
        %v1283 = vld [vmem:[%s9 + $0x8] sm:$0xff]
        %v1284 = vld [vmem:[%s9 + $0x10] sm:$0xff]
        %v1285 = vld [vmem:[%s9 + $0x18] sm:$0xff]
        %v1286 = vld [vmem:[%s9 + $0x20] sm:$0xff]
        %v1287 = vld [vmem:[%s9 + $0x28] sm:$0xff]
        %v1288 = vld [vmem:[%s9 + $0x30] sm:$0xff]
        %v1289 = vld [vmem:[%s9 + $0x38] sm:$0xff]
        %v1290 = vld [vmem:[%s9 + $0x40] sm:$0xff]
        %v1291 = vld [vmem:[%s9 + $0x48] sm:$0xff]
        %v1292 = vld [vmem:[%s9 + $0x50] sm:$0xff]
        %v1293 = vld [vmem:[%s9 + $0x58] sm:$0xff]
        %v1294 = vld [vmem:[%s9 + $0x60] sm:$0xff]
        %v1295 = vld [vmem:[%s9 + $0x68] sm:$0xff]
        %v1296 = vld [vmem:[%s9 + $0x70] sm:$0xff]
        %v1297 = vld [vmem:[%s9 + $0x78] sm:$0xff]
        %v1298 = vld [vmem:[%s11] sm:$0x1]
        %v1300 = vlaneseq
        %v1301 = vshrl.u32 %v1300, 7
        %v1302 = vsub.s32 0, %v1301
        %v1303 = vrot.slane %v1298, %v1302
        %1305 = vmatprep.subr.mxu0 0.0
        %1306 = vmatpush1.msra.mxu0 %v1282
        %1307 = vmatprep.subr.mxu0 0.0
        %1308 = vmatpush1.msra.mxu0 %v1283
        %1309 = vmatprep.subr.mxu0 0.0
        %1310 = vmatpush1.msra.mxu0 %v1284
        %1311 = vmatprep.subr.mxu0 0.0
        %1312 = vmatpush1.msra.mxu0 %v1285
        %1313 = vmatprep.subr.mxu0 0.0
        %1314 = vmatpush1.msra.mxu0 %v1286
        %1315 = vmatprep.subr.mxu0 0.0
        %1316 = vmatpush1.msra.mxu0 %v1287
        %1317 = vmatprep.subr.mxu0 0.0
        %1318 = vmatpush1.msra.mxu0 %v1288
        %1319 = vmatprep.subr.mxu0 0.0
        %1320 = vmatpush1.msra.mxu0 %v1289
        %1321 = vmatprep.subr.mxu0 0.0
        %1322 = vmatpush1.msra.mxu0 %v1290
        %1323 = vmatprep.subr.mxu0 0.0
        %1324 = vmatpush1.msra.mxu0 %v1291
        %1325 = vmatprep.subr.mxu0 0.0
        %1326 = vmatpush1.msra.mxu0 %v1292
        %1327 = vmatprep.subr.mxu0 0.0
        %1328 = vmatpush1.msra.mxu0 %v1293
        %1329 = vmatprep.subr.mxu0 0.0
        %1330 = vmatpush1.msra.mxu0 %v1294
        %1331 = vmatprep.subr.mxu0 0.0
        %1332 = vmatpush1.msra.mxu0 %v1295
        %1333 = vmatprep.subr.mxu0 0.0
        %1334 = vmatpush1.msra.mxu0 %v1296
        %1335 = vmatprep.subr.mxu0 0.0
        %1336 = vmatpush1.msra.mxu0 %v1297
        %1337 = vmatprep.subr.mxu0 0.0
        %1338 = vmatpush1.msra.mxu0 0.0
        %1339 = vmatprep.subr.mxu0 0.0
        %1340 = vmatpush1.msra.mxu0 0.0
        %1341 = vmatprep.subr.mxu0 0.0
        %1342 = vmatpush1.msra.mxu0 0.0
        %1343 = vmatprep.subr.mxu0 0.0
        %1344 = vmatpush1.msra.mxu0 0.0
        %1345 = vmatprep.subr.mxu0 0.0
        %1346 = vmatpush1.msra.mxu0 0.0
        %1347 = vmatprep.subr.mxu0 0.0
        %1348 = vmatpush1.msra.mxu0 0.0
        %1349 = vmatprep.subr.mxu0 0.0
        %1350 = vmatpush1.msra.mxu0 0.0
        %1351 = vmatprep.subr.mxu0 0.0
        %1352 = vmatpush1.msra.mxu0 0.0
        %1353 = vmatprep.subr.mxu0 0.0
        %1354 = vmatpush1.msra.mxu0 0.0
        %1355 = vmatprep.subr.mxu0 0.0
        %1356 = vmatpush1.msra.mxu0 0.0
        %1357 = vmatprep.subr.mxu0 0.0
        %1358 = vmatpush1.msra.mxu0 0.0
        %1359 = vmatprep.subr.mxu0 0.0
        %1360 = vmatpush1.msra.mxu0 0.0
        %1361 = vmatprep.subr.mxu0 0.0
        %1362 = vmatpush1.msra.mxu0 0.0
        %1363 = vmatprep.subr.mxu0 0.0
        %1364 = vmatpush1.msra.mxu0 0.0
        %1365 = vmatprep.subr.mxu0 0.0
        %1366 = vmatpush1.msra.mxu0 0.0
        %1367 = vmatprep.subr.mxu0 0.0
        %1368 = vmatpush1.msra.mxu0 0.0
        %1369 = vmatprep.mubr.f32.mxu0 0.0
        %1370 = vmatmul.mubr.f32.gmra.mrb[0].mxu0 %v1281
        %v1371 = vpop.f32.mrb[0].mxu0
        %v1372 = vadd.f32 %v1303, %v1371
        %v1373 = vpop.f32.mrb[0].mxu0
        %1374 = vdwg.mxu0
        %v1375 = vmax.f32 %v1372, 0.0
        %v1376 = vand.u32 2147483647, %v1372
        %v1377 = vsub.f32 0.0, %v1376
        %v1378 = vmul.f32 %v1377, 1.442695
        %v1379 = vpow.pop %v1378
        %v1380 = vadd.f32 %v1379, 1.0
        %v1381 = vsub.f32 %v1380, 1.0
        %vm1382 = vcmp.eq.f32.partialorder %v1381, 0.0
        %v1383 = vlog2.pop %v1380
        %v1384 = vmul.f32 %v1383, 0.6931472
        %v1385 = vrcp.pop %v1381
        %v1386 = vmul.f32 %v1379, %v1385
        %v1387 = vmul.f32 %v1384, %v1386
        %v1388 = vsel %vm1382, %v1379, %v1387
        %v1389 = vadd.f32 %v1375, %v1388
        %v1390 = vld [vmem:[%s13] sm:$0xff]
        %v1391 = vld [vmem:[%s13 + $0x8] sm:$0xff]
        %v1392 = vld [vmem:[%s13 + $0x10] sm:$0xff]
        %v1393 = vld [vmem:[%s13 + $0x18] sm:$0xff]
        %v1394 = vld [vmem:[%s13 + $0x20] sm:$0xff]
        %v1395 = vld [vmem:[%s13 + $0x28] sm:$0xff]
        %v1396 = vld [vmem:[%s13 + $0x30] sm:$0xff]
        %v1397 = vld [vmem:[%s13 + $0x38] sm:$0xff]
        %v1398 = vld [vmem:[%s15] sm:$0x1]
        %v1400 = vlaneseq
        %v1401 = vshrl.u32 %v1400, 7
        %v1402 = vsub.s32 0, %v1401
        %v1403 = vrot.slane %v1398, %v1402
        %vm1405 = vcmask 523264
        %v1407 = vsel %vm1405, %v1389, 0
        %1409 = vmatprep.subr.mxu0 0.0
        %1410 = vmatpush1.msra.mxu0 %v1390
        %1411 = vmatprep.subr.mxu0 0.0
        %1412 = vmatpush1.msra.mxu0 %v1391
        %1413 = vmatprep.subr.mxu0 0.0
        %1414 = vmatpush1.msra.mxu0 %v1392
        %1415 = vmatprep.subr.mxu0 0.0
        %1416 = vmatpush1.msra.mxu0 %v1393
        %1417 = vmatprep.subr.mxu0 0.0
        %1418 = vmatpush1.msra.mxu0 %v1394
        %1419 = vmatprep.subr.mxu0 0.0
        %1420 = vmatpush1.msra.mxu0 %v1395
        %1421 = vmatprep.subr.mxu0 0.0
        %1422 = vmatpush1.msra.mxu0 %v1396
        %1423 = vmatprep.subr.mxu0 0.0
        %1424 = vmatpush1.msra.mxu0 %v1397
        %1425 = vmatprep.subr.mxu0 0.0
        %1426 = vmatpush1.msra.mxu0 0.0
        %1427 = vmatprep.subr.mxu0 0.0
        %1428 = vmatpush1.msra.mxu0 0.0
        %1429 = vmatprep.subr.mxu0 0.0
        %1430 = vmatpush1.msra.mxu0 0.0
        %1431 = vmatprep.subr.mxu0 0.0
        %1432 = vmatpush1.msra.mxu0 0.0
        %1433 = vmatprep.subr.mxu0 0.0
        %1434 = vmatpush1.msra.mxu0 0.0
        %1435 = vmatprep.subr.mxu0 0.0
        %1436 = vmatpush1.msra.mxu0 0.0
        %1437 = vmatprep.subr.mxu0 0.0
        %1438 = vmatpush1.msra.mxu0 0.0
        %1439 = vmatprep.subr.mxu0 0.0
        %1440 = vmatpush1.msra.mxu0 0.0
        %1441 = vmatprep.subr.mxu0 0.0
        %1442 = vmatpush1.msra.mxu0 0.0
        %1443 = vmatprep.subr.mxu0 0.0
        %1444 = vmatpush1.msra.mxu0 0.0
        %1445 = vmatprep.subr.mxu0 0.0
        %1446 = vmatpush1.msra.mxu0 0.0
        %1447 = vmatprep.subr.mxu0 0.0
        %1448 = vmatpush1.msra.mxu0 0.0
        %1449 = vmatprep.subr.mxu0 0.0
        %1450 = vmatpush1.msra.mxu0 0.0
        %1451 = vmatprep.subr.mxu0 0.0
        %1452 = vmatpush1.msra.mxu0 0.0
        %1453 = vmatprep.subr.mxu0 0.0
        %1454 = vmatpush1.msra.mxu0 0.0
        %1455 = vmatprep.subr.mxu0 0.0
        %1456 = vmatpush1.msra.mxu0 0.0
        %1457 = vmatprep.subr.mxu0 0.0
        %1458 = vmatpush1.msra.mxu0 0.0
        %1459 = vmatprep.subr.mxu0 0.0
        %1460 = vmatpush1.msra.mxu0 0.0
        %1461 = vmatprep.subr.mxu0 0.0
        %1462 = vmatpush1.msra.mxu0 0.0
        %1463 = vmatprep.subr.mxu0 0.0
        %1464 = vmatpush1.msra.mxu0 0.0
        %1465 = vmatprep.subr.mxu0 0.0
        %1466 = vmatpush1.msra.mxu0 0.0
        %1467 = vmatprep.subr.mxu0 0.0
        %1468 = vmatpush1.msra.mxu0 0.0
        %1469 = vmatprep.subr.mxu0 0.0
        %1470 = vmatpush1.msra.mxu0 0.0
        %1471 = vmatprep.subr.mxu0 0.0
        %1472 = vmatpush1.msra.mxu0 0.0
        %1473 = vmatprep.mubr.f32.mxu0 0.0
        %1474 = vmatmul.mubr.f32.gmra.mrb[0].mxu0 %v1407
        %v1475 = vpop.f32.mrb[0].mxu0
        %v1476 = vadd.f32 %v1403, %v1475
        %v1477 = vpop.f32.mrb[0].mxu0
        %1478 = vdwg.mxu0
        %v1479 = vmax.f32 %v1476, 0.0
        %v1480 = vand.u32 2147483647, %v1476
        %v1481 = vsub.f32 0.0, %v1480
        %v1482 = vmul.f32 %v1481, 1.442695
        %v1483 = vpow.pop %v1482
        %v1484 = vadd.f32 %v1483, 1.0
        %v1485 = vsub.f32 %v1484, 1.0
        %vm1486 = vcmp.eq.f32.partialorder %v1485, 0.0
        %v1487 = vlog2.pop %v1484
        %v1488 = vmul.f32 %v1487, 0.6931472
        %v1489 = vrcp.pop %v1485
        %v1490 = vmul.f32 %v1483, %v1489
        %v1491 = vmul.f32 %v1488, %v1490
        %v1492 = vsel %vm1486, %v1483, %v1491
        %v1493 = vadd.f32 %v1479, %v1492
        %v1494 = vadd.f32 %v1389, %v1493
        %v1495 = vld [vmem:[%s17] sm:$0xff]
        %v1496 = vld [vmem:[%s17 + $0x8] sm:$0xff]
        %v1497 = vld [vmem:[%s17 + $0x10] sm:$0xff]
        %v1498 = vld [vmem:[%s17 + $0x18] sm:$0xff]
        %v1499 = vld [vmem:[%s17 + $0x20] sm:$0xff]
        %v1500 = vld [vmem:[%s17 + $0x28] sm:$0xff]
        %v1501 = vld [vmem:[%s17 + $0x30] sm:$0xff]
        %v1502 = vld [vmem:[%s17 + $0x38] sm:$0xff]
        %v1503 = vld [vmem:[%s19] sm:$0x1]
        %v1505 = vlaneseq
        %v1506 = vshrl.u32 %v1505, 7
        %v1507 = vsub.s32 0, %v1506
        %v1508 = vrot.slane %v1503, %v1507
        %v1511 = vsel %vm1405, %v1494, 0
        %1513 = vmatprep.subr.mxu0 0.0
        %1514 = vmatpush1.msra.mxu0 %v1495
        %1515 = vmatprep.subr.mxu0 0.0
        %1516 = vmatpush1.msra.mxu0 %v1496
        %1517 = vmatprep.subr.mxu0 0.0
        %1518 = vmatpush1.msra.mxu0 %v1497
        %1519 = vmatprep.subr.mxu0 0.0
        %1520 = vmatpush1.msra.mxu0 %v1498
        %1521 = vmatprep.subr.mxu0 0.0
        %1522 = vmatpush1.msra.mxu0 %v1499
        %1523 = vmatprep.subr.mxu0 0.0
        %1524 = vmatpush1.msra.mxu0 %v1500
        %1525 = vmatprep.subr.mxu0 0.0
        %1526 = vmatpush1.msra.mxu0 %v1501
        %1527 = vmatprep.subr.mxu0 0.0
        %1528 = vmatpush1.msra.mxu0 %v1502
        %1529 = vmatprep.subr.mxu0 0.0
        %1530 = vmatpush1.msra.mxu0 0.0
        %1531 = vmatprep.subr.mxu0 0.0
        %1532 = vmatpush1.msra.mxu0 0.0
        %1533 = vmatprep.subr.mxu0 0.0
        %1534 = vmatpush1.msra.mxu0 0.0
        %1535 = vmatprep.subr.mxu0 0.0
        %1536 = vmatpush1.msra.mxu0 0.0
        %1537 = vmatprep.subr.mxu0 0.0
        %1538 = vmatpush1.msra.mxu0 0.0
        %1539 = vmatprep.subr.mxu0 0.0
        %1540 = vmatpush1.msra.mxu0 0.0
        %1541 = vmatprep.subr.mxu0 0.0
        %1542 = vmatpush1.msra.mxu0 0.0
        %1543 = vmatprep.subr.mxu0 0.0
        %1544 = vmatpush1.msra.mxu0 0.0
        %1545 = vmatprep.subr.mxu0 0.0
        %1546 = vmatpush1.msra.mxu0 0.0
        %1547 = vmatprep.subr.mxu0 0.0
        %1548 = vmatpush1.msra.mxu0 0.0
        %1549 = vmatprep.subr.mxu0 0.0
        %1550 = vmatpush1.msra.mxu0 0.0
        %1551 = vmatprep.subr.mxu0 0.0
        %1552 = vmatpush1.msra.mxu0 0.0
        %1553 = vmatprep.subr.mxu0 0.0
        %1554 = vmatpush1.msra.mxu0 0.0
        %1555 = vmatprep.subr.mxu0 0.0
        %1556 = vmatpush1.msra.mxu0 0.0
        %1557 = vmatprep.subr.mxu0 0.0
        %1558 = vmatpush1.msra.mxu0 0.0
        %1559 = vmatprep.subr.mxu0 0.0
        %1560 = vmatpush1.msra.mxu0 0.0
        %1561 = vmatprep.subr.mxu0 0.0
        %1562 = vmatpush1.msra.mxu0 0.0
        %1563 = vmatprep.subr.mxu0 0.0
        %1564 = vmatpush1.msra.mxu0 0.0
        %1565 = vmatprep.subr.mxu0 0.0
        %1566 = vmatpush1.msra.mxu0 0.0
        %1567 = vmatprep.subr.mxu0 0.0
        %1568 = vmatpush1.msra.mxu0 0.0
        %1569 = vmatprep.subr.mxu0 0.0
        %1570 = vmatpush1.msra.mxu0 0.0
        %1571 = vmatprep.subr.mxu0 0.0
        %1572 = vmatpush1.msra.mxu0 0.0
        %1573 = vmatprep.subr.mxu0 0.0
        %1574 = vmatpush1.msra.mxu0 0.0
        %1575 = vmatprep.subr.mxu0 0.0
        %1576 = vmatpush1.msra.mxu0 0.0
        %1577 = vmatprep.mubr.f32.mxu0 0.0
        %1578 = vmatmul.mubr.f32.gmra.mrb[0].mxu0 %v1511
        %v1579 = vpop.f32.mrb[0].mxu0
        %v1580 = vadd.f32 %v1508, %v1579
        %v1581 = vpop.f32.mrb[0].mxu0
        %1582 = vdwg.mxu0
        %v1583 = vmax.f32 %v1580, 0.0
        %v1584 = vand.u32 2147483647, %v1580
        %v1585 = vsub.f32 0.0, %v1584
        %v1586 = vmul.f32 %v1585, 1.442695
        %v1587 = vpow.pop %v1586
        %v1588 = vadd.f32 %v1587, 1.0
        %v1589 = vsub.f32 %v1588, 1.0
        %vm1590 = vcmp.eq.f32.partialorder %v1589, 0.0
        %v1591 = vlog2.pop %v1588
        %v1592 = vmul.f32 %v1591, 0.6931472
        %v1593 = vrcp.pop %v1589
        %v1594 = vmul.f32 %v1587, %v1593
        %v1595 = vmul.f32 %v1592, %v1594
        %v1596 = vsel %vm1590, %v1587, %v1595
        %v1597 = vadd.f32 %v1583, %v1596
        %v1598 = vld [vmem:[%s21] sm:$0xff]
        %v1599 = vld [vmem:[%s21 + $0x8] sm:$0xff]
        %v1600 = vld [vmem:[%s21 + $0x10] sm:$0xff]
        %v1601 = vld [vmem:[%s21 + $0x18] sm:$0xff]
        %v1602 = vld [vmem:[%s23] sm:$0x1]
        %v1604 = vlaneseq
        %v1605 = vshrl.u32 %v1604, 7
        %v1606 = vsub.s32 0, %v1605
        %v1607 = vrot.slane %v1602, %v1606
        %vm1609 = vcmask 261120
        %v1611 = vsel %vm1609, %v1597, 0
        %1613 = vmatprep.subr.mxu0 0.0
        %1614 = vmatpush1.msra.mxu0 %v1598
        %1615 = vmatprep.subr.mxu0 0.0
        %1616 = vmatpush1.msra.mxu0 %v1599
        %1617 = vmatprep.subr.mxu0 0.0
        %1618 = vmatpush1.msra.mxu0 %v1600
        %1619 = vmatprep.subr.mxu0 0.0
        %1620 = vmatpush1.msra.mxu0 %v1601
        %1621 = vmatprep.subr.mxu0 0.0
        %1622 = vmatpush1.msra.mxu0 0.0
        %1623 = vmatprep.subr.mxu0 0.0
        %1624 = vmatpush1.msra.mxu0 0.0
        %1625 = vmatprep.subr.mxu0 0.0
        %1626 = vmatpush1.msra.mxu0 0.0
        %1627 = vmatprep.subr.mxu0 0.0
        %1628 = vmatpush1.msra.mxu0 0.0
        %1629 = vmatprep.subr.mxu0 0.0
        %1630 = vmatpush1.msra.mxu0 0.0
        %1631 = vmatprep.subr.mxu0 0.0
        %1632 = vmatpush1.msra.mxu0 0.0
        %1633 = vmatprep.subr.mxu0 0.0
        %1634 = vmatpush1.msra.mxu0 0.0
        %1635 = vmatprep.subr.mxu0 0.0
        %1636 = vmatpush1.msra.mxu0 0.0
        %1637 = vmatprep.subr.mxu0 0.0
        %1638 = vmatpush1.msra.mxu0 0.0
        %1639 = vmatprep.subr.mxu0 0.0
        %1640 = vmatpush1.msra.mxu0 0.0
        %1641 = vmatprep.subr.mxu0 0.0
        %1642 = vmatpush1.msra.mxu0 0.0
        %1643 = vmatprep.subr.mxu0 0.0
        %1644 = vmatpush1.msra.mxu0 0.0
        %1645 = vmatprep.subr.mxu0 0.0
        %1646 = vmatpush1.msra.mxu0 0.0
        %1647 = vmatprep.subr.mxu0 0.0
        %1648 = vmatpush1.msra.mxu0 0.0
        %1649 = vmatprep.subr.mxu0 0.0
        %1650 = vmatpush1.msra.mxu0 0.0
        %1651 = vmatprep.subr.mxu0 0.0
        %1652 = vmatpush1.msra.mxu0 0.0
        %1653 = vmatprep.subr.mxu0 0.0
        %1654 = vmatpush1.msra.mxu0 0.0
        %1655 = vmatprep.subr.mxu0 0.0
        %1656 = vmatpush1.msra.mxu0 0.0
        %1657 = vmatprep.subr.mxu0 0.0
        %1658 = vmatpush1.msra.mxu0 0.0
        %1659 = vmatprep.subr.mxu0 0.0
        %1660 = vmatpush1.msra.mxu0 0.0
        %1661 = vmatprep.subr.mxu0 0.0
        %1662 = vmatpush1.msra.mxu0 0.0
        %1663 = vmatprep.subr.mxu0 0.0
        %1664 = vmatpush1.msra.mxu0 0.0
        %1665 = vmatprep.subr.mxu0 0.0
        %1666 = vmatpush1.msra.mxu0 0.0
        %1667 = vmatprep.subr.mxu0 0.0
        %1668 = vmatpush1.msra.mxu0 0.0
        %1669 = vmatprep.subr.mxu0 0.0
        %1670 = vmatpush1.msra.mxu0 0.0
        %1671 = vmatprep.subr.mxu0 0.0
        %1672 = vmatpush1.msra.mxu0 0.0
        %1673 = vmatprep.subr.mxu0 0.0
        %1674 = vmatpush1.msra.mxu0 0.0
        %1675 = vmatprep.subr.mxu0 0.0
        %1676 = vmatpush1.msra.mxu0 0.0
        %1677 = vmatprep.mubr.f32.mxu0 0.0
        %1678 = vmatmul.mubr.f32.gmra.mrb[0].mxu0 %v1611
        %v1679 = vpop.f32.mrb[0].mxu0
        %v1680 = vadd.f32 %v1607, %v1679
        %v1681 = vpop.f32.mrb[0].mxu0
        %1682 = vdwg.mxu0
        %v1683 = vmax.f32 %v1680, 0.0
        %v1684 = vand.u32 2147483647, %v1680
        %v1685 = vsub.f32 0.0, %v1684
        %v1686 = vmul.f32 %v1685, 1.442695
        %v1687 = vpow.pop %v1686
        %v1688 = vadd.f32 %v1687, 1.0
        %v1689 = vsub.f32 %v1688, 1.0
        %vm1690 = vcmp.eq.f32.partialorder %v1689, 0.0
        %v1691 = vlog2.pop %v1688
        %v1692 = vmul.f32 %v1691, 0.6931472
        %v1693 = vrcp.pop %v1689
        %v1694 = vmul.f32 %v1687, %v1693
        %v1695 = vmul.f32 %v1692, %v1694
        %v1696 = vsel %vm1690, %v1687, %v1695
        %v1697 = vadd.f32 %v1683, %v1696
        %v1698 = vadd.f32 %v1597, %v1697
        %v1699 = vld [vmem:[%s3] sm:$0xff]
        %v1700 = vld [vmem:[%s3 + $0x8] sm:$0xff]
        %v1701 = vld [vmem:[%s3 + $0x10] sm:$0xff]
        %v1702 = vld [vmem:[%s3 + $0x18] sm:$0xff]
        %v1703 = vld [vmem:[%s3 + $0x20] sm:$0xff]
        %v1704 = vld [vmem:[%s3 + $0x28] sm:$0xff]
        %v1705 = vld [vmem:[%s3 + $0x30] sm:$0xff]
        %v1706 = vld [vmem:[%s3 + $0x38] sm:$0xff]
        %v1707 = vld [vmem:[%s3 + $0x40] sm:$0xff]
        %v1708 = vld [vmem:[%s3 + $0x48] sm:$0xff]
        %v1709 = vld [vmem:[%s3 + $0x50] sm:$0xff]
        %v1710 = vld [vmem:[%s3 + $0x58] sm:$0xff]
        %v1711 = vld [vmem:[%s3 + $0x60] sm:$0xff]
        %v1712 = vld [vmem:[%s3 + $0x68] sm:$0xff]
        %v1713 = vld [vmem:[%s3 + $0x70] sm:$0xff]
        %v1714 = vld [vmem:[%s3 + $0x78] sm:$0xff]
        %v1715 = vld [vmem:[%s5] sm:$0xff]
        %v1716 = vld [vmem:[%s5 + $0x8] sm:$0xff]
        %v1717 = vld [vmem:[%s5 + $0x10] sm:$0xff]
        %v1718 = vld [vmem:[%s5 + $0x18] sm:$0xff]
        %v1720 = vsel %vm1609, %v1715, 0
        %v1723 = vsel %vm1609, %v1716, 0
        %v1726 = vsel %vm1609, %v1717, 0
        %v1729 = vsel %vm1609, %v1718, 0
        %v1732 = vsel %vm1609, %v1699, 0
        %v1735 = vsel %vm1609, %v1700, 0
        %v1738 = vsel %vm1609, %v1701, 0
        %v1741 = vsel %vm1609, %v1702, 0
        %v1744 = vsel %vm1609, %v1703, 0
        %v1747 = vsel %vm1609, %v1704, 0
        %v1750 = vsel %vm1609, %v1705, 0
        %v1753 = vsel %vm1609, %v1706, 0
        %v1756 = vsel %vm1609, %v1707, 0
        %v1759 = vsel %vm1609, %v1708, 0
        %v1762 = vsel %vm1609, %v1709, 0
        %v1765 = vsel %vm1609, %v1710, 0
        %v1768 = vsel %vm1609, %v1711, 0
        %v1771 = vsel %vm1609, %v1712, 0
        %v1774 = vsel %vm1609, %v1713, 0
        %v1777 = vsel %vm1609, %v1714, 0
        %1779 = vmatprep.subr.mxu0 0.0
        %1780 = vmatpush1.xpose.msra.mxu0 %v1732
        %1781 = vmatprep.subr.mxu0 0.0
        %1782 = vmatpush1.xpose.msra.mxu0 %v1735
        %1783 = vmatprep.subr.mxu0 0.0
        %1784 = vmatpush1.xpose.msra.mxu0 %v1738
        %1785 = vmatprep.subr.mxu0 0.0
        %1786 = vmatpush1.xpose.msra.mxu0 %v1741
        %1787 = vmatprep.subr.mxu0 0.0
        %1788 = vmatpush1.xpose.msra.mxu0 %v1744
        %1789 = vmatprep.subr.mxu0 0.0
        %1790 = vmatpush1.xpose.msra.mxu0 %v1747
        %1791 = vmatprep.subr.mxu0 0.0
        %1792 = vmatpush1.xpose.msra.mxu0 %v1750
        %1793 = vmatprep.subr.mxu0 0.0
        %1794 = vmatpush1.xpose.msra.mxu0 %v1753
        %1795 = vmatprep.subr.mxu0 0.0
        %1796 = vmatpush1.xpose.msra.mxu0 %v1756
        %1797 = vmatprep.subr.mxu0 0.0
        %1798 = vmatpush1.xpose.msra.mxu0 %v1759
        %1799 = vmatprep.subr.mxu0 0.0
        %1800 = vmatpush1.xpose.msra.mxu0 %v1762
        %1801 = vmatprep.subr.mxu0 0.0
        %1802 = vmatpush1.xpose.msra.mxu0 %v1765
        %1803 = vmatprep.subr.mxu0 0.0
        %1804 = vmatpush1.xpose.msra.mxu0 %v1768
        %1805 = vmatprep.subr.mxu0 0.0
        %1806 = vmatpush1.xpose.msra.mxu0 %v1771
        %1807 = vmatprep.subr.mxu0 0.0
        %1808 = vmatpush1.xpose.msra.mxu0 %v1774
        %1809 = vmatprep.subr.mxu0 0.0
        %1810 = vmatpush1.xpose.msra.mxu0 %v1777
        %1811 = vmatprep.subr.mxu0 0.0
        %1812 = vmatpush1.xpose.msra.mxu0 0.0
        %1813 = vmatprep.subr.mxu0 0.0
        %1814 = vmatpush1.xpose.msra.mxu0 0.0
        %1815 = vmatprep.subr.mxu0 0.0
        %1816 = vmatpush1.xpose.msra.mxu0 0.0
        %1817 = vmatprep.subr.mxu0 0.0
        %1818 = vmatpush1.xpose.msra.mxu0 0.0
        %1819 = vmatprep.subr.mxu0 0.0
        %1820 = vmatpush1.xpose.msra.mxu0 0.0
        %1821 = vmatprep.subr.mxu0 0.0
        %1822 = vmatpush1.xpose.msra.mxu0 0.0
        %1823 = vmatprep.subr.mxu0 0.0
        %1824 = vmatpush1.xpose.msra.mxu0 0.0
        %1825 = vmatprep.subr.mxu0 0.0
        %1826 = vmatpush1.xpose.msra.mxu0 0.0
        %1827 = vmatprep.subr.mxu0 0.0
        %1828 = vmatpush1.xpose.msra.mxu0 0.0
        %1829 = vmatprep.subr.mxu0 0.0
        %1830 = vmatpush1.xpose.msra.mxu0 0.0
        %1831 = vmatprep.subr.mxu0 0.0
        %1832 = vmatpush1.xpose.msra.mxu0 0.0
        %1833 = vmatprep.subr.mxu0 0.0
        %1834 = vmatpush1.xpose.msra.mxu0 0.0
        %1835 = vmatprep.subr.mxu0 0.0
        %1836 = vmatpush1.xpose.msra.mxu0 0.0
        %1837 = vmatprep.subr.mxu0 0.0
        %1838 = vmatpush1.xpose.msra.mxu0 0.0
        %1839 = vmatprep.subr.mxu0 0.0
        %1840 = vmatpush1.xpose.msra.mxu0 0.0
        %1841 = vmatprep.subr.mxu0 0.0
        %1842 = vmatpush1.xpose.msra.mxu0 0.0
        %1843 = vmatprep.mubr.f32.mxu0 0.0
        %1844 = vmatmul.mubr.f32.gmra.mrb[0].mxu0 %v1720
        %v1845 = vpop.f32.mrb[0].mxu0
        %v1846 = vadd.f32 0.0, %v1845
        %v1847 = vpop.f32.mrb[0].mxu0
        %1848 = vmatprep.mubr.f32.mxu0 0.0
        %1849 = vmatmul.mubr.f32.gmra.mrb[0].mxu0 %v1723
        %v1850 = vpop.f32.mrb[0].mxu0
        %v1851 = vadd.f32 0.0, %v1850
        %v1852 = vpop.f32.mrb[0].mxu0
        %1853 = vmatprep.mubr.f32.mxu0 0.0
        %1854 = vmatmul.mubr.f32.gmra.mrb[0].mxu0 %v1726
        %v1855 = vpop.f32.mrb[0].mxu0
        %v1856 = vadd.f32 0.0, %v1855
        %v1857 = vpop.f32.mrb[0].mxu0
        %1858 = vmatprep.mubr.f32.mxu0 0.0
        %1859 = vmatmul.mubr.f32.gmra.mrb[0].mxu0 %v1729
        %v1860 = vpop.f32.mrb[0].mxu0
        %v1861 = vadd.f32 0.0, %v1860
        %v1862 = vpop.f32.mrb[0].mxu0
        %1863 = vdwg.mxu0
        %1864 = vmax.xlane.f32.xlu0 %v1846
        %v1865 = vpop.xlane.xlu0 %1864
        %1866 = vmax.xlane.f32.xlu0 %v1851
        %v1867 = vpop.xlane.xlu0 %1866
        %1868 = vmax.xlane.f32.xlu0 %v1856
        %v1869 = vpop.xlane.xlu0 %1868
        %1870 = vmax.xlane.f32.xlu0 %v1861
        %v1871 = vpop.xlane.xlu0 %1870
        %v1872 = vsub.f32 %v1846, %v1865
        %v1873 = vsub.f32 %v1851, %v1867
        %v1874 = vsub.f32 %v1856, %v1869
        %v1875 = vsub.f32 %v1861, %v1871
        %v1876 = vmul.f32 %v1872, 1.442695
        %v1877 = vpow.pop %v1876
        %v1878 = vmul.f32 %v1873, 1.442695
        %v1879 = vpow.pop %v1878
        %v1880 = vmul.f32 %v1874, 1.442695
        %v1881 = vpow.pop %v1880
        %v1882 = vmul.f32 %v1875, 1.442695
        %v1883 = vpow.pop %v1882
        %1884 = vadd.xlane.f32.xlu0 %v1877
        %v1885 = vpop.xlane.xlu0 %1884
        %1886 = vadd.xlane.f32.xlu0 %v1879
        %v1887 = vpop.xlane.xlu0 %1886
        %1888 = vadd.xlane.f32.xlu0 %v1881
        %v1889 = vpop.xlane.xlu0 %1888
        %1890 = vadd.xlane.f32.xlu0 %v1883
        %v1891 = vpop.xlane.xlu0 %1890
        %v1892 = vrcp.pop %v1885
        %v1893 = vmul.f32 1.0, %v1892
        %v1894 = vrcp.pop %v1887
        %v1895 = vmul.f32 1.0, %v1894
        %v1896 = vrcp.pop %v1889
        %v1897 = vmul.f32 1.0, %v1896
        %v1898 = vrcp.pop %v1891
        %v1899 = vmul.f32 1.0, %v1898
        %v1900 = vmul.f32 %v1877, %v1893
        %v1901 = vmul.f32 %v1879, %v1895
        %v1902 = vmul.f32 %v1881, %v1897
        %v1903 = vmul.f32 %v1883, %v1899
        %v1904 = vld [vmem:[%s7] sm:$0xff]
        %v1905 = vld [vmem:[%s7 + $0x8] sm:$0xff]
        %v1907 = vsel %vm1609, %v1904, 0
        %v1910 = vsel %vm1609, %v1905, 0
        %1912 = vmatprep.subr.mxu0 0.0
        %1913 = vmatpush1.xpose.msra.mxu0 %v1720
        %1914 = vmatprep.subr.mxu0 0.0
        %1915 = vmatpush1.xpose.msra.mxu0 %v1723
        %1916 = vmatprep.subr.mxu0 0.0
        %1917 = vmatpush1.xpose.msra.mxu0 %v1726
        %1918 = vmatprep.subr.mxu0 0.0
        %1919 = vmatpush1.xpose.msra.mxu0 %v1729
        %1920 = vmatprep.subr.mxu0 0.0
        %1921 = vmatpush1.xpose.msra.mxu0 0.0
        %1922 = vmatprep.subr.mxu0 0.0
        %1923 = vmatpush1.xpose.msra.mxu0 0.0
        %1924 = vmatprep.subr.mxu0 0.0
        %1925 = vmatpush1.xpose.msra.mxu0 0.0
        %1926 = vmatprep.subr.mxu0 0.0
        %1927 = vmatpush1.xpose.msra.mxu0 0.0
        %1928 = vmatprep.subr.mxu0 0.0
        %1929 = vmatpush1.xpose.msra.mxu0 0.0
        %1930 = vmatprep.subr.mxu0 0.0
        %1931 = vmatpush1.xpose.msra.mxu0 0.0
        %1932 = vmatprep.subr.mxu0 0.0
        %1933 = vmatpush1.xpose.msra.mxu0 0.0
        %1934 = vmatprep.subr.mxu0 0.0
        %1935 = vmatpush1.xpose.msra.mxu0 0.0
        %1936 = vmatprep.subr.mxu0 0.0
        %1937 = vmatpush1.xpose.msra.mxu0 0.0
        %1938 = vmatprep.subr.mxu0 0.0
        %1939 = vmatpush1.xpose.msra.mxu0 0.0
        %1940 = vmatprep.subr.mxu0 0.0
        %1941 = vmatpush1.xpose.msra.mxu0 0.0
        %1942 = vmatprep.subr.mxu0 0.0
        %1943 = vmatpush1.xpose.msra.mxu0 0.0
        %1944 = vmatprep.subr.mxu0 0.0
        %1945 = vmatpush1.xpose.msra.mxu0 0.0
        %1946 = vmatprep.subr.mxu0 0.0
        %1947 = vmatpush1.xpose.msra.mxu0 0.0
        %1948 = vmatprep.subr.mxu0 0.0
        %1949 = vmatpush1.xpose.msra.mxu0 0.0
        %1950 = vmatprep.subr.mxu0 0.0
        %1951 = vmatpush1.xpose.msra.mxu0 0.0
        %1952 = vmatprep.subr.mxu0 0.0
        %1953 = vmatpush1.xpose.msra.mxu0 0.0
        %1954 = vmatprep.subr.mxu0 0.0
        %1955 = vmatpush1.xpose.msra.mxu0 0.0
        %1956 = vmatprep.subr.mxu0 0.0
        %1957 = vmatpush1.xpose.msra.mxu0 0.0
        %1958 = vmatprep.subr.mxu0 0.0
        %1959 = vmatpush1.xpose.msra.mxu0 0.0
        %1960 = vmatprep.subr.mxu0 0.0
        %1961 = vmatpush1.xpose.msra.mxu0 0.0
        %1962 = vmatprep.subr.mxu0 0.0
        %1963 = vmatpush1.xpose.msra.mxu0 0.0
        %1964 = vmatprep.subr.mxu0 0.0
        %1965 = vmatpush1.xpose.msra.mxu0 0.0
        %1966 = vmatprep.subr.mxu0 0.0
        %1967 = vmatpush1.xpose.msra.mxu0 0.0
        %1968 = vmatprep.subr.mxu0 0.0
        %1969 = vmatpush1.xpose.msra.mxu0 0.0
        %1970 = vmatprep.subr.mxu0 0.0
        %1971 = vmatpush1.xpose.msra.mxu0 0.0
        %1972 = vmatprep.subr.mxu0 0.0
        %1973 = vmatpush1.xpose.msra.mxu0 0.0
        %1974 = vmatprep.subr.mxu0 0.0
        %1975 = vmatpush1.xpose.msra.mxu0 0.0
        %1976 = vmatprep.mubr.f32.mxu0 0.0
        %1977 = vmatmul.mubr.f32.gmra.mrb[0].mxu0 %v1907
        %v1978 = vpop.f32.mrb[0].mxu0
        %v1979 = vadd.f32 0.0, %v1978
        %v1980 = vpop.f32.mrb[0].mxu0
        %1981 = vmatprep.mubr.f32.mxu0 0.0
        %1982 = vmatmul.mubr.f32.gmra.mrb[0].mxu0 %v1910
        %v1983 = vpop.f32.mrb[0].mxu0
        %v1984 = vadd.f32 0.0, %v1983
        %v1985 = vpop.f32.mrb[0].mxu0
        %1986 = vdwg.mxu0
        %v1987 = vsel %vm1609, %v1979, -inf
        %1988 = vmax.xlane.f32.xlu0 %v1987
        %v1989 = vpop.xlane.xlu0 %1988
        %v1990 = vsel %vm1609, %v1984, -inf
        %1991 = vmax.xlane.f32.xlu0 %v1990
        %v1992 = vpop.xlane.xlu0 %1991
        %v1993 = vsub.f32 %v1979, %v1989
        %v1994 = vsub.f32 %v1984, %v1992
        %v1995 = vmul.f32 %v1993, 1.442695
        %v1996 = vpow.pop %v1995
        %v1997 = vmul.f32 %v1994, 1.442695
        %v1998 = vpow.pop %v1997
        %v1999 = vsel %vm1609, %v1996, 0.0
        %2000 = vadd.xlane.f32.xlu0 %v1999
        %v2001 = vpop.xlane.xlu0 %2000
        %v2002 = vsel %vm1609, %v1998, 0.0
        %2003 = vadd.xlane.f32.xlu0 %v2002
        %v2004 = vpop.xlane.xlu0 %2003
        %v2005 = vrcp.pop %v2001
        %v2006 = vmul.f32 1.0, %v2005
        %v2007 = vrcp.pop %v2004
        %v2008 = vmul.f32 1.0, %v2007
        %v2009 = vmul.f32 %v1996, %v2006
        %v2010 = vmul.f32 %v1998, %v2008
        %v2011 = vld [vmem:[%s33] sm:$0xff]
        %v2012 = vld [vmem:[%s33 + $0x8] sm:$0xff]
        %v2013 = vld [vmem:[%s33 + $0x10] sm:$0xff]
        %v2014 = vld [vmem:[%s33 + $0x18] sm:$0xff]
        %v2015 = vld [vmem:[%s37] sm:$0xff]
        %v2016 = vld [vmem:[%s37 + $0x8] sm:$0xff]
        %v2017 = vld [vmem:[%s37 + $0x10] sm:$0xff]
        %v2018 = vld [vmem:[%s37 + $0x18] sm:$0xff]
        %v2019 = vld [vmem:[%s35] sm:$0x1]
        %v2021 = vlaneseq
        %v2022 = vshrl.u32 %v2021, 7
        %v2023 = vsub.s32 0, %v2022
        %v2024 = vrot.slane %v2019, %v2023
        %v2027 = vsel %vm1609, %v1698, 0
        %2029 = vmatprep.subr.mxu0 0.0
        %2030 = vmatpush1.msra.mxu0 %v2011
        %2031 = vmatprep.subr.mxu0 0.0
        %2032 = vmatpush1.msra.mxu0 %v2012
        %2033 = vmatprep.subr.mxu0 0.0
        %2034 = vmatpush1.msra.mxu0 %v2013
        %2035 = vmatprep.subr.mxu0 0.0
        %2036 = vmatpush1.msra.mxu0 %v2014
        %2037 = vmatprep.subr.mxu0 0.0
        %2038 = vmatpush1.msra.mxu0 0.0
        %2039 = vmatprep.subr.mxu0 0.0
        %2040 = vmatpush1.msra.mxu0 0.0
        %2041 = vmatprep.subr.mxu0 0.0
        %2042 = vmatpush1.msra.mxu0 0.0
        %2043 = vmatprep.subr.mxu0 0.0
        %2044 = vmatpush1.msra.mxu0 0.0
        %2045 = vmatprep.subr.mxu0 0.0
        %2046 = vmatpush1.msra.mxu0 0.0
        %2047 = vmatprep.subr.mxu0 0.0
        %2048 = vmatpush1.msra.mxu0 0.0
        %2049 = vmatprep.subr.mxu0 0.0
        %2050 = vmatpush1.msra.mxu0 0.0
        %2051 = vmatprep.subr.mxu0 0.0
        %2052 = vmatpush1.msra.mxu0 0.0
        %2053 = vmatprep.subr.mxu0 0.0
        %2054 = vmatpush1.msra.mxu0 0.0
        %2055 = vmatprep.subr.mxu0 0.0
        %2056 = vmatpush1.msra.mxu0 0.0
        %2057 = vmatprep.subr.mxu0 0.0
        %2058 = vmatpush1.msra.mxu0 0.0
        %2059 = vmatprep.subr.mxu0 0.0
        %2060 = vmatpush1.msra.mxu0 0.0
        %2061 = vmatprep.subr.mxu0 0.0
        %2062 = vmatpush1.msra.mxu0 0.0
        %2063 = vmatprep.subr.mxu0 0.0
        %2064 = vmatpush1.msra.mxu0 0.0
        %2065 = vmatprep.subr.mxu0 0.0
        %2066 = vmatpush1.msra.mxu0 0.0
        %2067 = vmatprep.subr.mxu0 0.0
        %2068 = vmatpush1.msra.mxu0 0.0
        %2069 = vmatprep.subr.mxu0 0.0
        %2070 = vmatpush1.msra.mxu0 0.0
        %2071 = vmatprep.subr.mxu0 0.0
        %2072 = vmatpush1.msra.mxu0 0.0
        %2073 = vmatprep.subr.mxu0 0.0
        %2074 = vmatpush1.msra.mxu0 0.0
        %2075 = vmatprep.subr.mxu0 0.0
        %2076 = vmatpush1.msra.mxu0 0.0
        %2077 = vmatprep.subr.mxu0 0.0
        %2078 = vmatpush1.msra.mxu0 0.0
        %2079 = vmatprep.subr.mxu0 0.0
        %2080 = vmatpush1.msra.mxu0 0.0
        %2081 = vmatprep.subr.mxu0 0.0
        %2082 = vmatpush1.msra.mxu0 0.0
        %2083 = vmatprep.subr.mxu0 0.0
        %2084 = vmatpush1.msra.mxu0 0.0
        %2085 = vmatprep.subr.mxu0 0.0
        %2086 = vmatpush1.msra.mxu0 0.0
        %2087 = vmatprep.subr.mxu0 0.0
        %2088 = vmatpush1.msra.mxu0 0.0
        %2089 = vmatprep.subr.mxu0 0.0
        %2090 = vmatpush1.msra.mxu0 0.0
        %2091 = vmatprep.subr.mxu0 0.0
        %2092 = vmatpush1.msra.mxu0 0.0
        %2093 = vmatprep.mubr.f32.mxu0 0.0
        %2094 = vmatmul.mubr.f32.gmra.mrb[0].mxu0 %v2027
        %v2095 = vpop.f32.mrb[0].mxu0
        %v2096 = vadd.f32 %v2024, %v2095
        %v2097 = vpop.f32.mrb[0].mxu0
        %2098 = vdwg.mxu0
        %v2099 = vmax.f32 %v2096, 0.0
        %v2100 = vand.u32 2147483647, %v2096
        %v2101 = vsub.f32 0.0, %v2100
        %v2102 = vmul.f32 %v2101, 1.442695
        %v2103 = vpow.pop %v2102
        %v2104 = vadd.f32 %v2103, 1.0
        %v2105 = vsub.f32 %v2104, 1.0
        %vm2106 = vcmp.eq.f32.partialorder %v2105, 0.0
        %v2107 = vlog2.pop %v2104
        %v2108 = vmul.f32 %v2107, 0.6931472
        %v2109 = vrcp.pop %v2105
        %v2110 = vmul.f32 %v2103, %v2109
        %v2111 = vmul.f32 %v2108, %v2110
        %v2112 = vsel %vm2106, %v2103, %v2111
        %v2113 = vadd.f32 %v2099, %v2112
        %v2114 = vmax.f32 %v2113, 0.1
        %v2115 = vmin.f32 %v2114, 100.0
        %v2116 = vld [vmem:[%s39] sm:$0x1]
        %v2118 = vlaneseq
        %v2119 = vshrl.u32 %v2118, 7
        %v2120 = vsub.s32 0, %v2119
        %v2121 = vrot.slane %v2116, %v2120
        %2123 = vmatprep.subr.mxu0 0.0
        %2124 = vmatpush1.msra.mxu0 %v2015
        %2125 = vmatprep.subr.mxu0 0.0
        %2126 = vmatpush1.msra.mxu0 %v2016
        %2127 = vmatprep.subr.mxu0 0.0
        %2128 = vmatpush1.msra.mxu0 %v2017
        %2129 = vmatprep.subr.mxu0 0.0
        %2130 = vmatpush1.msra.mxu0 %v2018
        %2131 = vmatprep.subr.mxu0 0.0
        %2132 = vmatpush1.msra.mxu0 0.0
        %2133 = vmatprep.subr.mxu0 0.0
        %2134 = vmatpush1.msra.mxu0 0.0
        %2135 = vmatprep.subr.mxu0 0.0
        %2136 = vmatpush1.msra.mxu0 0.0
        %2137 = vmatprep.subr.mxu0 0.0
        %2138 = vmatpush1.msra.mxu0 0.0
        %2139 = vmatprep.subr.mxu0 0.0
        %2140 = vmatpush1.msra.mxu0 0.0
        %2141 = vmatprep.subr.mxu0 0.0
        %2142 = vmatpush1.msra.mxu0 0.0
        %2143 = vmatprep.subr.mxu0 0.0
        %2144 = vmatpush1.msra.mxu0 0.0
        %2145 = vmatprep.subr.mxu0 0.0
        %2146 = vmatpush1.msra.mxu0 0.0
        %2147 = vmatprep.subr.mxu0 0.0
        %2148 = vmatpush1.msra.mxu0 0.0
        %2149 = vmatprep.subr.mxu0 0.0
        %2150 = vmatpush1.msra.mxu0 0.0
        %2151 = vmatprep.subr.mxu0 0.0
        %2152 = vmatpush1.msra.mxu0 0.0
        %2153 = vmatprep.subr.mxu0 0.0
        %2154 = vmatpush1.msra.mxu0 0.0
        %2155 = vmatprep.subr.mxu0 0.0
        %2156 = vmatpush1.msra.mxu0 0.0
        %2157 = vmatprep.subr.mxu0 0.0
        %2158 = vmatpush1.msra.mxu0 0.0
        %2159 = vmatprep.subr.mxu0 0.0
        %2160 = vmatpush1.msra.mxu0 0.0
        %2161 = vmatprep.subr.mxu0 0.0
        %2162 = vmatpush1.msra.mxu0 0.0
        %2163 = vmatprep.subr.mxu0 0.0
        %2164 = vmatpush1.msra.mxu0 0.0
        %2165 = vmatprep.subr.mxu0 0.0
        %2166 = vmatpush1.msra.mxu0 0.0
        %2167 = vmatprep.subr.mxu0 0.0
        %2168 = vmatpush1.msra.mxu0 0.0
        %2169 = vmatprep.subr.mxu0 0.0
        %2170 = vmatpush1.msra.mxu0 0.0
        %2171 = vmatprep.subr.mxu0 0.0
        %2172 = vmatpush1.msra.mxu0 0.0
        %2173 = vmatprep.subr.mxu0 0.0
        %2174 = vmatpush1.msra.mxu0 0.0
        %2175 = vmatprep.subr.mxu0 0.0
        %2176 = vmatpush1.msra.mxu0 0.0
        %2177 = vmatprep.subr.mxu0 0.0
        %2178 = vmatpush1.msra.mxu0 0.0
        %2179 = vmatprep.subr.mxu0 0.0
        %2180 = vmatpush1.msra.mxu0 0.0
        %2181 = vmatprep.subr.mxu0 0.0
        %2182 = vmatpush1.msra.mxu0 0.0
        %2183 = vmatprep.subr.mxu0 0.0
        %2184 = vmatpush1.msra.mxu0 0.0
        %2185 = vmatprep.subr.mxu0 0.0
        %2186 = vmatpush1.msra.mxu0 0.0
        %2187 = vmatprep.mubr.f32.mxu0 0.0
        %2188 = vmatmul.mubr.f32.gmra.mrb[0].mxu0 %v2027
        %v2189 = vpop.f32.mrb[0].mxu0
        %v2190 = vadd.f32 %v2121, %v2189
        %v2191 = vpop.f32.mrb[0].mxu0
        %2192 = vdwg.mxu0
        %v2193 = vmax.f32 %v2190, 0.0
        %v2194 = vand.u32 2147483647, %v2190
        %v2195 = vsub.f32 0.0, %v2194
        %v2196 = vmul.f32 %v2195, 1.442695
        %v2197 = vpow.pop %v2196
        %v2198 = vadd.f32 %v2197, 1.0
        %v2199 = vsub.f32 %v2198, 1.0
        %vm2200 = vcmp.eq.f32.partialorder %v2199, 0.0
        %v2201 = vlog2.pop %v2198
        %v2202 = vmul.f32 %v2201, 0.6931472
        %v2203 = vrcp.pop %v2199
        %v2204 = vmul.f32 %v2197, %v2203
        %v2205 = vmul.f32 %v2202, %v2204
        %v2206 = vsel %vm2200, %v2197, %v2205
        %v2207 = vadd.f32 %v2193, %v2206
        %v2208 = vmax.f32 %v2207, 1e-30
        %v2209 = vrcp.pop %v2115
        %v2210 = vmul.f32 1.0, %v2209
        %v2211 = vadd.f32 %v2210, 1.0
        %v2212 = vadd.f32 %v2211, 7.0
        %v2213 = vadd.f32 %v2211, 1.0
        %v2214 = vmul.f32 %v2211, %v2213
        %v2215 = vadd.f32 %v2211, 2.0
        %v2216 = vmul.f32 %v2214, %v2215
        %v2217 = vadd.f32 %v2211, 3.0
        %v2218 = vmul.f32 %v2216, %v2217
        %v2219 = vadd.f32 %v2211, 4.0
        %v2220 = vmul.f32 %v2218, %v2219
        %v2221 = vadd.f32 %v2211, 5.0
        %v2222 = vmul.f32 %v2220, %v2221
        %v2223 = vadd.f32 %v2211, 6.0
        %v2224 = vmul.f32 %v2222, %v2223
        %v2225 = vrcp.pop %v2212
        %v2226 = vmul.f32 1.0, %v2225
        %v2227 = vmul.f32 %v2226, %v2226
        %v2228 = vmul.f32 %v2227, 0.0007936508
        %v2229 = vsub.f32 0.0027777778, %v2228
        %v2230 = vmul.f32 %v2227, %v2229
        %v2231 = vsub.f32 0.083333336, %v2230
        %v2232 = vmul.f32 %v2226, %v2231
        %v2233 = vsub.f32 %v2212, 0.5
        %v2234 = vlog2.pop %v2212
        %v2235 = vmul.f32 %v2234, 0.6931472
        %v2236 = vmul.f32 %v2233, %v2235
        %v2237 = vsub.f32 %v2236, %v2212
        %v2238 = vadd.f32 %v2237, 0.9189385
        %v2239 = vadd.f32 %v2238, %v2232
        %v2240 = vlog2.pop %v2224
        %v2241 = vmul.f32 %v2240, 0.6931472
        %v2242 = vsub.f32 %v2239, %v2241
        %v2243 = vsub.f32 0.0, %v2242
        %v2244 = vmul.f32 %v2243, 1.442695
        %v2245 = vpow.pop %v2244
        %v2246 = vmul.f32 %v2208, %v2245
        %v2247 = vld [vmem:[%s1143] sm:$0xff]
        %v2248 = vld [vmem:[%s1143 + $0x8] sm:$0xff]
        %v2249 = vld [vmem:[%s1143 + $0x10] sm:$0xff]
        %v2250 = vld [vmem:[%s1143 + $0x18] sm:$0xff]
        %v2251 = vld [vmem:[%s1143 + $0x20] sm:$0xff]
        %v2252 = vld [vmem:[%s1143 + $0x28] sm:$0xff]
        %v2253 = vld [vmem:[%s1143 + $0x30] sm:$0xff]
        %v2254 = vld [vmem:[%s1143 + $0x38] sm:$0xff]
        %v2255 = vld [vmem:[%s1143 + $0x40] sm:$0xff]
        %v2256 = vld [vmem:[%s1143 + $0x48] sm:$0xff]
        %v2257 = vld [vmem:[%s1143 + $0x50] sm:$0xff]
        %v2258 = vld [vmem:[%s1143 + $0x58] sm:$0xff]
        %v2259 = vld [vmem:[%s1143 + $0x60] sm:$0xff]
        %v2260 = vld [vmem:[%s1143 + $0x68] sm:$0xff]
        %v2261 = vld [vmem:[%s1143 + $0x70] sm:$0xff]
        %v2262 = vld [vmem:[%s1143 + $0x78] sm:$0xff]
        %v2263 = vld [vmem:[%s1143 + $0x80] sm:$0xff]
        %v2264 = vld [vmem:[%s1143 + $0x88] sm:$0xff]
        %v2265 = vld [vmem:[%s1143 + $0x90] sm:$0xff]
        %v2266 = vld [vmem:[%s1143 + $0x98] sm:$0xff]
        %v2267 = vld [vmem:[%s1143 + $0xa0] sm:$0xff]
        %v2268 = vld [vmem:[%s1143 + $0xa8] sm:$0xff]
        %v2269 = vld [vmem:[%s1143 + $0xb0] sm:$0xff]
        %v2270 = vld [vmem:[%s1143 + $0xb8] sm:$0xff]
        %v2271 = vld [vmem:[%s1143 + $0xc0] sm:$0xff]
        %v2272 = vld [vmem:[%s1143 + $0xc8] sm:$0xff]
        %v2273 = vld [vmem:[%s1143 + $0xd0] sm:$0xff]
        %v2274 = vld [vmem:[%s1143 + $0xd8] sm:$0xff]
        %v2275 = vld [vmem:[%s1143 + $0xe0] sm:$0xff]
        %v2276 = vld [vmem:[%s1143 + $0xe8] sm:$0xff]
        %v2277 = vld [vmem:[%s1143 + $0xf0] sm:$0xff]
        %v2278 = vld [vmem:[%s1143 + $0xf8] sm:$0xff]
        %v2279 = vld [vmem:[%s1143 + $0x100] sm:$0xff]
        %v2280 = vld [vmem:[%s1143 + $0x108] sm:$0xff]
        %v2281 = vld [vmem:[%s1143 + $0x110] sm:$0xff]
        %v2282 = vld [vmem:[%s1143 + $0x118] sm:$0xff]
        %v2283 = vld [vmem:[%s1143 + $0x120] sm:$0xff]
        %v2284 = vld [vmem:[%s1143 + $0x128] sm:$0xff]
        %v2285 = vld [vmem:[%s1143 + $0x130] sm:$0xff]
        %v2286 = vld [vmem:[%s1143 + $0x138] sm:$0xff]
        %v2287 = vld [vmem:[%s1143 + $0x140] sm:$0xff]
        %v2288 = vld [vmem:[%s1143 + $0x148] sm:$0xff]
        %v2289 = vld [vmem:[%s1143 + $0x150] sm:$0xff]
        %v2290 = vld [vmem:[%s1143 + $0x158] sm:$0xff]
        %v2291 = vld [vmem:[%s1143 + $0x160] sm:$0xff]
        %v2292 = vld [vmem:[%s1143 + $0x168] sm:$0xff]
        %v2293 = vld [vmem:[%s1143 + $0x170] sm:$0xff]
        %v2294 = vld [vmem:[%s1143 + $0x178] sm:$0xff]
        %v2295 = vld [vmem:[%s1143 + $0x180] sm:$0xff]
        %v2296 = vld [vmem:[%s1143 + $0x188] sm:$0xff]
        %v2297 = vmul.f32 %v2247, %v2210
        %v2298 = vmul.f32 %v2248, %v2210
        %v2299 = vmul.f32 %v2249, %v2210
        %v2300 = vmul.f32 %v2250, %v2210
        %v2301 = vmul.f32 %v2251, %v2210
        %v2302 = vmul.f32 %v2252, %v2210
        %v2303 = vmul.f32 %v2253, %v2210
        %v2304 = vmul.f32 %v2254, %v2210
        %v2305 = vmul.f32 %v2255, %v2210
        %v2306 = vmul.f32 %v2256, %v2210
        %v2307 = vmul.f32 %v2257, %v2210
        %v2308 = vmul.f32 %v2258, %v2210
        %v2309 = vmul.f32 %v2259, %v2210
        %v2310 = vmul.f32 %v2260, %v2210
        %v2311 = vmul.f32 %v2261, %v2210
        %v2312 = vmul.f32 %v2262, %v2210
        %v2313 = vmul.f32 %v2263, %v2210
        %v2314 = vmul.f32 %v2264, %v2210
        %v2315 = vmul.f32 %v2265, %v2210
        %v2316 = vmul.f32 %v2266, %v2210
        %v2317 = vmul.f32 %v2267, %v2210
        %v2318 = vmul.f32 %v2268, %v2210
        %v2319 = vmul.f32 %v2269, %v2210
        %v2320 = vmul.f32 %v2270, %v2210
        %v2321 = vmul.f32 %v2271, %v2210
        %v2322 = vmul.f32 %v2272, %v2210
        %v2323 = vmul.f32 %v2273, %v2210
        %v2324 = vmul.f32 %v2274, %v2210
        %v2325 = vmul.f32 %v2275, %v2210
        %v2326 = vmul.f32 %v2276, %v2210
        %v2327 = vmul.f32 %v2277, %v2210
        %v2328 = vmul.f32 %v2278, %v2210
        %v2329 = vmul.f32 %v2279, %v2210
        %v2330 = vmul.f32 %v2280, %v2210
        %v2331 = vmul.f32 %v2281, %v2210
        %v2332 = vmul.f32 %v2282, %v2210
        %v2333 = vmul.f32 %v2283, %v2210
        %v2334 = vmul.f32 %v2284, %v2210
        %v2335 = vmul.f32 %v2285, %v2210
        %v2336 = vmul.f32 %v2286, %v2210
        %v2337 = vmul.f32 %v2287, %v2210
        %v2338 = vmul.f32 %v2288, %v2210
        %v2339 = vmul.f32 %v2289, %v2210
        %v2340 = vmul.f32 %v2290, %v2210
        %v2341 = vmul.f32 %v2291, %v2210
        %v2342 = vmul.f32 %v2292, %v2210
        %v2343 = vmul.f32 %v2293, %v2210
        %v2344 = vmul.f32 %v2294, %v2210
        %v2345 = vmul.f32 %v2295, %v2210
        %v2346 = vmul.f32 %v2296, %v2210
        %v2347 = vmul.f32 %v2297, 1.442695
        %v2348 = vpow.pop %v2347
        %v2349 = vmul.f32 %v2298, 1.442695
        %v2350 = vpow.pop %v2349
        %v2351 = vmul.f32 %v2299, 1.442695
        %v2352 = vpow.pop %v2351
        %v2353 = vmul.f32 %v2300, 1.442695
        %v2354 = vpow.pop %v2353
        %v2355 = vmul.f32 %v2301, 1.442695
        %v2356 = vpow.pop %v2355
        %v2357 = vmul.f32 %v2302, 1.442695
        %v2358 = vpow.pop %v2357
        %v2359 = vmul.f32 %v2303, 1.442695
        %v2360 = vpow.pop %v2359
        %v2361 = vmul.f32 %v2304, 1.442695
        %v2362 = vpow.pop %v2361
        %v2363 = vmul.f32 %v2305, 1.442695
        %v2364 = vpow.pop %v2363
        %v2365 = vmul.f32 %v2306, 1.442695
        %v2366 = vpow.pop %v2365
        %v2367 = vmul.f32 %v2307, 1.442695
        %v2368 = vpow.pop %v2367
        %v2369 = vmul.f32 %v2308, 1.442695
        %v2370 = vpow.pop %v2369
        %v2371 = vmul.f32 %v2309, 1.442695
        %v2372 = vpow.pop %v2371
        %v2373 = vmul.f32 %v2310, 1.442695
        %v2374 = vpow.pop %v2373
        %v2375 = vmul.f32 %v2311, 1.442695
        %v2376 = vpow.pop %v2375
        %v2377 = vmul.f32 %v2312, 1.442695
        %v2378 = vpow.pop %v2377
        %v2379 = vmul.f32 %v2313, 1.442695
        %v2380 = vpow.pop %v2379
        %v2381 = vmul.f32 %v2314, 1.442695
        %v2382 = vpow.pop %v2381
        %v2383 = vmul.f32 %v2315, 1.442695
        %v2384 = vpow.pop %v2383
        %v2385 = vmul.f32 %v2316, 1.442695
        %v2386 = vpow.pop %v2385
        %v2387 = vmul.f32 %v2317, 1.442695
        %v2388 = vpow.pop %v2387
        %v2389 = vmul.f32 %v2318, 1.442695
        %v2390 = vpow.pop %v2389
        %v2391 = vmul.f32 %v2319, 1.442695
        %v2392 = vpow.pop %v2391
        %v2393 = vmul.f32 %v2320, 1.442695
        %v2394 = vpow.pop %v2393
        %v2395 = vmul.f32 %v2321, 1.442695
        %v2396 = vpow.pop %v2395
        %v2397 = vmul.f32 %v2322, 1.442695
        %v2398 = vpow.pop %v2397
        %v2399 = vmul.f32 %v2323, 1.442695
        %v2400 = vpow.pop %v2399
        %v2401 = vmul.f32 %v2324, 1.442695
        %v2402 = vpow.pop %v2401
        %v2403 = vmul.f32 %v2325, 1.442695
        %v2404 = vpow.pop %v2403
        %v2405 = vmul.f32 %v2326, 1.442695
        %v2406 = vpow.pop %v2405
        %v2407 = vmul.f32 %v2327, 1.442695
        %v2408 = vpow.pop %v2407
        %v2409 = vmul.f32 %v2328, 1.442695
        %v2410 = vpow.pop %v2409
        %v2411 = vmul.f32 %v2329, 1.442695
        %v2412 = vpow.pop %v2411
        %v2413 = vmul.f32 %v2330, 1.442695
        %v2414 = vpow.pop %v2413
        %v2415 = vmul.f32 %v2331, 1.442695
        %v2416 = vpow.pop %v2415
        %v2417 = vmul.f32 %v2332, 1.442695
        %v2418 = vpow.pop %v2417
        %v2419 = vmul.f32 %v2333, 1.442695
        %v2420 = vpow.pop %v2419
        %v2421 = vmul.f32 %v2334, 1.442695
        %v2422 = vpow.pop %v2421
        %v2423 = vmul.f32 %v2335, 1.442695
        %v2424 = vpow.pop %v2423
        %v2425 = vmul.f32 %v2336, 1.442695
        %v2426 = vpow.pop %v2425
        %v2427 = vmul.f32 %v2337, 1.442695
        %v2428 = vpow.pop %v2427
        %v2429 = vmul.f32 %v2338, 1.442695
        %v2430 = vpow.pop %v2429
        %v2431 = vmul.f32 %v2339, 1.442695
        %v2432 = vpow.pop %v2431
        %v2433 = vmul.f32 %v2340, 1.442695
        %v2434 = vpow.pop %v2433
        %v2435 = vmul.f32 %v2341, 1.442695
        %v2436 = vpow.pop %v2435
        %v2437 = vmul.f32 %v2342, 1.442695
        %v2438 = vpow.pop %v2437
        %v2439 = vmul.f32 %v2343, 1.442695
        %v2440 = vpow.pop %v2439
        %v2441 = vmul.f32 %v2344, 1.442695
        %v2442 = vpow.pop %v2441
        %v2443 = vmul.f32 %v2345, 1.442695
        %v2444 = vpow.pop %v2443
        %v2445 = vmul.f32 %v2346, 1.442695
        %v2446 = vpow.pop %v2445
        %vm2447 = vcmask 130048
        %v2448 = vsel %vm2447, %v2348, 0.0
        %v2449 = vsel %vm2447, %v2350, 0.0
        %v2450 = vadd.f32 %v2448, %v2449
        %v2451 = vsel %vm2447, %v2352, 0.0
        %v2452 = vadd.f32 %v2450, %v2451
        %v2453 = vsel %vm2447, %v2354, 0.0
        %v2454 = vadd.f32 %v2452, %v2453
        %v2455 = vsel %vm2447, %v2356, 0.0
        %v2456 = vadd.f32 %v2454, %v2455
        %v2457 = vsel %vm2447, %v2358, 0.0
        %v2458 = vadd.f32 %v2456, %v2457
        %v2459 = vsel %vm2447, %v2360, 0.0
        %v2460 = vadd.f32 %v2458, %v2459
        %v2461 = vsel %vm2447, %v2362, 0.0
        %v2462 = vadd.f32 %v2460, %v2461
        %v2463 = vsel %vm2447, %v2364, 0.0
        %v2464 = vadd.f32 %v2462, %v2463
        %v2465 = vsel %vm2447, %v2366, 0.0
        %v2466 = vadd.f32 %v2464, %v2465
        %v2467 = vsel %vm2447, %v2368, 0.0
        %v2468 = vadd.f32 %v2466, %v2467
        %v2469 = vsel %vm2447, %v2370, 0.0
        %v2470 = vadd.f32 %v2468, %v2469
        %v2471 = vsel %vm2447, %v2372, 0.0
        %v2472 = vadd.f32 %v2470, %v2471
        %v2473 = vsel %vm2447, %v2374, 0.0
        %v2474 = vadd.f32 %v2472, %v2473
        %v2475 = vsel %vm2447, %v2376, 0.0
        %v2476 = vadd.f32 %v2474, %v2475
        %v2477 = vsel %vm2447, %v2378, 0.0
        %v2478 = vadd.f32 %v2476, %v2477
        %v2479 = vsel %vm2447, %v2380, 0.0
        %v2480 = vadd.f32 %v2478, %v2479
        %v2481 = vsel %vm2447, %v2382, 0.0
        %v2482 = vadd.f32 %v2480, %v2481
        %v2483 = vsel %vm2447, %v2384, 0.0
        %v2484 = vadd.f32 %v2482, %v2483
        %v2485 = vsel %vm2447, %v2386, 0.0
        %v2486 = vadd.f32 %v2484, %v2485
        %v2487 = vsel %vm2447, %v2388, 0.0
        %v2488 = vadd.f32 %v2486, %v2487
        %v2489 = vsel %vm2447, %v2390, 0.0
        %v2490 = vadd.f32 %v2488, %v2489
        %v2491 = vsel %vm2447, %v2392, 0.0
        %v2492 = vadd.f32 %v2490, %v2491
        %v2493 = vsel %vm2447, %v2394, 0.0
        %v2494 = vadd.f32 %v2492, %v2493
        %v2495 = vsel %vm2447, %v2396, 0.0
        %v2496 = vadd.f32 %v2494, %v2495
        %v2497 = vsel %vm2447, %v2398, 0.0
        %v2498 = vadd.f32 %v2496, %v2497
        %v2499 = vsel %vm2447, %v2400, 0.0
        %v2500 = vadd.f32 %v2498, %v2499
        %v2501 = vsel %vm2447, %v2402, 0.0
        %v2502 = vadd.f32 %v2500, %v2501
        %v2503 = vsel %vm2447, %v2404, 0.0
        %v2504 = vadd.f32 %v2502, %v2503
        %v2505 = vsel %vm2447, %v2406, 0.0
        %v2506 = vadd.f32 %v2504, %v2505
        %v2507 = vsel %vm2447, %v2408, 0.0
        %v2508 = vadd.f32 %v2506, %v2507
        %v2509 = vsel %vm2447, %v2410, 0.0
        %v2510 = vadd.f32 %v2508, %v2509
        %v2511 = vsel %vm2447, %v2412, 0.0
        %v2512 = vadd.f32 %v2510, %v2511
        %v2513 = vsel %vm2447, %v2414, 0.0
        %v2514 = vadd.f32 %v2512, %v2513
        %v2515 = vsel %vm2447, %v2416, 0.0
        %v2516 = vadd.f32 %v2514, %v2515
        %v2517 = vsel %vm2447, %v2418, 0.0
        %v2518 = vadd.f32 %v2516, %v2517
        %v2519 = vsel %vm2447, %v2420, 0.0
        %v2520 = vadd.f32 %v2518, %v2519
        %v2521 = vsel %vm2447, %v2422, 0.0
        %v2522 = vadd.f32 %v2520, %v2521
        %v2523 = vsel %vm2447, %v2424, 0.0
        %v2524 = vadd.f32 %v2522, %v2523
        %v2525 = vsel %vm2447, %v2426, 0.0
        %v2526 = vadd.f32 %v2524, %v2525
        %v2527 = vsel %vm2447, %v2428, 0.0
        %v2528 = vadd.f32 %v2526, %v2527
        %v2529 = vsel %vm2447, %v2430, 0.0
        %v2530 = vadd.f32 %v2528, %v2529
        %v2531 = vsel %vm2447, %v2432, 0.0
        %v2532 = vadd.f32 %v2530, %v2531
        %v2533 = vsel %vm2447, %v2434, 0.0
        %v2534 = vadd.f32 %v2532, %v2533
        %v2535 = vsel %vm2447, %v2436, 0.0
        %v2536 = vadd.f32 %v2534, %v2535
        %v2537 = vsel %vm2447, %v2438, 0.0
        %v2538 = vadd.f32 %v2536, %v2537
        %v2539 = vsel %vm2447, %v2440, 0.0
        %v2540 = vadd.f32 %v2538, %v2539
        %v2541 = vsel %vm2447, %v2442, 0.0
        %v2542 = vadd.f32 %v2540, %v2541
        %v2543 = vsel %vm2447, %v2444, 0.0
        %v2544 = vadd.f32 %v2542, %v2543
        %v2545 = vsel %vm2447, %v2446, 0.0
        %v2546 = vadd.f32 %v2544, %v2545
        %v2547 = vrcp.pop 50.0
        %v2548 = vmul.f32 %v2546, %v2547
        %v2549 = vmul.f32 %v2246, %v2548
        %v2550 = vmax.f32 %v2549, 1e-30
        %v2551 = vmin.f32 %v2550, 1000.0
        %v2553 = vsel %vm2447, %v2551, 0
        %2555 = vmatprep.subr.mxu0 0.0
        %2556 = vmatpush1.msra.mxu0 %v2009
        %2557 = vmatprep.subr.mxu0 0.0
        %2558 = vmatpush1.msra.mxu0 %v2010
        %2559 = vmatprep.subr.mxu0 0.0
        %2560 = vmatpush1.msra.mxu0 0.0
        %2561 = vmatprep.subr.mxu0 0.0
        %2562 = vmatpush1.msra.mxu0 0.0
        %2563 = vmatprep.subr.mxu0 0.0
        %2564 = vmatpush1.msra.mxu0 0.0
        %2565 = vmatprep.subr.mxu0 0.0
        %2566 = vmatpush1.msra.mxu0 0.0
        %2567 = vmatprep.subr.mxu0 0.0
        %2568 = vmatpush1.msra.mxu0 0.0
        %2569 = vmatprep.subr.mxu0 0.0
        %2570 = vmatpush1.msra.mxu0 0.0
        %2571 = vmatprep.subr.mxu0 0.0
        %2572 = vmatpush1.msra.mxu0 0.0
        %2573 = vmatprep.subr.mxu0 0.0
        %2574 = vmatpush1.msra.mxu0 0.0
        %2575 = vmatprep.subr.mxu0 0.0
        %2576 = vmatpush1.msra.mxu0 0.0
        %2577 = vmatprep.subr.mxu0 0.0
        %2578 = vmatpush1.msra.mxu0 0.0
        %2579 = vmatprep.subr.mxu0 0.0
        %2580 = vmatpush1.msra.mxu0 0.0
        %2581 = vmatprep.subr.mxu0 0.0
        %2582 = vmatpush1.msra.mxu0 0.0
        %2583 = vmatprep.subr.mxu0 0.0
        %2584 = vmatpush1.msra.mxu0 0.0
        %2585 = vmatprep.subr.mxu0 0.0
        %2586 = vmatpush1.msra.mxu0 0.0
        %2587 = vmatprep.subr.mxu0 0.0
        %2588 = vmatpush1.msra.mxu0 0.0
        %2589 = vmatprep.subr.mxu0 0.0
        %2590 = vmatpush1.msra.mxu0 0.0
        %2591 = vmatprep.subr.mxu0 0.0
        %2592 = vmatpush1.msra.mxu0 0.0
        %2593 = vmatprep.subr.mxu0 0.0
        %2594 = vmatpush1.msra.mxu0 0.0
        %2595 = vmatprep.subr.mxu0 0.0
        %2596 = vmatpush1.msra.mxu0 0.0
        %2597 = vmatprep.subr.mxu0 0.0
        %2598 = vmatpush1.msra.mxu0 0.0
        %2599 = vmatprep.subr.mxu0 0.0
        %2600 = vmatpush1.msra.mxu0 0.0
        %2601 = vmatprep.subr.mxu0 0.0
        %2602 = vmatpush1.msra.mxu0 0.0
        %2603 = vmatprep.subr.mxu0 0.0
        %2604 = vmatpush1.msra.mxu0 0.0
        %2605 = vmatprep.subr.mxu0 0.0
        %2606 = vmatpush1.msra.mxu0 0.0
        %2607 = vmatprep.subr.mxu0 0.0
        %2608 = vmatpush1.msra.mxu0 0.0
        %2609 = vmatprep.subr.mxu0 0.0
        %2610 = vmatpush1.msra.mxu0 0.0
        %2611 = vmatprep.subr.mxu0 0.0
        %2612 = vmatpush1.msra.mxu0 0.0
        %2613 = vmatprep.subr.mxu0 0.0
        %2614 = vmatpush1.msra.mxu0 0.0
        %2615 = vmatprep.subr.mxu0 0.0
        %2616 = vmatpush1.msra.mxu0 0.0
        %2617 = vmatprep.subr.mxu0 0.0
        %2618 = vmatpush1.msra.mxu0 0.0
        %2619 = vmatprep.mubr.f32.mxu0 0.0
        %2620 = vmatmul.mubr.f32.gmra.mrb[0].mxu0 %v2553
        %v2621 = vpop.f32.mrb[0].mxu0
        %v2622 = vadd.f32 0.0, %v2621
        %v2623 = vpop.f32.mrb[0].mxu0
        %2624 = vdwg.mxu0
        %2625 = vst.msk [vmem:[%s1268] sm:$0xff] %vm2447, %v2115
        %2626 = vst.msk [vmem:[%s1276] sm:$0xff] %vm2447, %v2246
        %2627 = vst.msk [vmem:[%s1246] sm:$0xff] %vm2447, %v2551
        %2628 = vst.msk [vmem:[%s1280] sm:$0xff] %vm1609, %v2622
        %v2629 = vld [vmem:[%s25] sm:$0xff]
        %v2630 = vld [vmem:[%s25 + $0x8] sm:$0xff]
        %v2631 = vld [vmem:[%s25 + $0x10] sm:$0xff]
        %v2632 = vld [vmem:[%s25 + $0x18] sm:$0xff]
        %v2633 = vld [vmem:[%s25 + $0x20] sm:$0xff]
        %v2634 = vld [vmem:[%s25 + $0x28] sm:$0xff]
        %v2635 = vld [vmem:[%s25 + $0x30] sm:$0xff]
        %v2636 = vld [vmem:[%s25 + $0x38] sm:$0xff]
        %v2637 = vld [vmem:[%s25 + $0x40] sm:$0xff]
        %v2638 = vld [vmem:[%s25 + $0x48] sm:$0xff]
        %v2639 = vld [vmem:[%s25 + $0x50] sm:$0xff]
        %v2640 = vld [vmem:[%s25 + $0x58] sm:$0xff]
        %v2642 = vsel %vm1609, %v2622, 0
        %2644 = vmatprep.subr.mxu0 0.0
        %2645 = vmatpush1.msra.mxu0 %v2637
        %2646 = vmatprep.subr.mxu0 0.0
        %2647 = vmatpush1.msra.mxu0 %v2638
        %2648 = vmatprep.subr.mxu0 0.0
        %2649 = vmatpush1.msra.mxu0 %v2639
        %2650 = vmatprep.subr.mxu0 0.0
        %2651 = vmatpush1.msra.mxu0 %v2640
        %2652 = vmatprep.subr.mxu0 0.0
        %2653 = vmatpush1.msra.mxu0 0.0
        %2654 = vmatprep.subr.mxu0 0.0
        %2655 = vmatpush1.msra.mxu0 0.0
        %2656 = vmatprep.subr.mxu0 0.0
        %2657 = vmatpush1.msra.mxu0 0.0
        %2658 = vmatprep.subr.mxu0 0.0
        %2659 = vmatpush1.msra.mxu0 0.0
        %2660 = vmatprep.subr.mxu0 0.0
        %2661 = vmatpush1.msra.mxu0 0.0
        %2662 = vmatprep.subr.mxu0 0.0
        %2663 = vmatpush1.msra.mxu0 0.0
        %2664 = vmatprep.subr.mxu0 0.0
        %2665 = vmatpush1.msra.mxu0 0.0
        %2666 = vmatprep.subr.mxu0 0.0
        %2667 = vmatpush1.msra.mxu0 0.0
        %2668 = vmatprep.subr.mxu0 0.0
        %2669 = vmatpush1.msra.mxu0 0.0
        %2670 = vmatprep.subr.mxu0 0.0
        %2671 = vmatpush1.msra.mxu0 0.0
        %2672 = vmatprep.subr.mxu0 0.0
        %2673 = vmatpush1.msra.mxu0 0.0
        %2674 = vmatprep.subr.mxu0 0.0
        %2675 = vmatpush1.msra.mxu0 0.0
        %2676 = vmatprep.subr.mxu0 0.0
        %2677 = vmatpush1.msra.mxu0 0.0
        %2678 = vmatprep.subr.mxu0 0.0
        %2679 = vmatpush1.msra.mxu0 0.0
        %2680 = vmatprep.subr.mxu0 0.0
        %2681 = vmatpush1.msra.mxu0 0.0
        %2682 = vmatprep.subr.mxu0 0.0
        %2683 = vmatpush1.msra.mxu0 0.0
        %2684 = vmatprep.subr.mxu0 0.0
        %2685 = vmatpush1.msra.mxu0 0.0
        %2686 = vmatprep.subr.mxu0 0.0
        %2687 = vmatpush1.msra.mxu0 0.0
        %2688 = vmatprep.subr.mxu0 0.0
        %2689 = vmatpush1.msra.mxu0 0.0
        %2690 = vmatprep.subr.mxu0 0.0
        %2691 = vmatpush1.msra.mxu0 0.0
        %2692 = vmatprep.subr.mxu0 0.0
        %2693 = vmatpush1.msra.mxu0 0.0
        %2694 = vmatprep.subr.mxu0 0.0
        %2695 = vmatpush1.msra.mxu0 0.0
        %2696 = vmatprep.subr.mxu0 0.0
        %2697 = vmatpush1.msra.mxu0 0.0
        %2698 = vmatprep.subr.mxu0 0.0
        %2699 = vmatpush1.msra.mxu0 0.0
        %2700 = vmatprep.subr.mxu0 0.0
        %2701 = vmatpush1.msra.mxu0 0.0
        %2702 = vmatprep.subr.mxu0 0.0
        %2703 = vmatpush1.msra.mxu0 0.0
        %2704 = vmatprep.subr.mxu0 0.0
        %2705 = vmatpush1.msra.mxu0 0.0
        %2706 = vmatprep.subr.mxu0 0.0
        %2707 = vmatpush1.msra.mxu0 0.0
        %2708 = vmatprep.mubr.f32.mxu0 0.0
        %2709 = vmatmul.mubr.f32.gmra.mrb[0].mxu0 %v2642
        %v2710 = vpop.f32.mrb[0].mxu0
        %v2711 = vadd.f32 0.0, %v2710
        %v2712 = vpop.f32.mrb[0].mxu0
        %2713 = vdwg.mxu0
        %2714 = vmatprep.subr.mxu0 0.0
        %2715 = vmatpush1.msra.mxu0 %v2629
        %2716 = vmatprep.subr.mxu0 0.0
        %2717 = vmatpush1.msra.mxu0 %v2630
        %2718 = vmatprep.subr.mxu0 0.0
        %2719 = vmatpush1.msra.mxu0 %v2631
        %2720 = vmatprep.subr.mxu0 0.0
        %2721 = vmatpush1.msra.mxu0 %v2632
        %2722 = vmatprep.subr.mxu0 0.0
        %2723 = vmatpush1.msra.mxu0 %v2633
        %2724 = vmatprep.subr.mxu0 0.0
        %2725 = vmatpush1.msra.mxu0 %v2634
        %2726 = vmatprep.subr.mxu0 0.0
        %2727 = vmatpush1.msra.mxu0 %v2635
        %2728 = vmatprep.subr.mxu0 0.0
        %2729 = vmatpush1.msra.mxu0 %v2636
        %2730 = vmatprep.subr.mxu0 0.0
        %2731 = vmatpush1.msra.mxu0 0.0
        %2732 = vmatprep.subr.mxu0 0.0
        %2733 = vmatpush1.msra.mxu0 0.0
        %2734 = vmatprep.subr.mxu0 0.0
        %2735 = vmatpush1.msra.mxu0 0.0
        %2736 = vmatprep.subr.mxu0 0.0
        %2737 = vmatpush1.msra.mxu0 0.0
        %2738 = vmatprep.subr.mxu0 0.0
        %2739 = vmatpush1.msra.mxu0 0.0
        %2740 = vmatprep.subr.mxu0 0.0
        %2741 = vmatpush1.msra.mxu0 0.0
        %2742 = vmatprep.subr.mxu0 0.0
        %2743 = vmatpush1.msra.mxu0 0.0
        %2744 = vmatprep.subr.mxu0 0.0
        %2745 = vmatpush1.msra.mxu0 0.0
        %2746 = vmatprep.subr.mxu0 0.0
        %2747 = vmatpush1.msra.mxu0 0.0
        %2748 = vmatprep.subr.mxu0 0.0
        %2749 = vmatpush1.msra.mxu0 0.0
        %2750 = vmatprep.subr.mxu0 0.0
        %2751 = vmatpush1.msra.mxu0 0.0
        %2752 = vmatprep.subr.mxu0 0.0
        %2753 = vmatpush1.msra.mxu0 0.0
        %2754 = vmatprep.subr.mxu0 0.0
        %2755 = vmatpush1.msra.mxu0 0.0
        %2756 = vmatprep.subr.mxu0 0.0
        %2757 = vmatpush1.msra.mxu0 0.0
        %2758 = vmatprep.subr.mxu0 0.0
        %2759 = vmatpush1.msra.mxu0 0.0
        %2760 = vmatprep.subr.mxu0 0.0
        %2761 = vmatpush1.msra.mxu0 0.0
        %2762 = vmatprep.subr.mxu0 0.0
        %2763 = vmatpush1.msra.mxu0 0.0
        %2764 = vmatprep.subr.mxu0 0.0
        %2765 = vmatpush1.msra.mxu0 0.0
        %2766 = vmatprep.subr.mxu0 0.0
        %2767 = vmatpush1.msra.mxu0 0.0
        %2768 = vmatprep.subr.mxu0 0.0
        %2769 = vmatpush1.msra.mxu0 0.0
        %2770 = vmatprep.subr.mxu0 0.0
        %2771 = vmatpush1.msra.mxu0 0.0
        %2772 = vmatprep.subr.mxu0 0.0
        %2773 = vmatpush1.msra.mxu0 0.0
        %2774 = vmatprep.subr.mxu0 0.0
        %2775 = vmatpush1.msra.mxu0 0.0
        %2776 = vmatprep.subr.mxu0 0.0
        %2777 = vmatpush1.msra.mxu0 0.0
        %2778 = vmatprep.mubr.f32.mxu0 0.0
        %2779 = vmatmul.mubr.f32.gmra.mrb[0].mxu0 %v1511
        %v2780 = vpop.f32.mrb[0].mxu0
        %v2781 = vadd.f32 %v2711, %v2780
        %v2782 = vpop.f32.mrb[0].mxu0
        %2783 = vdwg.mxu0
        %v2784 = vld [vmem:[%s29] sm:$0xff]
        %v2785 = vld [vmem:[%s29 + $0x8] sm:$0xff]
        %v2786 = vld [vmem:[%s29 + $0x10] sm:$0xff]
        %v2787 = vld [vmem:[%s29 + $0x18] sm:$0xff]
        %v2788 = vld [vmem:[%s29 + $0x20] sm:$0xff]
        %v2789 = vld [vmem:[%s29 + $0x28] sm:$0xff]
        %v2790 = vld [vmem:[%s29 + $0x30] sm:$0xff]
        %v2791 = vld [vmem:[%s29 + $0x38] sm:$0xff]
        %v2792 = vld [vmem:[%s29 + $0x40] sm:$0xff]
        %v2793 = vld [vmem:[%s29 + $0x48] sm:$0xff]
        %v2794 = vld [vmem:[%s29 + $0x50] sm:$0xff]
        %v2795 = vld [vmem:[%s29 + $0x58] sm:$0xff]
        %2796 = vmatprep.subr.mxu0 0.0
        %2797 = vmatpush1.msra.mxu0 %v2792
        %2798 = vmatprep.subr.mxu0 0.0
        %2799 = vmatpush1.msra.mxu0 %v2793
        %2800 = vmatprep.subr.mxu0 0.0
        %2801 = vmatpush1.msra.mxu0 %v2794
        %2802 = vmatprep.subr.mxu0 0.0
        %2803 = vmatpush1.msra.mxu0 %v2795
        %2804 = vmatprep.subr.mxu0 0.0
        %2805 = vmatpush1.msra.mxu0 0.0
        %2806 = vmatprep.subr.mxu0 0.0
        %2807 = vmatpush1.msra.mxu0 0.0
        %2808 = vmatprep.subr.mxu0 0.0
        %2809 = vmatpush1.msra.mxu0 0.0
        %2810 = vmatprep.subr.mxu0 0.0
        %2811 = vmatpush1.msra.mxu0 0.0
        %2812 = vmatprep.subr.mxu0 0.0
        %2813 = vmatpush1.msra.mxu0 0.0
        %2814 = vmatprep.subr.mxu0 0.0
        %2815 = vmatpush1.msra.mxu0 0.0
        %2816 = vmatprep.subr.mxu0 0.0
        %2817 = vmatpush1.msra.mxu0 0.0
        %2818 = vmatprep.subr.mxu0 0.0
        %2819 = vmatpush1.msra.mxu0 0.0
        %2820 = vmatprep.subr.mxu0 0.0
        %2821 = vmatpush1.msra.mxu0 0.0
        %2822 = vmatprep.subr.mxu0 0.0
        %2823 = vmatpush1.msra.mxu0 0.0
        %2824 = vmatprep.subr.mxu0 0.0
        %2825 = vmatpush1.msra.mxu0 0.0
        %2826 = vmatprep.subr.mxu0 0.0
        %2827 = vmatpush1.msra.mxu0 0.0
        %2828 = vmatprep.subr.mxu0 0.0
        %2829 = vmatpush1.msra.mxu0 0.0
        %2830 = vmatprep.subr.mxu0 0.0
        %2831 = vmatpush1.msra.mxu0 0.0
        %2832 = vmatprep.subr.mxu0 0.0
        %2833 = vmatpush1.msra.mxu0 0.0
        %2834 = vmatprep.subr.mxu0 0.0
        %2835 = vmatpush1.msra.mxu0 0.0
        %2836 = vmatprep.subr.mxu0 0.0
        %2837 = vmatpush1.msra.mxu0 0.0
        %2838 = vmatprep.subr.mxu0 0.0
        %2839 = vmatpush1.msra.mxu0 0.0
        %2840 = vmatprep.subr.mxu0 0.0
        %2841 = vmatpush1.msra.mxu0 0.0
        %2842 = vmatprep.subr.mxu0 0.0
        %2843 = vmatpush1.msra.mxu0 0.0
        %2844 = vmatprep.subr.mxu0 0.0
        %2845 = vmatpush1.msra.mxu0 0.0
        %2846 = vmatprep.subr.mxu0 0.0
        %2847 = vmatpush1.msra.mxu0 0.0
        %2848 = vmatprep.subr.mxu0 0.0
        %2849 = vmatpush1.msra.mxu0 0.0
        %2850 = vmatprep.subr.mxu0 0.0
        %2851 = vmatpush1.msra.mxu0 0.0
        %2852 = vmatprep.subr.mxu0 0.0
        %2853 = vmatpush1.msra.mxu0 0.0
        %2854 = vmatprep.subr.mxu0 0.0
        %2855 = vmatpush1.msra.mxu0 0.0
        %2856 = vmatprep.subr.mxu0 0.0
        %2857 = vmatpush1.msra.mxu0 0.0
        %2858 = vmatprep.subr.mxu0 0.0
        %2859 = vmatpush1.msra.mxu0 0.0
        %2860 = vmatprep.mubr.f32.mxu0 0.0
        %2861 = vmatmul.mubr.f32.gmra.mrb[0].mxu0 %v2642
        %v2862 = vpop.f32.mrb[0].mxu0
        %v2863 = vadd.f32 0.0, %v2862
        %v2864 = vpop.f32.mrb[0].mxu0
        %2865 = vdwg.mxu0
        %2866 = vmatprep.subr.mxu0 0.0
        %2867 = vmatpush1.msra.mxu0 %v2784
        %2868 = vmatprep.subr.mxu0 0.0
        %2869 = vmatpush1.msra.mxu0 %v2785
        %2870 = vmatprep.subr.mxu0 0.0
        %2871 = vmatpush1.msra.mxu0 %v2786
        %2872 = vmatprep.subr.mxu0 0.0
        %2873 = vmatpush1.msra.mxu0 %v2787
        %2874 = vmatprep.subr.mxu0 0.0
        %2875 = vmatpush1.msra.mxu0 %v2788
        %2876 = vmatprep.subr.mxu0 0.0
        %2877 = vmatpush1.msra.mxu0 %v2789
        %2878 = vmatprep.subr.mxu0 0.0
        %2879 = vmatpush1.msra.mxu0 %v2790
        %2880 = vmatprep.subr.mxu0 0.0
        %2881 = vmatpush1.msra.mxu0 %v2791
        %2882 = vmatprep.subr.mxu0 0.0
        %2883 = vmatpush1.msra.mxu0 0.0
        %2884 = vmatprep.subr.mxu0 0.0
        %2885 = vmatpush1.msra.mxu0 0.0
        %2886 = vmatprep.subr.mxu0 0.0
        %2887 = vmatpush1.msra.mxu0 0.0
        %2888 = vmatprep.subr.mxu0 0.0
        %2889 = vmatpush1.msra.mxu0 0.0
        %2890 = vmatprep.subr.mxu0 0.0
        %2891 = vmatpush1.msra.mxu0 0.0
        %2892 = vmatprep.subr.mxu0 0.0
        %2893 = vmatpush1.msra.mxu0 0.0
        %2894 = vmatprep.subr.mxu0 0.0
        %2895 = vmatpush1.msra.mxu0 0.0
        %2896 = vmatprep.subr.mxu0 0.0
        %2897 = vmatpush1.msra.mxu0 0.0
        %2898 = vmatprep.subr.mxu0 0.0
        %2899 = vmatpush1.msra.mxu0 0.0
        %2900 = vmatprep.subr.mxu0 0.0
        %2901 = vmatpush1.msra.mxu0 0.0
        %2902 = vmatprep.subr.mxu0 0.0
        %2903 = vmatpush1.msra.mxu0 0.0
        %2904 = vmatprep.subr.mxu0 0.0
        %2905 = vmatpush1.msra.mxu0 0.0
        %2906 = vmatprep.subr.mxu0 0.0
        %2907 = vmatpush1.msra.mxu0 0.0
        %2908 = vmatprep.subr.mxu0 0.0
        %2909 = vmatpush1.msra.mxu0 0.0
        %2910 = vmatprep.subr.mxu0 0.0
        %2911 = vmatpush1.msra.mxu0 0.0
        %2912 = vmatprep.subr.mxu0 0.0
        %2913 = vmatpush1.msra.mxu0 0.0
        %2914 = vmatprep.subr.mxu0 0.0
        %2915 = vmatpush1.msra.mxu0 0.0
        %2916 = vmatprep.subr.mxu0 0.0
        %2917 = vmatpush1.msra.mxu0 0.0
        %2918 = vmatprep.subr.mxu0 0.0
        %2919 = vmatpush1.msra.mxu0 0.0
        %2920 = vmatprep.subr.mxu0 0.0
        %2921 = vmatpush1.msra.mxu0 0.0
        %2922 = vmatprep.subr.mxu0 0.0
        %2923 = vmatpush1.msra.mxu0 0.0
        %2924 = vmatprep.subr.mxu0 0.0
        %2925 = vmatpush1.msra.mxu0 0.0
        %2926 = vmatprep.subr.mxu0 0.0
        %2927 = vmatpush1.msra.mxu0 0.0
        %2928 = vmatprep.subr.mxu0 0.0
        %2929 = vmatpush1.msra.mxu0 0.0
        %2930 = vmatprep.mubr.f32.mxu0 0.0
        %2931 = vmatmul.mubr.f32.gmra.mrb[0].mxu0 %v1511
        %v2932 = vpop.f32.mrb[0].mxu0
        %v2933 = vadd.f32 %v2863, %v2932
        %v2934 = vpop.f32.mrb[0].mxu0
        %2935 = vdwg.mxu0
        %v2936 = vld [vmem:[%s27] sm:$0x1]
        %v2938 = vlaneseq
        %v2939 = vshrl.u32 %v2938, 7
        %v2940 = vsub.s32 0, %v2939
        %v2941 = vrot.slane %v2936, %v2940
        %v2943 = vadd.f32 %v2781, %v2941
        %v2944 = vmax.f32 %v2943, 0.0
        %v2945 = vand.u32 2147483647, %v2943
        %v2946 = vsub.f32 0.0, %v2945
        %v2947 = vmul.f32 %v2946, 1.442695
        %v2948 = vpow.pop %v2947
        %v2949 = vadd.f32 %v2948, 1.0
        %v2950 = vsub.f32 %v2949, 1.0
        %vm2951 = vcmp.eq.f32.partialorder %v2950, 0.0
        %v2952 = vlog2.pop %v2949
        %v2953 = vmul.f32 %v2952, 0.6931472
        %v2954 = vrcp.pop %v2950
        %v2955 = vmul.f32 %v2948, %v2954
        %v2956 = vmul.f32 %v2953, %v2955
        %v2957 = vsel %vm2951, %v2948, %v2956
        %v2958 = vadd.f32 %v2944, %v2957
        %v2959 = vmax.f32 %v2958, 0.1
        %v2960 = vmin.f32 %v2959, 100.0
        %v2961 = vld [vmem:[%s31] sm:$0x1]
        %v2963 = vlaneseq
        %v2964 = vshrl.u32 %v2963, 7
        %v2965 = vsub.s32 0, %v2964
        %v2966 = vrot.slane %v2961, %v2965
        %v2968 = vadd.f32 %v2933, %v2966
        %v2969 = vmax.f32 %v2968, 0.0
        %v2970 = vand.u32 2147483647, %v2968
        %v2971 = vsub.f32 0.0, %v2970
        %v2972 = vmul.f32 %v2971, 1.442695
        %v2973 = vpow.pop %v2972
        %v2974 = vadd.f32 %v2973, 1.0
        %v2975 = vsub.f32 %v2974, 1.0
        %vm2976 = vcmp.eq.f32.partialorder %v2975, 0.0
        %v2977 = vlog2.pop %v2974
        %v2978 = vmul.f32 %v2977, 0.6931472
        %v2979 = vrcp.pop %v2975
        %v2980 = vmul.f32 %v2973, %v2979
        %v2981 = vmul.f32 %v2978, %v2980
        %v2982 = vsel %vm2976, %v2973, %v2981
        %v2983 = vadd.f32 %v2969, %v2982
        %v2984 = vmax.f32 %v2983, 1e-30
        %v2985 = vrcp.pop %v2960
        %v2986 = vmul.f32 1.0, %v2985
        %v2987 = vadd.f32 %v2986, 1.0
        %v2988 = vadd.f32 %v2987, 7.0
        %v2989 = vadd.f32 %v2987, 1.0
        %v2990 = vmul.f32 %v2987, %v2989
        %v2991 = vadd.f32 %v2987, 2.0
        %v2992 = vmul.f32 %v2990, %v2991
        %v2993 = vadd.f32 %v2987, 3.0
        %v2994 = vmul.f32 %v2992, %v2993
        %v2995 = vadd.f32 %v2987, 4.0
        %v2996 = vmul.f32 %v2994, %v2995
        %v2997 = vadd.f32 %v2987, 5.0
        %v2998 = vmul.f32 %v2996, %v2997
        %v2999 = vadd.f32 %v2987, 6.0
        %v3000 = vmul.f32 %v2998, %v2999
        %v3001 = vrcp.pop %v2988
        %v3002 = vmul.f32 1.0, %v3001
        %v3003 = vmul.f32 %v3002, %v3002
        %v3004 = vmul.f32 %v3003, 0.0007936508
        %v3005 = vsub.f32 0.0027777778, %v3004
        %v3006 = vmul.f32 %v3003, %v3005
        %v3007 = vsub.f32 0.083333336, %v3006
        %v3008 = vmul.f32 %v3002, %v3007
        %v3009 = vsub.f32 %v2988, 0.5
        %v3010 = vlog2.pop %v2988
        %v3011 = vmul.f32 %v3010, 0.6931472
        %v3012 = vmul.f32 %v3009, %v3011
        %v3013 = vsub.f32 %v3012, %v2988
        %v3014 = vadd.f32 %v3013, 0.9189385
        %v3015 = vadd.f32 %v3014, %v3008
        %v3016 = vlog2.pop %v3000
        %v3017 = vmul.f32 %v3016, 0.6931472
        %v3018 = vsub.f32 %v3015, %v3017
        %v3019 = vsub.f32 0.0, %v3018
        %v3020 = vmul.f32 %v3019, 1.442695
        %v3021 = vpow.pop %v3020
        %v3022 = vmul.f32 %v2984, %v3021
        %v3023 = vld [vmem:[%s1136] sm:$0xff]
        %v3024 = vld [vmem:[%s1136 + $0x8] sm:$0xff]
        %v3025 = vld [vmem:[%s1136 + $0x10] sm:$0xff]
        %v3026 = vmul.f32 %v3023, %v2986
        %v3027 = vmul.f32 %v3024, %v2986
        %v3028 = vmul.f32 %v3025, %v2986
        %v3029 = vmul.f32 %v3026, 1.442695
        %v3030 = vpow.pop %v3029
        %v3031 = vmul.f32 %v3027, 1.442695
        %v3032 = vpow.pop %v3031
        %v3033 = vmul.f32 %v3028, 1.442695
        %v3034 = vpow.pop %v3033
        %v3035 = vsel %vm1609, %v3030, 0.0
        %v3036 = vsel %vm1609, %v3032, 0.0
        %v3037 = vadd.f32 %v3035, %v3036
        %v3038 = vsel %vm1609, %v3034, 0.0
        %v3039 = vadd.f32 %v3037, %v3038
        %v3040 = vrcp.pop 3.0
        %v3041 = vmul.f32 %v3039, %v3040
        %v3042 = vmul.f32 %v3022, %v3041
        %v3043 = vmax.f32 %v3042, 1e-30
        %v3044 = vmin.f32 %v3043, 1000.0
        %v3046 = vsel %vm1609, %v3044, 0
        %3048 = vmatprep.subr.mxu0 0.0
        %3049 = vmatpush1.msra.mxu0 %v1900
        %3050 = vmatprep.subr.mxu0 0.0
        %3051 = vmatpush1.msra.mxu0 %v1901
        %3052 = vmatprep.subr.mxu0 0.0
        %3053 = vmatpush1.msra.mxu0 %v1902
        %3054 = vmatprep.subr.mxu0 0.0
        %3055 = vmatpush1.msra.mxu0 %v1903
        %3056 = vmatprep.subr.mxu0 0.0
        %3057 = vmatpush1.msra.mxu0 0.0
        %3058 = vmatprep.subr.mxu0 0.0
        %3059 = vmatpush1.msra.mxu0 0.0
        %3060 = vmatprep.subr.mxu0 0.0
        %3061 = vmatpush1.msra.mxu0 0.0
        %3062 = vmatprep.subr.mxu0 0.0
        %3063 = vmatpush1.msra.mxu0 0.0
        %3064 = vmatprep.subr.mxu0 0.0
        %3065 = vmatpush1.msra.mxu0 0.0
        %3066 = vmatprep.subr.mxu0 0.0
        %3067 = vmatpush1.msra.mxu0 0.0
        %3068 = vmatprep.subr.mxu0 0.0
        %3069 = vmatpush1.msra.mxu0 0.0
        %3070 = vmatprep.subr.mxu0 0.0
        %3071 = vmatpush1.msra.mxu0 0.0
        %3072 = vmatprep.subr.mxu0 0.0
        %3073 = vmatpush1.msra.mxu0 0.0
        %3074 = vmatprep.subr.mxu0 0.0
        %3075 = vmatpush1.msra.mxu0 0.0
        %3076 = vmatprep.subr.mxu0 0.0
        %3077 = vmatpush1.msra.mxu0 0.0
        %3078 = vmatprep.subr.mxu0 0.0
        %3079 = vmatpush1.msra.mxu0 0.0
        %3080 = vmatprep.subr.mxu0 0.0
        %3081 = vmatpush1.msra.mxu0 0.0
        %3082 = vmatprep.subr.mxu0 0.0
        %3083 = vmatpush1.msra.mxu0 0.0
        %3084 = vmatprep.subr.mxu0 0.0
        %3085 = vmatpush1.msra.mxu0 0.0
        %3086 = vmatprep.subr.mxu0 0.0
        %3087 = vmatpush1.msra.mxu0 0.0
        %3088 = vmatprep.subr.mxu0 0.0
        %3089 = vmatpush1.msra.mxu0 0.0
        %3090 = vmatprep.subr.mxu0 0.0
        %3091 = vmatpush1.msra.mxu0 0.0
        %3092 = vmatprep.subr.mxu0 0.0
        %3093 = vmatpush1.msra.mxu0 0.0
        %3094 = vmatprep.subr.mxu0 0.0
        %3095 = vmatpush1.msra.mxu0 0.0
        %3096 = vmatprep.subr.mxu0 0.0
        %3097 = vmatpush1.msra.mxu0 0.0
        %3098 = vmatprep.subr.mxu0 0.0
        %3099 = vmatpush1.msra.mxu0 0.0
        %3100 = vmatprep.subr.mxu0 0.0
        %3101 = vmatpush1.msra.mxu0 0.0
        %3102 = vmatprep.subr.mxu0 0.0
        %3103 = vmatpush1.msra.mxu0 0.0
        %3104 = vmatprep.subr.mxu0 0.0
        %3105 = vmatpush1.msra.mxu0 0.0
        %3106 = vmatprep.subr.mxu0 0.0
        %3107 = vmatpush1.msra.mxu0 0.0
        %3108 = vmatprep.subr.mxu0 0.0
        %3109 = vmatpush1.msra.mxu0 0.0
        %3110 = vmatprep.subr.mxu0 0.0
        %3111 = vmatpush1.msra.mxu0 0.0
        %3112 = vmatprep.mubr.f32.mxu0 0.0
        %3113 = vmatmul.mubr.f32.gmra.mrb[0].mxu0 %v3046
        %v3114 = vpop.f32.mrb[0].mxu0
        %v3115 = vadd.f32 0.0, %v3114
        %v3116 = vpop.f32.mrb[0].mxu0
        %3117 = vdwg.mxu0
        %3118 = vst.msk [vmem:[%s1264] sm:$0xff] %vm1609, %v2960
        %3119 = vst.msk [vmem:[%s1272] sm:$0xff] %vm1609, %v3022
        %3120 = vst.msk [vmem:[%s1239] sm:$0xff] %vm1609, %v3044
        %v3121 = vmax.f32 %v3115, 1e-30
        %v3122 = vlog2.pop %v3121
        %v3123 = vmul.f32 %v3122, 0.6931472
        %v3124 = vmul.f32 %v3123, %v1281
        %v3125 = vsub.f32 %v3124, %v3115
        %3126 = vadd.xlane.f32.xlu0 %v3125
        %v3127 = vpop.xlane.xlu0 %3126
        %vm3128 = vcmask 7168
        %3129 = vst.msk [vmem:[%s1260] sm:$0xff] %vm3128, %v3127
        %p3130 = scmp.lt.s32.totalorder %s77, 1
        %s3131 = scalar_select %p3130, %s77, 1
        %s3132 = smul.addr %s3131, 8
        %s3133 = scalar_lea.vmem %s45, %s3132
        %p3134 = scmp.lt.s32.totalorder %s77, 1
        %s3135 = scalar_select %p3134, %s77, 1
        %s3136 = smul.addr %s3135, 8
        %s3137 = scalar_lea.vmem %s47, %s3136
        %p3138 = scmp.lt.s32.totalorder %s77, 1
        %s3139 = scalar_select %p3138, %s77, 1
        %s3140 = smul.addr %s3139, 8
        %s3141 = scalar_lea.vmem %s49, %s3140
        %p3142 = scmp.lt.s32.totalorder %s77, 1
        %s3143 = scalar_select %p3142, %s77, 1
        %s3144 = smul.addr %s3143, 8
        %s3145 = scalar_lea.vmem %s51, %s3144
        %p3146 = scmp.lt.s32.totalorder %s77, 1
        %s3147 = scalar_select %p3146, %s77, 1
        %s3148 = smul.addr %s3147, 8
        %s3149 = scalar_lea.vmem %s53, %s3148
        %s3150 = sand.u32 %s692, 1
        %s3151 = scalar_lea.sflag [#allocation5], %s3150
        %s3152 = sand.u32 %s692, 1
        %s3153 = smul.addr %s3152, 8
        %s3154 = scalar_lea.vmem [#allocation4], %s3153
        %s3155 = sand.u32 %s718, 1
        %s3156 = scalar_lea.sflag [#allocation7], %s3155
        %s3157 = sand.u32 %s718, 1
        %s3158 = smul.addr %s3157, 8
        %s3159 = scalar_lea.vmem [#allocation6], %s3158
        %p3160 = scmp.lt.s32.totalorder %s77, 1
        %s3161 = scalar_select %p3160, %s77, 1
        %s3162 = smul.addr %s3161, 8
        %s3163 = scalar_lea.vmem %s59, %s3162
        // Predicated region
        $region185: #{sawetm_forward.3} parent=175 // pred_check
          %p3164 = pneg %p572
        $region186: #{sawetm_forward.3} parent=175 // pred_check_branch
          %3166 = sbr.rel (%p3164) target = $region188
        $region187: #{sawetm_forward.3} parent=175 // pred_region
          _
        $region188: #{sawetm_forward.3} parent=175 // pred_fallthru
          _
        // Predicated region
        $region189: #{sawetm_forward.3} parent=175 // pred_check
          %p3167 = pneg %p598
        $region190: #{sawetm_forward.3} parent=175 // pred_check_branch
          %3169 = sbr.rel (%p3167) target = $region192
        $region191: #{sawetm_forward.3} parent=175 // pred_region
          _
        $region192: #{sawetm_forward.3} parent=175 // pred_fallthru
          _
        // Predicated region
        $region193: #{sawetm_forward.3} parent=175 // pred_check
          %p3170 = pneg %p624
        $region194: #{sawetm_forward.3} parent=175 // pred_check_branch
          %3172 = sbr.rel (%p3170) target = $region196
        $region195: #{sawetm_forward.3} parent=175 // pred_region
          _
        $region196: #{sawetm_forward.3} parent=175 // pred_fallthru
          _
        // Predicated region
        $region197: #{sawetm_forward.3} parent=175 // pred_check
          %p3173 = pneg %p650
        $region198: #{sawetm_forward.3} parent=175 // pred_check_branch
          %3175 = sbr.rel (%p3173) target = $region200
        $region199: #{sawetm_forward.3} parent=175 // pred_region
          _
        $region200: #{sawetm_forward.3} parent=175 // pred_fallthru
          _
        // Predicated region
        $region201: #{sawetm_forward.3} parent=175 // pred_check
          %p3176 = pneg %p676
        $region202: #{sawetm_forward.3} parent=175 // pred_check_branch
          %3178 = sbr.rel (%p3176) target = $region204
        $region203: #{sawetm_forward.3} parent=175 // pred_region
          _
        $region204: #{sawetm_forward.3} parent=175 // pred_fallthru
          _
        // Predicated region
        $region205: #{sawetm_forward.3} parent=175 // pred_check
          %p3179 = pneg %p702
        $region206: #{sawetm_forward.3} parent=175 // pred_check_branch
          %3181 = sbr.rel (%p3179) target = $region208
        $region207: #{sawetm_forward.3} parent=175 // pred_region
          %s3183 = ssub.s32 128, 128
          %3184 = vsyncadd %s3151, %s3183
          %s3185 = smul.addr %s77, 128
          %s3186 = scalar_lea.hbm %s55, %s3185
          %s3188 = sshll.u32 %s3154, 4
          %s3189 = int_to_ptr.vmem [resolvable:$true] %s3188
          %3191 = dma.vmem_to_hbm [thread:$0]  %s3189, 128, %s3186, %s3151
        $region208: #{sawetm_forward.3} parent=175 // pred_fallthru
          _
        // Predicated region
        $region209: #{sawetm_forward.3} parent=175 // pred_check
          %p3192 = pneg %p728
        $region210: #{sawetm_forward.3} parent=175 // pred_check_branch
          %3194 = sbr.rel (%p3192) target = $region212
        $region211: #{sawetm_forward.3} parent=175 // pred_region
          %s3196 = ssub.s32 128, 128
          %3197 = vsyncadd %s3156, %s3196
          %s3198 = smul.addr %s77, 128
          %s3199 = scalar_lea.hbm %s57, %s3198
          %s3201 = sshll.u32 %s3159, 4
          %s3202 = int_to_ptr.vmem [resolvable:$true] %s3201
          %3204 = dma.vmem_to_hbm [thread:$0]  %s3202, 128, %s3199, %s3156
        $region212: #{sawetm_forward.3} parent=175 // pred_fallthru
          _
        // Predicated region
        $region213: #{sawetm_forward.3} parent=175 // pred_check
          %p3205 = pneg %p754
        $region214: #{sawetm_forward.3} parent=175 // pred_check_branch
          %3207 = sbr.rel (%p3205) target = $region216
        $region215: #{sawetm_forward.3} parent=175 // pred_region
          _
        $region216: #{sawetm_forward.3} parent=175 // pred_fallthru
          _
      $region176: #{sawetm_forward.3} parent=5 // pred_fallthru
        _
      %p3208 = scmp.le.s32.totalorder 2, %s72
      // Predicated region
      $region217: #{sawetm_forward.3} parent=5 // pred_check
        %p3209 = pneg %p3208
      $region218: #{sawetm_forward.3} parent=5 // pred_check_branch
        %3211 = sbr.rel (%p3209) target = $region220
      $region219: #{sawetm_forward.3} parent=5 // pred_region
        %s3212 = ssub.s32 %s72, 2
        // Predicated region
        $region221: #{sawetm_forward.3} parent=219 // pred_check
          %p3213 = pneg %p578
        $region222: #{sawetm_forward.3} parent=219 // pred_check_branch
          %3215 = sbr.rel (%p3213) target = $region224
        $region223: #{sawetm_forward.3} parent=219 // pred_region
          %p3216 = scmp.lt.s32.totalorder %s78, 1
          %s3217 = scalar_select %p3216, %s78, 1
          %s3218 = smul.addr %s3217, 8
          %s3219 = scalar_lea.vmem %s45, %s3218
        $region224: #{sawetm_forward.3} parent=219 // pred_fallthru
          _
        // Predicated region
        $region225: #{sawetm_forward.3} parent=219 // pred_check
          %p3220 = pneg %p604
        $region226: #{sawetm_forward.3} parent=219 // pred_check_branch
          %3222 = sbr.rel (%p3220) target = $region228
        $region227: #{sawetm_forward.3} parent=219 // pred_region
          %p3223 = scmp.lt.s32.totalorder %s78, 1
          %s3224 = scalar_select %p3223, %s78, 1
          %s3225 = smul.addr %s3224, 8
          %s3226 = scalar_lea.vmem %s47, %s3225
        $region228: #{sawetm_forward.3} parent=219 // pred_fallthru
          _
        // Predicated region
        $region229: #{sawetm_forward.3} parent=219 // pred_check
          %p3227 = pneg %p630
        $region230: #{sawetm_forward.3} parent=219 // pred_check_branch
          %3229 = sbr.rel (%p3227) target = $region232
        $region231: #{sawetm_forward.3} parent=219 // pred_region
          %p3230 = scmp.lt.s32.totalorder %s78, 1
          %s3231 = scalar_select %p3230, %s78, 1
          %s3232 = smul.addr %s3231, 8
          %s3233 = scalar_lea.vmem %s49, %s3232
        $region232: #{sawetm_forward.3} parent=219 // pred_fallthru
          _
        // Predicated region
        $region233: #{sawetm_forward.3} parent=219 // pred_check
          %p3234 = pneg %p656
        $region234: #{sawetm_forward.3} parent=219 // pred_check_branch
          %3236 = sbr.rel (%p3234) target = $region236
        $region235: #{sawetm_forward.3} parent=219 // pred_region
          %p3237 = scmp.lt.s32.totalorder %s78, 1
          %s3238 = scalar_select %p3237, %s78, 1
          %s3239 = smul.addr %s3238, 8
          %s3240 = scalar_lea.vmem %s51, %s3239
        $region236: #{sawetm_forward.3} parent=219 // pred_fallthru
          _
        // Predicated region
        $region237: #{sawetm_forward.3} parent=219 // pred_check
          %p3241 = pneg %p682
        $region238: #{sawetm_forward.3} parent=219 // pred_check_branch
          %3243 = sbr.rel (%p3241) target = $region240
        $region239: #{sawetm_forward.3} parent=219 // pred_region
          %p3244 = scmp.lt.s32.totalorder %s78, 1
          %s3245 = scalar_select %p3244, %s78, 1
          %s3246 = smul.addr %s3245, 8
          %s3247 = scalar_lea.vmem %s53, %s3246
        $region240: #{sawetm_forward.3} parent=219 // pred_fallthru
          _
        // Predicated region
        $region241: #{sawetm_forward.3} parent=219 // pred_check
          %p3248 = pneg %p708
        $region242: #{sawetm_forward.3} parent=219 // pred_check_branch
          %3250 = sbr.rel (%p3248) target = $region244
        $region243: #{sawetm_forward.3} parent=219 // pred_region
          %s3251 = sand.u32 %s693, 1
          %s3252 = scalar_lea.sflag [#allocation5], %s3251
          %s3253 = sand.u32 %s693, 1
          %s3254 = smul.addr %s3253, 8
          %s3255 = scalar_lea.vmem [#allocation4], %s3254
          %3256 = dma.done %s3252, 128
        $region244: #{sawetm_forward.3} parent=219 // pred_fallthru
          _
        // Predicated region
        $region245: #{sawetm_forward.3} parent=219 // pred_check
          %p3257 = pneg %p734
        $region246: #{sawetm_forward.3} parent=219 // pred_check_branch
          %3259 = sbr.rel (%p3257) target = $region248
        $region247: #{sawetm_forward.3} parent=219 // pred_region
          %s3260 = sand.u32 %s719, 1
          %s3261 = scalar_lea.sflag [#allocation7], %s3260
          %s3262 = sand.u32 %s719, 1
          %s3263 = smul.addr %s3262, 8
          %s3264 = scalar_lea.vmem [#allocation6], %s3263
          %3265 = dma.done %s3261, 128
        $region248: #{sawetm_forward.3} parent=219 // pred_fallthru
          _
        // Predicated region
        $region249: #{sawetm_forward.3} parent=219 // pred_check
          %p3266 = pneg %p760
        $region250: #{sawetm_forward.3} parent=219 // pred_check_branch
          %3268 = sbr.rel (%p3266) target = $region252
        $region251: #{sawetm_forward.3} parent=219 // pred_region
          %p3269 = scmp.lt.s32.totalorder %s78, 1
          %s3270 = scalar_select %p3269, %s78, 1
          %s3271 = smul.addr %s3270, 8
          %s3272 = scalar_lea.vmem %s59, %s3271
        $region252: #{sawetm_forward.3} parent=219 // pred_fallthru
          _
      $region220: #{sawetm_forward.3} parent=5 // pred_fallthru
        _
    $region6: #{sawetm_forward.3} parent=1 // loop_footer
      %s76 = sadd.s32 1, %s72
    $region7: #{sawetm_forward.3} parent=1 // loop_footer_branch
      %71 = sbr.rel target = $region3
    $region8: #{sawetm_forward.3} parent=1 // loop_exit
      _
    %3273 = vsyncpa [#allocation5], 1
    %s3274 = scalar_lea.sflag [#allocation5], 1
    %3275 = vsyncpa %s3274, 1
    %3276 = vsyncpa [#allocation7], 1
    %s3277 = scalar_lea.sflag [#allocation7], 1
    %3278 = vsyncpa %s3277, 1

</llo_original>
